<compile_context>
chip_gen: v7x
topology: tpu7x:2x2x1
jax: 0.10.0
libtpu: 0.0.40
codegen_flags: <defaults>
</compile_context>

<pallas_src>
import math

import jax
import jax.numpy as jnp
from jax.experimental import pallas as pl
from jax.experimental.pallas import tpu as pltpu

B, S = 2, 8
D_MODEL = 32
NHEAD = 4
HEAD_DIM = D_MODEL // NHEAD
DIM_FF = 64
NUM_LAYERS = 2
LN_EPS = 1e-5

# Set to jnp.bfloat16 on v5e/v6e/v7x for the native MXU path (re-verify tolerance).
MATMUL_DTYPE = jnp.float32

KERNEL_PARAM_NAMES = ("wqkv", "bqkv", "wo", "bo", "ln1w", "ln1b",
                      "w1", "b1", "w2", "b2", "ln2w", "ln2b")


def _layer_norm(x, w, b):
    mu = jnp.mean(x, axis=-1, keepdims=True)
    xc = x - mu
    var = jnp.mean(xc * xc, axis=-1, keepdims=True)
    return xc * jax.lax.rsqrt(var + LN_EPS) * w + b


def _mm(a, b):
    """2-D MXU dot with f32 accumulation."""
    return jnp.dot(a.astype(MATMUL_DTYPE), b.astype(MATMUL_DTYPE),
                   preferred_element_type=jnp.float32)


def encoder_kernel(x_ref, wqkv_ref, bqkv_ref, wo_ref, bo_ref,
                   ln1w_ref, ln1b_ref, w1_ref, b1_ref, w2_ref, b2_ref,
                   ln2w_ref, ln2b_ref, o_ref):
    """All NUM_LAYERS encoder layers in one invocation. Activations are (B*S, D)."""
    x = x_ref[...].astype(jnp.float32)                          # (N, D)

    def to_heads(t):
        # (N, D_MODEL) -> (B*NHEAD, S, HEAD_DIM); single relayout, no lane slicing.
        return jnp.swapaxes(t.reshape(B, S, NHEAD, HEAD_DIM), 1, 2) \
                  .reshape(B * NHEAD, S, HEAD_DIM)

    for l in range(NUM_LAYERS):                                 # static layer loop
        # ---- fused QKV projection: one (N, D) x (D, 3D) matmul ----
        # (softmax scale is already folded into the Q columns at pack time)
        qkv = _mm(x, wqkv_ref[l]) + bqkv_ref[l]                 # (N, 3D)
        q = to_heads(qkv[:, 0 * D_MODEL:1 * D_MODEL])           # (B*H, S, hd)
        k = to_heads(qkv[:, 1 * D_MODEL:2 * D_MODEL])
        v = to_heads(qkv[:, 2 * D_MODEL:3 * D_MODEL])

        # ---- multi-head self-attention: two batched contractions ----
        scores = jnp.einsum('gqd,gkd->gqk', q, k,
                            preferred_element_type=jnp.float32)  # (B*H, S, S)
        scores = scores - jnp.max(scores, axis=-1, keepdims=True)
        p = jnp.exp(scores)
        p = p / jnp.sum(p, axis=-1, keepdims=True)               # exact division
        ctx = jnp.einsum('gqk,gkd->gqd', p, v,
                         preferred_element_type=jnp.float32)     # (B*H, S, hd)
        ctx = jnp.swapaxes(ctx.reshape(B, NHEAD, S, HEAD_DIM), 1, 2) \
                 .reshape(B * S, D_MODEL)                        # back to (N, D)

        # ---- fused out-projection: one (N, D) x (D, D) matmul ----
        attn = _mm(ctx, wo_ref[l]) + bo_ref[l]                   # (N, D)

        # residual + layer norm 1 (post-norm)
        x = _layer_norm(x + attn, ln1w_ref[l], ln1b_ref[l])

        # ---- feed-forward (relu), flat 2-D matmuls ----
        h1 = jnp.maximum(_mm(x, w1_ref[l]) + b1_ref[l], 0.0)     # (N, FF)
        ff = _mm(h1, w2_ref[l]) + b2_ref[l]                      # (N, D)

        # residual + layer norm 2
        x = _layer_norm(x + ff, ln2w_ref[l], ln2b_ref[l])

    o_ref[...] = x.astype(o_ref.dtype)
    # TODO(synk): dropout is omitted (eval-mode identity).


def global_transformer_forward(x, packed):
    """x: (B, S, D).  packed: kernel-layout params (stacked over layers)."""
    b, s, d = x.shape
    x2 = x.reshape(b * s, d)                 # flatten batch*seq for flat 2-D dots
    n_in = 1 + len(KERNEL_PARAM_NAMES)
    out = pl.pallas_call(
        encoder_kernel,
        out_shape=jax.ShapeDtypeStruct((b * s, d), x.dtype),
        in_specs=[pl.BlockSpec(memory_space=pltpu.MemorySpace.VMEM)
                  for _ in range(n_in)],
        out_specs=pl.BlockSpec(memory_space=pltpu.MemorySpace.VMEM),
    )(x2, *[packed[name] for name in KERNEL_PARAM_NAMES])
    return out.reshape(b, s, d)


def init_raw_params(key):
    """PyTorch-layout synthetic weights (nn.TransformerEncoderLayer), stacked over layers."""
    def nrm(k, shape, scale):
        return scale * jax.random.normal(k, shape, dtype=jnp.float32)

    names = ("in_w", "in_b", "out_w", "out_b", "ln1w", "ln1b",
             "w1", "b1", "w2", "b2", "ln2w", "ln2b")
    raw = {n: [] for n in names}
    for lk in jax.random.split(key, NUM_LAYERS):
        ks = jax.random.split(lk, 10)
        sc = 1.0 / math.sqrt(D_MODEL)
        raw["in_w"].append(nrm(ks[0], (3 * D_MODEL, D_MODEL), sc))
        raw["in_b"].append(nrm(ks[1], (3 * D_MODEL,), 0.02))
        raw["out_w"].append(nrm(ks[2], (D_MODEL, D_MODEL), sc))
        raw["out_b"].append(nrm(ks[3], (D_MODEL,), 0.02))
        raw["ln1w"].append(1.0 + nrm(ks[4], (D_MODEL,), 0.05))
        raw["ln1b"].append(nrm(ks[5], (D_MODEL,), 0.05))
        raw["w1"].append(nrm(ks[6], (DIM_FF, D_MODEL), sc))
        raw["b1"].append(nrm(ks[7], (DIM_FF,), 0.02))
        raw["w2"].append(nrm(ks[8], (D_MODEL, DIM_FF), 1.0 / math.sqrt(DIM_FF)))
        raw["b2"].append(nrm(ks[9], (D_MODEL,), 0.02))
        raw["ln2w"].append(jnp.ones((D_MODEL,), jnp.float32))
        raw["ln2b"].append(jnp.zeros((D_MODEL,), jnp.float32))
    return {n: jnp.stack(v, axis=0) for n, v in raw.items()}


def pack_params(raw):
    """Pack / pre-transpose PyTorch-layout weights into the kernel's fused layout.

    Folds the 1/sqrt(HEAD_DIM) softmax scale into the Q block of the fused QKV
    weight/bias, and pre-casts weight matrices to MATMUL_DTYPE (no-op for f32).
    """
    scale = 1.0 / math.sqrt(HEAD_DIM)
    col_scale = jnp.concatenate(
        [jnp.full((D_MODEL,), scale, jnp.float32),
         jnp.ones((2 * D_MODEL,), jnp.float32)])                 # (3D,)

    wqkv = jnp.swapaxes(raw["in_w"], 1, 2) * col_scale            # (L, D, 3D)
    bqkv = raw["in_b"][:, None, :] * col_scale                    # (L, 1, 3D)

    def wcast(w):
        return w.astype(MATMUL_DTYPE)

    return {
        "wqkv": wcast(wqkv),                          # x @ wqkv == x @ Wqkv^T (Q pre-scaled)
        "bqkv": bqkv,
        "wo":   wcast(jnp.swapaxes(raw["out_w"], 1, 2)),   # (L, D, D)
        "bo":   raw["out_b"][:, None, :],             # (L, 1, D)
        "ln1w": raw["ln1w"][:, None, :],
        "ln1b": raw["ln1b"][:, None, :],
        "w1":   wcast(jnp.swapaxes(raw["w1"], 1, 2)),      # (L, D, FF)
        "b1":   raw["b1"][:, None, :],
        "w2":   wcast(jnp.swapaxes(raw["w2"], 1, 2)),      # (L, FF, D)
        "b2":   raw["b2"][:, None, :],
        "ln2w": raw["ln2w"][:, None, :],
        "ln2b": raw["ln2b"][:, None, :],
    }


def reference_forward(x, raw):
    """Pure-JAX mirror of the PyTorch forward (eval mode), per-head, unfused."""
    x = x.astype(jnp.float32)                       # (B, S, D)
    for l in range(NUM_LAYERS):
        in_w, in_b = raw["in_w"][l], raw["in_b"][l]
        wq, wk, wv = in_w[:D_MODEL], in_w[D_MODEL:2 * D_MODEL], in_w[2 * D_MODEL:]
        bq, bk, bv = in_b[:D_MODEL], in_b[D_MODEL:2 * D_MODEL], in_b[2 * D_MODEL:]
        q = jnp.einsum('bsd,ed->bse', x, wq) + bq
        k = jnp.einsum('bsd,ed->bse', x, wk) + bk
        v = jnp.einsum('bsd,ed->bse', x, wv) + bv
        heads = []
        for h in range(NHEAD):
            sl = slice(h * HEAD_DIM, (h + 1) * HEAD_DIM)
            s = jnp.einsum('bqe,bke->bqk', q[..., sl], k[..., sl]) / math.sqrt(HEAD_DIM)
            a = jax.nn.softmax(s, axis=-1)
            heads.append(jnp.einsum('bqk,bke->bqe', a, v[..., sl]))
        ctx = jnp.concatenate(heads, axis=-1)
        attn = jnp.einsum('bsd,ed->bse', ctx, raw["out_w"][l]) + raw["out_b"][l]
        x = _layer_norm(x + attn, raw["ln1w"][l], raw["ln1b"][l])
        h1 = jnp.maximum(jnp.einsum('bsd,fd->bsf', x, raw["w1"][l]) + raw["b1"][l], 0.0)
        ff = jnp.einsum('bsf,df->bsd', h1, raw["w2"][l]) + raw["b2"][l]
        x = _layer_norm(x + ff, raw["ln2w"][l], raw["ln2b"][l])
    return x


if __name__ == "__main__":
    key = jax.random.PRNGKey(0)
    kx, kp = jax.random.split(key)
    x = jax.random.normal(kx, (B, S, D_MODEL), dtype=jnp.float32)
    raw = init_raw_params(kp)
    packed = pack_params(raw)

    out = jax.block_until_ready(global_transformer_forward(x, packed))
    ref = reference_forward(x, raw)

    assert out.shape == (B, S, D_MODEL)
    max_err = float(jnp.max(jnp.abs(out - ref)))
    if not jnp.allclose(out, ref, atol=2e-3, rtol=2e-3):
        raise AssertionError(f"mismatch vs reference, max abs err = {max_err}")
    print("KERNEL_OK")
</pallas_src>

<mosaic_0001>
module attributes {stable_mosaic.version = 11 : i64} {
  func.func @encoder_kernel(%arg0: memref<16x32xf32, #tpu.memory_space<vmem>>, %arg1: memref<2x32x96xf32, #tpu.memory_space<vmem>>, %arg2: memref<2x1x96xf32, #tpu.memory_space<vmem>>, %arg3: memref<2x32x32xf32, #tpu.memory_space<vmem>>, %arg4: memref<2x1x32xf32, #tpu.memory_space<vmem>>, %arg5: memref<2x1x32xf32, #tpu.memory_space<vmem>>, %arg6: memref<2x1x32xf32, #tpu.memory_space<vmem>>, %arg7: memref<2x32x64xf32, #tpu.memory_space<vmem>>, %arg8: memref<2x1x64xf32, #tpu.memory_space<vmem>>, %arg9: memref<2x64x32xf32, #tpu.memory_space<vmem>>, %arg10: memref<2x1x32xf32, #tpu.memory_space<vmem>>, %arg11: memref<2x1x32xf32, #tpu.memory_space<vmem>>, %arg12: memref<2x1x32xf32, #tpu.memory_space<vmem>>, %arg13: memref<16x32xf32, #tpu.memory_space<vmem>>) attributes {dimension_semantics = [], scalar_prefetch = 0 : i64, scratch_operands = 0 : i64, tpu.core_type = #tpu.core_type<tc>} {
    %c0 = arith.constant 0 : index
    %c0_0 = arith.constant 0 : index
    %0 = vector.load %arg0[%c0, %c0_0] : memref<16x32xf32, #tpu.memory_space<vmem>>, vector<16x32xf32>
    %c0_1 = arith.constant 0 : index
    %c0_2 = arith.constant 0 : index
    %c0_3 = arith.constant 0 : index
    %1 = vector.load %arg1[%c0_1, %c0_2, %c0_3] : memref<2x32x96xf32, #tpu.memory_space<vmem>>, vector<1x32x96xf32>
    %2 = vector.shape_cast %1 : vector<1x32x96xf32> to vector<32x96xf32>
    %cst = arith.constant dense<0.000000e+00> : vector<16x96xf32>
    %3 = tpu.matmul %0, %2, %cst {dimension_numbers = #tpu.dot_dimension_numbers<[1], [0], [0], [1], [0, 0, 1, 1], [], []>} : vector<16x32xf32>, vector<32x96xf32>, vector<16x96xf32> -> vector<16x96xf32>
    %c0_4 = arith.constant 0 : index
    %c0_5 = arith.constant 0 : index
    %c0_6 = arith.constant 0 : index
    %4 = vector.load %arg2[%c0_4, %c0_5, %c0_6] : memref<2x1x96xf32, #tpu.memory_space<vmem>>, vector<1x1x96xf32>
    %5 = vector.shape_cast %4 : vector<1x1x96xf32> to vector<1x96xf32>
    %6 = vector.broadcast %5 : vector<1x96xf32> to vector<16x96xf32>
    %7 = arith.addf %3, %6 : vector<16x96xf32>
    %8 = vector.extract_strided_slice %7 {offsets = [0, 0], sizes = [16, 32], strides = [1, 1]} : vector<16x96xf32> to vector<16x32xf32>
    %9 = vector.shape_cast %8 : vector<16x32xf32> to vector<2x8x4x8xf32>
    %10 = tpu.transpose %9, [0, 2, 1, 3] : vector<2x8x4x8xf32> -> vector<2x4x8x8xf32>
    %11 = vector.shape_cast %10 : vector<2x4x8x8xf32> to vector<8x8x8xf32>
    %12 = vector.extract_strided_slice %7 {offsets = [0, 32], sizes = [16, 32], strides = [1, 1]} : vector<16x96xf32> to vector<16x32xf32>
    %13 = vector.shape_cast %12 : vector<16x32xf32> to vector<2x8x4x8xf32>
    %14 = tpu.transpose %13, [0, 2, 1, 3] : vector<2x8x4x8xf32> -> vector<2x4x8x8xf32>
    %15 = vector.shape_cast %14 : vector<2x4x8x8xf32> to vector<8x8x8xf32>
    %16 = vector.extract_strided_slice %7 {offsets = [0, 64], sizes = [16, 32], strides = [1, 1]} : vector<16x96xf32> to vector<16x32xf32>
    %17 = vector.shape_cast %16 : vector<16x32xf32> to vector<2x8x4x8xf32>
    %18 = tpu.transpose %17, [0, 2, 1, 3] : vector<2x8x4x8xf32> -> vector<2x4x8x8xf32>
    %19 = vector.shape_cast %18 : vector<2x4x8x8xf32> to vector<8x8x8xf32>
    "tpu.trace_start"() <{level = 10 : i32, message = "gqd,gkd->gqk"}> : () -> ()
    %cst_7 = arith.constant dense<0.000000e+00> : vector<8x8x8xf32>
    %20 = tpu.matmul %11, %15, %cst_7 {dimension_numbers = #tpu.dot_dimension_numbers<[2], [2], [1], [1], [0, 0, 0, 1, 1, 1], [0], [0]>} : vector<8x8x8xf32>, vector<8x8x8xf32>, vector<8x8x8xf32> -> vector<8x8x8xf32>
    "tpu.trace_stop"() : () -> ()
    %cst_8 = arith.constant dense<0xFF800000> : vector<8x8xf32>
    %21 = vector.multi_reduction <maximumf>, %20, %cst_8 [2] : vector<8x8x8xf32> to vector<8x8xf32>
    %22 = vector.shape_cast %21 : vector<8x8xf32> to vector<8x8x1xf32>
    %23 = vector.broadcast %22 : vector<8x8x1xf32> to vector<8x8x8xf32>
    %24 = arith.subf %20, %23 : vector<8x8x8xf32>
    %25 = math.exp %24 : vector<8x8x8xf32>
    %cst_9 = arith.constant dense<0.000000e+00> : vector<8x8xf32>
    %26 = vector.multi_reduction <add>, %25, %cst_9 [2] : vector<8x8x8xf32> to vector<8x8xf32>
    %27 = vector.shape_cast %26 : vector<8x8xf32> to vector<8x8x1xf32>
    %28 = vector.broadcast %27 : vector<8x8x1xf32> to vector<8x8x8xf32>
    %29 = arith.divf %25, %28 : vector<8x8x8xf32>
    "tpu.trace_start"() <{level = 10 : i32, message = "gqk,gkd->gqd"}> : () -> ()
    %cst_10 = arith.constant dense<0.000000e+00> : vector<8x8x8xf32>
    %30 = tpu.matmul %29, %19, %cst_10 {dimension_numbers = #tpu.dot_dimension_numbers<[2], [1], [1], [2], [0, 0, 0, 1, 1, 2], [0], [0]>} : vector<8x8x8xf32>, vector<8x8x8xf32>, vector<8x8x8xf32> -> vector<8x8x8xf32>
    "tpu.trace_stop"() : () -> ()
    %31 = vector.shape_cast %30 : vector<8x8x8xf32> to vector<2x4x8x8xf32>
    %32 = tpu.transpose %31, [0, 2, 1, 3] : vector<2x4x8x8xf32> -> vector<2x8x4x8xf32>
    %33 = vector.shape_cast %32 : vector<2x8x4x8xf32> to vector<16x32xf32>
    %c0_11 = arith.constant 0 : index
    %c0_12 = arith.constant 0 : index
    %c0_13 = arith.constant 0 : index
    %34 = vector.load %arg3[%c0_11, %c0_12, %c0_13] : memref<2x32x32xf32, #tpu.memory_space<vmem>>, vector<1x32x32xf32>
    %35 = vector.shape_cast %34 : vector<1x32x32xf32> to vector<32x32xf32>
    %cst_14 = arith.constant dense<0.000000e+00> : vector<16x32xf32>
    %36 = tpu.matmul %33, %35, %cst_14 {dimension_numbers = #tpu.dot_dimension_numbers<[1], [0], [0], [1], [0, 0, 1, 1], [], []>} : vector<16x32xf32>, vector<32x32xf32>, vector<16x32xf32> -> vector<16x32xf32>
    %c0_15 = arith.constant 0 : index
    %c0_16 = arith.constant 0 : index
    %c0_17 = arith.constant 0 : index
    %37 = vector.load %arg4[%c0_15, %c0_16, %c0_17] : memref<2x1x32xf32, #tpu.memory_space<vmem>>, vector<1x1x32xf32>
    %38 = vector.shape_cast %37 : vector<1x1x32xf32> to vector<1x32xf32>
    %39 = vector.broadcast %38 : vector<1x32xf32> to vector<16x32xf32>
    %40 = arith.addf %36, %39 : vector<16x32xf32>
    %41 = arith.addf %0, %40 : vector<16x32xf32>
    %c0_18 = arith.constant 0 : index
    %c0_19 = arith.constant 0 : index
    %c0_20 = arith.constant 0 : index
    %42 = vector.load %arg5[%c0_18, %c0_19, %c0_20] : memref<2x1x32xf32, #tpu.memory_space<vmem>>, vector<1x1x32xf32>
    %43 = vector.shape_cast %42 : vector<1x1x32xf32> to vector<1x32xf32>
    %c0_21 = arith.constant 0 : index
    %c0_22 = arith.constant 0 : index
    %c0_23 = arith.constant 0 : index
    %44 = vector.load %arg6[%c0_21, %c0_22, %c0_23] : memref<2x1x32xf32, #tpu.memory_space<vmem>>, vector<1x1x32xf32>
    %45 = vector.shape_cast %44 : vector<1x1x32xf32> to vector<1x32xf32>
    %cst_24 = arith.constant dense<0.000000e+00> : vector<16xf32>
    %46 = vector.multi_reduction <add>, %41, %cst_24 [1] : vector<16x32xf32> to vector<16xf32>
    %47 = vector.shape_cast %46 : vector<16xf32> to vector<16x1xf32>
    %cst_25 = arith.constant 3.200000e+01 : f32
    %48 = vector.broadcast %cst_25 : f32 to vector<16x1xf32>
    %49 = arith.divf %47, %48 : vector<16x1xf32>
    %50 = vector.broadcast %49 : vector<16x1xf32> to vector<16x32xf32>
    %51 = arith.subf %41, %50 : vector<16x32xf32>
    %52 = arith.mulf %51, %51 : vector<16x32xf32>
    %cst_26 = arith.constant dense<0.000000e+00> : vector<16xf32>
    %53 = vector.multi_reduction <add>, %52, %cst_26 [1] : vector<16x32xf32> to vector<16xf32>
    %54 = vector.shape_cast %53 : vector<16xf32> to vector<16x1xf32>
    %cst_27 = arith.constant 3.200000e+01 : f32
    %55 = vector.broadcast %cst_27 : f32 to vector<16x1xf32>
    %56 = arith.divf %54, %55 : vector<16x1xf32>
    %cst_28 = arith.constant 9.99999974E-6 : f32
    %57 = vector.broadcast %cst_28 : f32 to vector<16x1xf32>
    %58 = arith.addf %56, %57 : vector<16x1xf32>
    %59 = math.rsqrt %58 : vector<16x1xf32>
    %60 = vector.broadcast %59 : vector<16x1xf32> to vector<16x32xf32>
    %61 = arith.mulf %51, %60 : vector<16x32xf32>
    %62 = vector.broadcast %43 : vector<1x32xf32> to vector<16x32xf32>
    %63 = arith.mulf %61, %62 : vector<16x32xf32>
    %64 = vector.broadcast %45 : vector<1x32xf32> to vector<16x32xf32>
    %65 = arith.addf %63, %64 : vector<16x32xf32>
    %c0_29 = arith.constant 0 : index
    %c0_30 = arith.constant 0 : index
    %c0_31 = arith.constant 0 : index
    %66 = vector.load %arg7[%c0_29, %c0_30, %c0_31] : memref<2x32x64xf32, #tpu.memory_space<vmem>>, vector<1x32x64xf32>
    %67 = vector.shape_cast %66 : vector<1x32x64xf32> to vector<32x64xf32>
    %cst_32 = arith.constant dense<0.000000e+00> : vector<16x64xf32>
    %68 = tpu.matmul %65, %67, %cst_32 {dimension_numbers = #tpu.dot_dimension_numbers<[1], [0], [0], [1], [0, 0, 1, 1], [], []>} : vector<16x32xf32>, vector<32x64xf32>, vector<16x64xf32> -> vector<16x64xf32>
    %c0_33 = arith.constant 0 : index
    %c0_34 = arith.constant 0 : index
    %c0_35 = arith.constant 0 : index
    %69 = vector.load %arg8[%c0_33, %c0_34, %c0_35] : memref<2x1x64xf32, #tpu.memory_space<vmem>>, vector<1x1x64xf32>
    %70 = vector.shape_cast %69 : vector<1x1x64xf32> to vector<1x64xf32>
    %71 = vector.broadcast %70 : vector<1x64xf32> to vector<16x64xf32>
    %72 = arith.addf %68, %71 : vector<16x64xf32>
    %cst_36 = arith.constant 0.000000e+00 : f32
    %73 = vector.broadcast %cst_36 : f32 to vector<16x64xf32>
    %74 = arith.maximumf %72, %73 : vector<16x64xf32>
    %c0_37 = arith.constant 0 : index
    %c0_38 = arith.constant 0 : index
    %c0_39 = arith.constant 0 : index
    %75 = vector.load %arg9[%c0_37, %c0_38, %c0_39] : memref<2x64x32xf32, #tpu.memory_space<vmem>>, vector<1x64x32xf32>
    %76 = vector.shape_cast %75 : vector<1x64x32xf32> to vector<64x32xf32>
    %cst_40 = arith.constant dense<0.000000e+00> : vector<16x32xf32>
    %77 = tpu.matmul %74, %76, %cst_40 {dimension_numbers = #tpu.dot_dimension_numbers<[1], [0], [0], [1], [0, 0, 1, 1], [], []>} : vector<16x64xf32>, vector<64x32xf32>, vector<16x32xf32> -> vector<16x32xf32>
    %c0_41 = arith.constant 0 : index
    %c0_42 = arith.constant 0 : index
    %c0_43 = arith.constant 0 : index
    %78 = vector.load %arg10[%c0_41, %c0_42, %c0_43] : memref<2x1x32xf32, #tpu.memory_space<vmem>>, vector<1x1x32xf32>
    %79 = vector.shape_cast %78 : vector<1x1x32xf32> to vector<1x32xf32>
    %80 = vector.broadcast %79 : vector<1x32xf32> to vector<16x32xf32>
    %81 = arith.addf %77, %80 : vector<16x32xf32>
    %82 = arith.addf %65, %81 : vector<16x32xf32>
    %c0_44 = arith.constant 0 : index
    %c0_45 = arith.constant 0 : index
    %c0_46 = arith.constant 0 : index
    %83 = vector.load %arg11[%c0_44, %c0_45, %c0_46] : memref<2x1x32xf32, #tpu.memory_space<vmem>>, vector<1x1x32xf32>
    %84 = vector.shape_cast %83 : vector<1x1x32xf32> to vector<1x32xf32>
    %c0_47 = arith.constant 0 : index
    %c0_48 = arith.constant 0 : index
    %c0_49 = arith.constant 0 : index
    %85 = vector.load %arg12[%c0_47, %c0_48, %c0_49] : memref<2x1x32xf32, #tpu.memory_space<vmem>>, vector<1x1x32xf32>
    %86 = vector.shape_cast %85 : vector<1x1x32xf32> to vector<1x32xf32>
    %cst_50 = arith.constant dense<0.000000e+00> : vector<16xf32>
    %87 = vector.multi_reduction <add>, %82, %cst_50 [1] : vector<16x32xf32> to vector<16xf32>
    %88 = vector.shape_cast %87 : vector<16xf32> to vector<16x1xf32>
    %cst_51 = arith.constant 3.200000e+01 : f32
    %89 = vector.broadcast %cst_51 : f32 to vector<16x1xf32>
    %90 = arith.divf %88, %89 : vector<16x1xf32>
    %91 = vector.broadcast %90 : vector<16x1xf32> to vector<16x32xf32>
    %92 = arith.subf %82, %91 : vector<16x32xf32>
    %93 = arith.mulf %92, %92 : vector<16x32xf32>
    %cst_52 = arith.constant dense<0.000000e+00> : vector<16xf32>
    %94 = vector.multi_reduction <add>, %93, %cst_52 [1] : vector<16x32xf32> to vector<16xf32>
    %95 = vector.shape_cast %94 : vector<16xf32> to vector<16x1xf32>
    %cst_53 = arith.constant 3.200000e+01 : f32
    %96 = vector.broadcast %cst_53 : f32 to vector<16x1xf32>
    %97 = arith.divf %95, %96 : vector<16x1xf32>
    %cst_54 = arith.constant 9.99999974E-6 : f32
    %98 = vector.broadcast %cst_54 : f32 to vector<16x1xf32>
    %99 = arith.addf %97, %98 : vector<16x1xf32>
    %100 = math.rsqrt %99 : vector<16x1xf32>
    %101 = vector.broadcast %100 : vector<16x1xf32> to vector<16x32xf32>
    %102 = arith.mulf %92, %101 : vector<16x32xf32>
    %103 = vector.broadcast %84 : vector<1x32xf32> to vector<16x32xf32>
    %104 = arith.mulf %102, %103 : vector<16x32xf32>
    %105 = vector.broadcast %86 : vector<1x32xf32> to vector<16x32xf32>
    %106 = arith.addf %104, %105 : vector<16x32xf32>
    %c1 = arith.constant 1 : index
    %c0_55 = arith.constant 0 : index
    %c0_56 = arith.constant 0 : index
    %107 = vector.load %arg1[%c1, %c0_55, %c0_56] : memref<2x32x96xf32, #tpu.memory_space<vmem>>, vector<1x32x96xf32>
    %108 = vector.shape_cast %107 : vector<1x32x96xf32> to vector<32x96xf32>
    %cst_57 = arith.constant dense<0.000000e+00> : vector<16x96xf32>
    %109 = tpu.matmul %106, %108, %cst_57 {dimension_numbers = #tpu.dot_dimension_numbers<[1], [0], [0], [1], [0, 0, 1, 1], [], []>} : vector<16x32xf32>, vector<32x96xf32>, vector<16x96xf32> -> vector<16x96xf32>
    %c1_58 = arith.constant 1 : index
    %c0_59 = arith.constant 0 : index
    %c0_60 = arith.constant 0 : index
    %110 = vector.load %arg2[%c1_58, %c0_59, %c0_60] : memref<2x1x96xf32, #tpu.memory_space<vmem>>, vector<1x1x96xf32>
    %111 = vector.shape_cast %110 : vector<1x1x96xf32> to vector<1x96xf32>
    %112 = vector.broadcast %111 : vector<1x96xf32> to vector<16x96xf32>
    %113 = arith.addf %109, %112 : vector<16x96xf32>
    %114 = vector.extract_strided_slice %113 {offsets = [0, 0], sizes = [16, 32], strides = [1, 1]} : vector<16x96xf32> to vector<16x32xf32>
    %115 = vector.shape_cast %114 : vector<16x32xf32> to vector<2x8x4x8xf32>
    %116 = tpu.transpose %115, [0, 2, 1, 3] : vector<2x8x4x8xf32> -> vector<2x4x8x8xf32>
    %117 = vector.shape_cast %116 : vector<2x4x8x8xf32> to vector<8x8x8xf32>
    %118 = vector.extract_strided_slice %113 {offsets = [0, 32], sizes = [16, 32], strides = [1, 1]} : vector<16x96xf32> to vector<16x32xf32>
    %119 = vector.shape_cast %118 : vector<16x32xf32> to vector<2x8x4x8xf32>
    %120 = tpu.transpose %119, [0, 2, 1, 3] : vector<2x8x4x8xf32> -> vector<2x4x8x8xf32>
    %121 = vector.shape_cast %120 : vector<2x4x8x8xf32> to vector<8x8x8xf32>
    %122 = vector.extract_strided_slice %113 {offsets = [0, 64], sizes = [16, 32], strides = [1, 1]} : vector<16x96xf32> to vector<16x32xf32>
    %123 = vector.shape_cast %122 : vector<16x32xf32> to vector<2x8x4x8xf32>
    %124 = tpu.transpose %123, [0, 2, 1, 3] : vector<2x8x4x8xf32> -> vector<2x4x8x8xf32>
    %125 = vector.shape_cast %124 : vector<2x4x8x8xf32> to vector<8x8x8xf32>
    "tpu.trace_start"() <{level = 10 : i32, message = "gqd,gkd->gqk"}> : () -> ()
    %cst_61 = arith.constant dense<0.000000e+00> : vector<8x8x8xf32>
    %126 = tpu.matmul %117, %121, %cst_61 {dimension_numbers = #tpu.dot_dimension_numbers<[2], [2], [1], [1], [0, 0, 0, 1, 1, 1], [0], [0]>} : vector<8x8x8xf32>, vector<8x8x8xf32>, vector<8x8x8xf32> -> vector<8x8x8xf32>
    "tpu.trace_stop"() : () -> ()
    %cst_62 = arith.constant dense<0xFF800000> : vector<8x8xf32>
    %127 = vector.multi_reduction <maximumf>, %126, %cst_62 [2] : vector<8x8x8xf32> to vector<8x8xf32>
    %128 = vector.shape_cast %127 : vector<8x8xf32> to vector<8x8x1xf32>
    %129 = vector.broadcast %128 : vector<8x8x1xf32> to vector<8x8x8xf32>
    %130 = arith.subf %126, %129 : vector<8x8x8xf32>
    %131 = math.exp %130 : vector<8x8x8xf32>
    %cst_63 = arith.constant dense<0.000000e+00> : vector<8x8xf32>
    %132 = vector.multi_reduction <add>, %131, %cst_63 [2] : vector<8x8x8xf32> to vector<8x8xf32>
    %133 = vector.shape_cast %132 : vector<8x8xf32> to vector<8x8x1xf32>
    %134 = vector.broadcast %133 : vector<8x8x1xf32> to vector<8x8x8xf32>
    %135 = arith.divf %131, %134 : vector<8x8x8xf32>
    "tpu.trace_start"() <{level = 10 : i32, message = "gqk,gkd->gqd"}> : () -> ()
    %cst_64 = arith.constant dense<0.000000e+00> : vector<8x8x8xf32>
    %136 = tpu.matmul %135, %125, %cst_64 {dimension_numbers = #tpu.dot_dimension_numbers<[2], [1], [1], [2], [0, 0, 0, 1, 1, 2], [0], [0]>} : vector<8x8x8xf32>, vector<8x8x8xf32>, vector<8x8x8xf32> -> vector<8x8x8xf32>
    "tpu.trace_stop"() : () -> ()
    %137 = vector.shape_cast %136 : vector<8x8x8xf32> to vector<2x4x8x8xf32>
    %138 = tpu.transpose %137, [0, 2, 1, 3] : vector<2x4x8x8xf32> -> vector<2x8x4x8xf32>
    %139 = vector.shape_cast %138 : vector<2x8x4x8xf32> to vector<16x32xf32>
    %c1_65 = arith.constant 1 : index
    %c0_66 = arith.constant 0 : index
    %c0_67 = arith.constant 0 : index
    %140 = vector.load %arg3[%c1_65, %c0_66, %c0_67] : memref<2x32x32xf32, #tpu.memory_space<vmem>>, vector<1x32x32xf32>
    %141 = vector.shape_cast %140 : vector<1x32x32xf32> to vector<32x32xf32>
    %cst_68 = arith.constant dense<0.000000e+00> : vector<16x32xf32>
    %142 = tpu.matmul %139, %141, %cst_68 {dimension_numbers = #tpu.dot_dimension_numbers<[1], [0], [0], [1], [0, 0, 1, 1], [], []>} : vector<16x32xf32>, vector<32x32xf32>, vector<16x32xf32> -> vector<16x32xf32>
    %c1_69 = arith.constant 1 : index
    %c0_70 = arith.constant 0 : index
    %c0_71 = arith.constant 0 : index
    %143 = vector.load %arg4[%c1_69, %c0_70, %c0_71] : memref<2x1x32xf32, #tpu.memory_space<vmem>>, vector<1x1x32xf32>
    %144 = vector.shape_cast %143 : vector<1x1x32xf32> to vector<1x32xf32>
    %145 = vector.broadcast %144 : vector<1x32xf32> to vector<16x32xf32>
    %146 = arith.addf %142, %145 : vector<16x32xf32>
    %147 = arith.addf %106, %146 : vector<16x32xf32>
    %c1_72 = arith.constant 1 : index
    %c0_73 = arith.constant 0 : index
    %c0_74 = arith.constant 0 : index
    %148 = vector.load %arg5[%c1_72, %c0_73, %c0_74] : memref<2x1x32xf32, #tpu.memory_space<vmem>>, vector<1x1x32xf32>
    %149 = vector.shape_cast %148 : vector<1x1x32xf32> to vector<1x32xf32>
    %c1_75 = arith.constant 1 : index
    %c0_76 = arith.constant 0 : index
    %c0_77 = arith.constant 0 : index
    %150 = vector.load %arg6[%c1_75, %c0_76, %c0_77] : memref<2x1x32xf32, #tpu.memory_space<vmem>>, vector<1x1x32xf32>
    %151 = vector.shape_cast %150 : vector<1x1x32xf32> to vector<1x32xf32>
    %cst_78 = arith.constant dense<0.000000e+00> : vector<16xf32>
    %152 = vector.multi_reduction <add>, %147, %cst_78 [1] : vector<16x32xf32> to vector<16xf32>
    %153 = vector.shape_cast %152 : vector<16xf32> to vector<16x1xf32>
    %cst_79 = arith.constant 3.200000e+01 : f32
    %154 = vector.broadcast %cst_79 : f32 to vector<16x1xf32>
    %155 = arith.divf %153, %154 : vector<16x1xf32>
    %156 = vector.broadcast %155 : vector<16x1xf32> to vector<16x32xf32>
    %157 = arith.subf %147, %156 : vector<16x32xf32>
    %158 = arith.mulf %157, %157 : vector<16x32xf32>
    %cst_80 = arith.constant dense<0.000000e+00> : vector<16xf32>
    %159 = vector.multi_reduction <add>, %158, %cst_80 [1] : vector<16x32xf32> to vector<16xf32>
    %160 = vector.shape_cast %159 : vector<16xf32> to vector<16x1xf32>
    %cst_81 = arith.constant 3.200000e+01 : f32
    %161 = vector.broadcast %cst_81 : f32 to vector<16x1xf32>
    %162 = arith.divf %160, %161 : vector<16x1xf32>
    %cst_82 = arith.constant 9.99999974E-6 : f32
    %163 = vector.broadcast %cst_82 : f32 to vector<16x1xf32>
    %164 = arith.addf %162, %163 : vector<16x1xf32>
    %165 = math.rsqrt %164 : vector<16x1xf32>
    %166 = vector.broadcast %165 : vector<16x1xf32> to vector<16x32xf32>
    %167 = arith.mulf %157, %166 : vector<16x32xf32>
    %168 = vector.broadcast %149 : vector<1x32xf32> to vector<16x32xf32>
    %169 = arith.mulf %167, %168 : vector<16x32xf32>
    %170 = vector.broadcast %151 : vector<1x32xf32> to vector<16x32xf32>
    %171 = arith.addf %169, %170 : vector<16x32xf32>
    %c1_83 = arith.constant 1 : index
    %c0_84 = arith.constant 0 : index
    %c0_85 = arith.constant 0 : index
    %172 = vector.load %arg7[%c1_83, %c0_84, %c0_85] : memref<2x32x64xf32, #tpu.memory_space<vmem>>, vector<1x32x64xf32>
    %173 = vector.shape_cast %172 : vector<1x32x64xf32> to vector<32x64xf32>
    %cst_86 = arith.constant dense<0.000000e+00> : vector<16x64xf32>
    %174 = tpu.matmul %171, %173, %cst_86 {dimension_numbers = #tpu.dot_dimension_numbers<[1], [0], [0], [1], [0, 0, 1, 1], [], []>} : vector<16x32xf32>, vector<32x64xf32>, vector<16x64xf32> -> vector<16x64xf32>
    %c1_87 = arith.constant 1 : index
    %c0_88 = arith.constant 0 : index
    %c0_89 = arith.constant 0 : index
    %175 = vector.load %arg8[%c1_87, %c0_88, %c0_89] : memref<2x1x64xf32, #tpu.memory_space<vmem>>, vector<1x1x64xf32>
    %176 = vector.shape_cast %175 : vector<1x1x64xf32> to vector<1x64xf32>
    %177 = vector.broadcast %176 : vector<1x64xf32> to vector<16x64xf32>
    %178 = arith.addf %174, %177 : vector<16x64xf32>
    %cst_90 = arith.constant 0.000000e+00 : f32
    %179 = vector.broadcast %cst_90 : f32 to vector<16x64xf32>
    %180 = arith.maximumf %178, %179 : vector<16x64xf32>
    %c1_91 = arith.constant 1 : index
    %c0_92 = arith.constant 0 : index
    %c0_93 = arith.constant 0 : index
    %181 = vector.load %arg9[%c1_91, %c0_92, %c0_93] : memref<2x64x32xf32, #tpu.memory_space<vmem>>, vector<1x64x32xf32>
    %182 = vector.shape_cast %181 : vector<1x64x32xf32> to vector<64x32xf32>
    %cst_94 = arith.constant dense<0.000000e+00> : vector<16x32xf32>
    %183 = tpu.matmul %180, %182, %cst_94 {dimension_numbers = #tpu.dot_dimension_numbers<[1], [0], [0], [1], [0, 0, 1, 1], [], []>} : vector<16x64xf32>, vector<64x32xf32>, vector<16x32xf32> -> vector<16x32xf32>
    %c1_95 = arith.constant 1 : index
    %c0_96 = arith.constant 0 : index
    %c0_97 = arith.constant 0 : index
    %184 = vector.load %arg10[%c1_95, %c0_96, %c0_97] : memref<2x1x32xf32, #tpu.memory_space<vmem>>, vector<1x1x32xf32>
    %185 = vector.shape_cast %184 : vector<1x1x32xf32> to vector<1x32xf32>
    %186 = vector.broadcast %185 : vector<1x32xf32> to vector<16x32xf32>
    %187 = arith.addf %183, %186 : vector<16x32xf32>
    %188 = arith.addf %171, %187 : vector<16x32xf32>
    %c1_98 = arith.constant 1 : index
    %c0_99 = arith.constant 0 : index
    %c0_100 = arith.constant 0 : index
    %189 = vector.load %arg11[%c1_98, %c0_99, %c0_100] : memref<2x1x32xf32, #tpu.memory_space<vmem>>, vector<1x1x32xf32>
    %190 = vector.shape_cast %189 : vector<1x1x32xf32> to vector<1x32xf32>
    %c1_101 = arith.constant 1 : index
    %c0_102 = arith.constant 0 : index
    %c0_103 = arith.constant 0 : index
    %191 = vector.load %arg12[%c1_101, %c0_102, %c0_103] : memref<2x1x32xf32, #tpu.memory_space<vmem>>, vector<1x1x32xf32>
    %192 = vector.shape_cast %191 : vector<1x1x32xf32> to vector<1x32xf32>
    %cst_104 = arith.constant dense<0.000000e+00> : vector<16xf32>
    %193 = vector.multi_reduction <add>, %188, %cst_104 [1] : vector<16x32xf32> to vector<16xf32>
    %194 = vector.shape_cast %193 : vector<16xf32> to vector<16x1xf32>
    %cst_105 = arith.constant 3.200000e+01 : f32
    %195 = vector.broadcast %cst_105 : f32 to vector<16x1xf32>
    %196 = arith.divf %194, %195 : vector<16x1xf32>
    %197 = vector.broadcast %196 : vector<16x1xf32> to vector<16x32xf32>
    %198 = arith.subf %188, %197 : vector<16x32xf32>
    %199 = arith.mulf %198, %198 : vector<16x32xf32>
    %cst_106 = arith.constant dense<0.000000e+00> : vector<16xf32>
    %200 = vector.multi_reduction <add>, %199, %cst_106 [1] : vector<16x32xf32> to vector<16xf32>
    %201 = vector.shape_cast %200 : vector<16xf32> to vector<16x1xf32>
    %cst_107 = arith.constant 3.200000e+01 : f32
    %202 = vector.broadcast %cst_107 : f32 to vector<16x1xf32>
    %203 = arith.divf %201, %202 : vector<16x1xf32>
    %cst_108 = arith.constant 9.99999974E-6 : f32
    %204 = vector.broadcast %cst_108 : f32 to vector<16x1xf32>
    %205 = arith.addf %203, %204 : vector<16x1xf32>
    %206 = math.rsqrt %205 : vector<16x1xf32>
    %207 = vector.broadcast %206 : vector<16x1xf32> to vector<16x32xf32>
    %208 = arith.mulf %198, %207 : vector<16x32xf32>
    %209 = vector.broadcast %190 : vector<1x32xf32> to vector<16x32xf32>
    %210 = arith.mulf %208, %209 : vector<16x32xf32>
    %211 = vector.broadcast %192 : vector<1x32xf32> to vector<16x32xf32>
    %212 = arith.addf %210, %211 : vector<16x32xf32>
    %c0_109 = arith.constant 0 : index
    %c0_110 = arith.constant 0 : index
    %213 = vector.load %arg13[%c0_109, %c0_110] : memref<16x32xf32, #tpu.memory_space<vmem>>, vector<16x32xf32>
    tpu.vector_store %arg13[%c0_109, %c0_110], %212 {strides = array<i32>} : memref<16x32xf32, #tpu.memory_space<vmem>>, vector<16x32xf32>,
    return
  }
}

</mosaic_0001>

<llo_original>
// kernel: tpu_custom_call.1
$region0: #{tpu_custom_call.1}
  #allocation0 [shape = 'u32[]', space=smem, size = 0x4, offset = 0x4, fixed_abs, tag = 'smem constant byte address 0x4 - core index']
  #allocation1 [shape = 'u32[144,128]{1,0:T(1,128)}', space=vmem, size = 0x12000, scoped, tag = 'internal scratch']
  %s0 = inlined_call_operand.hbm [shape: f32[16,32], index: 0, kind: input, shape index: {}]
  %s1 = inlined_call_operand.vmem [shape: f32[2,32,96], index: 1, kind: input, shape index: {}]
  %s2 = inlined_call_operand.vmem [shape: f32[2,1,96], index: 2, kind: input, shape index: {}]
  %s3 = inlined_call_operand.vmem [shape: f32[2,32,32], index: 3, kind: input, shape index: {}]
  %s4 = inlined_call_operand.vmem [shape: f32[2,1,32], index: 4, kind: input, shape index: {}]
  %s5 = inlined_call_operand.vmem [shape: f32[2,1,32], index: 5, kind: input, shape index: {}]
  %s6 = inlined_call_operand.vmem [shape: f32[2,1,32], index: 6, kind: input, shape index: {}]
  %s7 = inlined_call_operand.vmem [shape: f32[2,32,64], index: 7, kind: input, shape index: {}]
  %s8 = inlined_call_operand.vmem [shape: f32[2,1,64], index: 8, kind: input, shape index: {}]
  %s9 = inlined_call_operand.vmem [shape: f32[2,64,32], index: 9, kind: input, shape index: {}]
  %s10 = inlined_call_operand.vmem [shape: f32[2,1,32], index: 10, kind: input, shape index: {}]
  %s11 = inlined_call_operand.vmem [shape: f32[2,1,32], index: 11, kind: input, shape index: {}]
  %s12 = inlined_call_operand.vmem [shape: f32[2,1,32], index: 12, kind: input, shape index: {}]
  %s13 = inlined_call_operand.hbm [shape: f32[16,32], index: 13, kind: output, shape index: {}]
  %s14 = sld [smem:[#allocation0]]
  $region66: #{tpu_custom_call.1} parent=0
    _
  %s16 = ssub.s32 1, %s14
  %s17 = scalar_select 0, %s16, %s14
  $region1: #{tpu_custom_call.1} parent=0
    #allocation2 [shape = 'u8[8192]{0}', space=vmem, size = 0x2000, scoped, tag = 'input window, operand 0, single buffered']
    #allocation3 [shape = 's32[1]{0}', space=sflag, size = 0x4, scoped, tag = 'scoped memory for tpu_custom_call.1']
    #allocation4 [shape = 's32[1]{0}', space=sflag, size = 0x4, scoped, tag = 'scoped memory for tpu_custom_call.1']
    #allocation5 [shape = 'u8[8192]{0}', space=vmem, size = 0x2000, scoped, tag = 'output window, operand 0, single buffered']
    %18 = vsyncpa [#allocation3], 0
    %19 = vsyncpa [#allocation4], 0
    // Predicated region
    $region2: #{tpu_custom_call.1} parent=1 // pred_check
      _
    $region3: #{tpu_custom_call.1} parent=1 // pred_check_branch
      %21 = sbr.rel (0) target = $region5
    $region4: #{tpu_custom_call.1} parent=1 // pred_region
      %s23 = ssub.s32 256, 256
      %24 = vsyncadd [#allocation3], %s23
      %s25 = sshll.u32 [#allocation2], 4
      %s26 = int_to_ptr.vmem [resolvable:$true] %s25
      %31 = dma.hbm_to_vmem [thread:$0]  %s0, 256, %s26, [#allocation3], 128, 128, 8
    $region5: #{tpu_custom_call.1} parent=1 // pred_fallthru
      _
    // Predicated region
    $region6: #{tpu_custom_call.1} parent=1 // pred_check
      _
    $region7: #{tpu_custom_call.1} parent=1 // pred_check_branch
      %33 = sbr.rel (0) target = $region9
    $region8: #{tpu_custom_call.1} parent=1 // pred_region
      _
    $region9: #{tpu_custom_call.1} parent=1 // pred_fallthru
      _
    // Predicated region
    $region10: #{tpu_custom_call.1} parent=1 // pred_check
      _
    $region11: #{tpu_custom_call.1} parent=1 // pred_check_branch
      %35 = sbr.rel (0) target = $region13
    $region12: #{tpu_custom_call.1} parent=1 // pred_region
      _
    $region13: #{tpu_custom_call.1} parent=1 // pred_fallthru
      _
    // Predicated region
    $region14: #{tpu_custom_call.1} parent=1 // pred_check
      _
    $region15: #{tpu_custom_call.1} parent=1 // pred_check_branch
      %37 = sbr.rel (0) target = $region17
    $region16: #{tpu_custom_call.1} parent=1 // pred_region
      _
    $region17: #{tpu_custom_call.1} parent=1 // pred_fallthru
      _
    // Predicated region
    $region18: #{tpu_custom_call.1} parent=1 // pred_check
      _
    $region19: #{tpu_custom_call.1} parent=1 // pred_check_branch
      %39 = sbr.rel (0) target = $region21
    $region20: #{tpu_custom_call.1} parent=1 // pred_region
      _
    $region21: #{tpu_custom_call.1} parent=1 // pred_fallthru
      _
    // Predicated region
    $region22: #{tpu_custom_call.1} parent=1 // pred_check
      _
    $region23: #{tpu_custom_call.1} parent=1 // pred_check_branch
      %41 = sbr.rel (0) target = $region25
    $region24: #{tpu_custom_call.1} parent=1 // pred_region
      _
    $region25: #{tpu_custom_call.1} parent=1 // pred_fallthru
      _
    // Predicated region
    $region26: #{tpu_custom_call.1} parent=1 // pred_check
      _
    $region27: #{tpu_custom_call.1} parent=1 // pred_check_branch
      %43 = sbr.rel (0) target = $region29
    $region28: #{tpu_custom_call.1} parent=1 // pred_region
      _
    $region29: #{tpu_custom_call.1} parent=1 // pred_fallthru
      _
    // Predicated region
    $region30: #{tpu_custom_call.1} parent=1 // pred_check
      _
    $region31: #{tpu_custom_call.1} parent=1 // pred_check_branch
      %45 = sbr.rel (0) target = $region33
    $region32: #{tpu_custom_call.1} parent=1 // pred_region
      _
    $region33: #{tpu_custom_call.1} parent=1 // pred_fallthru
      _
    // Predicated region
    $region34: #{tpu_custom_call.1} parent=1 // pred_check
      _
    $region35: #{tpu_custom_call.1} parent=1 // pred_check_branch
      %47 = sbr.rel (0) target = $region37
    $region36: #{tpu_custom_call.1} parent=1 // pred_region
      _
    $region37: #{tpu_custom_call.1} parent=1 // pred_fallthru
      _
    // Predicated region
    $region38: #{tpu_custom_call.1} parent=1 // pred_check
      _
    $region39: #{tpu_custom_call.1} parent=1 // pred_check_branch
      %49 = sbr.rel (0) target = $region41
    $region40: #{tpu_custom_call.1} parent=1 // pred_region
      _
    $region41: #{tpu_custom_call.1} parent=1 // pred_fallthru
      _
    // Predicated region
    $region42: #{tpu_custom_call.1} parent=1 // pred_check
      _
    $region43: #{tpu_custom_call.1} parent=1 // pred_check_branch
      %51 = sbr.rel (0) target = $region45
    $region44: #{tpu_custom_call.1} parent=1 // pred_region
      _
    $region45: #{tpu_custom_call.1} parent=1 // pred_fallthru
      _
    // Predicated region
    $region46: #{tpu_custom_call.1} parent=1 // pred_check
      _
    $region47: #{tpu_custom_call.1} parent=1 // pred_check_branch
      %53 = sbr.rel (0) target = $region49
    $region48: #{tpu_custom_call.1} parent=1 // pred_region
      _
    $region49: #{tpu_custom_call.1} parent=1 // pred_fallthru
      _
    // Predicated region
    $region50: #{tpu_custom_call.1} parent=1 // pred_check
      _
    $region51: #{tpu_custom_call.1} parent=1 // pred_check_branch
      %55 = sbr.rel (0) target = $region53
    $region52: #{tpu_custom_call.1} parent=1 // pred_region
      _
    $region53: #{tpu_custom_call.1} parent=1 // pred_fallthru
      _
    // Predicated region
    $region54: #{tpu_custom_call.1} parent=1 // pred_check
      _
    $region55: #{tpu_custom_call.1} parent=1 // pred_check_branch
      %57 = sbr.rel (0) target = $region57
    $region56: #{tpu_custom_call.1} parent=1 // pred_region
      %58 = dma.done [#allocation3], 256
    $region57: #{tpu_custom_call.1} parent=1 // pred_fallthru
      _
    %v59 = vld [vmem:[#allocation2] sm:$0xff]
    %v60 = vld [vmem:[#allocation2 + $0x8] sm:$0xff]
    %v61 = vld [vmem:[%s1] sm:$0xff]
    %v62 = vld [vmem:[%s1 + $0x8] sm:$0xff]
    %v63 = vld [vmem:[%s1 + $0x10] sm:$0xff]
    %v64 = vld [vmem:[%s1 + $0x18] sm:$0xff]
    %v65 = vld [vmem:[%s2] sm:$0x1]
    %v67 = vlaneseq
    %v68 = vshrl.u32 %v67, 7
    %v69 = vsub.s32 0, %v68
    %v70 = vrot.slane %v65, %v69
    %vm72 = vcmask 261120
    %v74 = vsel %vm72, %v59, 0
    %v77 = vsel %vm72, %v60, 0
    %79 = vmatprep.subr.mxu0 0.0
    %80 = vmatpush1.msra.mxu0 %v61
    %81 = vmatprep.subr.mxu0 0.0
    %82 = vmatpush1.msra.mxu0 %v62
    %83 = vmatprep.subr.mxu0 0.0
    %84 = vmatpush1.msra.mxu0 %v63
    %85 = vmatprep.subr.mxu0 0.0
    %86 = vmatpush1.msra.mxu0 %v64
    %87 = vmatprep.subr.mxu0 0.0
    %88 = vmatpush1.msra.mxu0 0.0
    %89 = vmatprep.subr.mxu0 0.0
    %90 = vmatpush1.msra.mxu0 0.0
    %91 = vmatprep.subr.mxu0 0.0
    %92 = vmatpush1.msra.mxu0 0.0
    %93 = vmatprep.subr.mxu0 0.0
    %94 = vmatpush1.msra.mxu0 0.0
    %95 = vmatprep.subr.mxu0 0.0
    %96 = vmatpush1.msra.mxu0 0.0
    %97 = vmatprep.subr.mxu0 0.0
    %98 = vmatpush1.msra.mxu0 0.0
    %99 = vmatprep.subr.mxu0 0.0
    %100 = vmatpush1.msra.mxu0 0.0
    %101 = vmatprep.subr.mxu0 0.0
    %102 = vmatpush1.msra.mxu0 0.0
    %103 = vmatprep.subr.mxu0 0.0
    %104 = vmatpush1.msra.mxu0 0.0
    %105 = vmatprep.subr.mxu0 0.0
    %106 = vmatpush1.msra.mxu0 0.0
    %107 = vmatprep.subr.mxu0 0.0
    %108 = vmatpush1.msra.mxu0 0.0
    %109 = vmatprep.subr.mxu0 0.0
    %110 = vmatpush1.msra.mxu0 0.0
    %111 = vmatprep.subr.mxu0 0.0
    %112 = vmatpush1.msra.mxu0 0.0
    %113 = vmatprep.subr.mxu0 0.0
    %114 = vmatpush1.msra.mxu0 0.0
    %115 = vmatprep.subr.mxu0 0.0
    %116 = vmatpush1.msra.mxu0 0.0
    %117 = vmatprep.subr.mxu0 0.0
    %118 = vmatpush1.msra.mxu0 0.0
    %119 = vmatprep.subr.mxu0 0.0
    %120 = vmatpush1.msra.mxu0 0.0
    %121 = vmatprep.subr.mxu0 0.0
    %122 = vmatpush1.msra.mxu0 0.0
    %123 = vmatprep.subr.mxu0 0.0
    %124 = vmatpush1.msra.mxu0 0.0
    %125 = vmatprep.subr.mxu0 0.0
    %126 = vmatpush1.msra.mxu0 0.0
    %127 = vmatprep.subr.mxu0 0.0
    %128 = vmatpush1.msra.mxu0 0.0
    %129 = vmatprep.subr.mxu0 0.0
    %130 = vmatpush1.msra.mxu0 0.0
    %131 = vmatprep.subr.mxu0 0.0
    %132 = vmatpush1.msra.mxu0 0.0
    %133 = vmatprep.subr.mxu0 0.0
    %134 = vmatpush1.msra.mxu0 0.0
    %135 = vmatprep.subr.mxu0 0.0
    %136 = vmatpush1.msra.mxu0 0.0
    %137 = vmatprep.subr.mxu0 0.0
    %138 = vmatpush1.msra.mxu0 0.0
    %139 = vmatprep.subr.mxu0 0.0
    %140 = vmatpush1.msra.mxu0 0.0
    %141 = vmatprep.subr.mxu0 0.0
    %142 = vmatpush1.msra.mxu0 0.0
    %143 = vmatprep.mubr.f32.mxu0 0.0
    %144 = vmatmul.mubr.f32.gmra.mrb[0].mxu0 %v74
    %v145 = vpop.f32.mrb[0].mxu0
    %v146 = vadd.f32 %v70, %v145
    %v147 = vpop.f32.mrb[0].mxu0
    %148 = vmatprep.mubr.f32.mxu0 0.0
    %149 = vmatmul.mubr.f32.gmra.mrb[0].mxu0 %v77
    %v150 = vpop.f32.mrb[0].mxu0
    %v151 = vadd.f32 %v70, %v150
    %v152 = vpop.f32.mrb[0].mxu0
    %153 = vdwg.mxu0
    %156 = vrot.lane.b32.xlu0 %v146, 120
    %v157 = vpop.permute.xlu0 %156
    %158 = vrot.lane.b32.xlu0 %v151, 120
    %v159 = vpop.permute.xlu0 %158
    %162 = vrot.lane.b32.xlu0 %v146, 112
    %v163 = vpop.permute.xlu0 %162
    %164 = vrot.lane.b32.xlu0 %v151, 112
    %v165 = vpop.permute.xlu0 %164
    %168 = vrot.lane.b32.xlu0 %v146, 104
    %v169 = vpop.permute.xlu0 %168
    %170 = vrot.lane.b32.xlu0 %v151, 104
    %v171 = vpop.permute.xlu0 %170
    %v174 = vcombine.low %v146, %v163
    %v175 = vcombine.high %v146, %v163
    %v177 = vunpack.c.l.s4 1983009808
    %v178 = vunpack.c.0.s8 %v177
    %v179 = vlaneseq
    %v180 = vshrl.u32 %v179, 7
    %v181 = vsub.s32 %v178, %v180
    %v182 = vrot.slane %v174, %v181
    %v184 = vunpack.c.l.s4 1983009808
    %v185 = vunpack.c.0.s8 %v184
    %v186 = vlaneseq
    %v187 = vshrl.u32 %v186, 7
    %v188 = vsub.s32 %v185, %v187
    %v189 = vrot.slane %v175, %v188
    %v190 = vcombine.low %v157, %v169
    %v191 = vcombine.high %v157, %v169
    %v193 = vunpack.c.l.s4 1983009808
    %v194 = vunpack.c.0.s8 %v193
    %v195 = vlaneseq
    %v196 = vshrl.u32 %v195, 7
    %v197 = vsub.s32 %v194, %v196
    %v198 = vrot.slane %v190, %v197
    %v200 = vunpack.c.l.s4 1983009808
    %v201 = vunpack.c.0.s8 %v200
    %v202 = vlaneseq
    %v203 = vshrl.u32 %v202, 7
    %v204 = vsub.s32 %v201, %v203
    %v205 = vrot.slane %v191, %v204
    %v206 = vcombine.low %v182, %v198
    %v207 = vcombine.high %v182, %v198
    %v209 = vunpack.c.l.s4 1934713408
    %v210 = vunpack.c.0.s8 %v209
    %v211 = vlaneseq
    %v212 = vshrl.u32 %v211, 7
    %v213 = vsub.s32 %v210, %v212
    %v214 = vrot.slane %v206, %v213
    %v216 = vunpack.c.l.s4 1934713408
    %v217 = vunpack.c.0.s8 %v216
    %v218 = vlaneseq
    %v219 = vshrl.u32 %v218, 7
    %v220 = vsub.s32 %v217, %v219
    %v221 = vrot.slane %v207, %v220
    %v222 = vcombine.low %v189, %v205
    %v223 = vcombine.high %v189, %v205
    %v225 = vunpack.c.l.s4 1934713408
    %v226 = vunpack.c.0.s8 %v225
    %v227 = vlaneseq
    %v228 = vshrl.u32 %v227, 7
    %v229 = vsub.s32 %v226, %v228
    %v230 = vrot.slane %v222, %v229
    %v232 = vunpack.c.l.s4 1934713408
    %v233 = vunpack.c.0.s8 %v232
    %v234 = vlaneseq
    %v235 = vshrl.u32 %v234, 7
    %v236 = vsub.s32 %v233, %v235
    %v237 = vrot.slane %v223, %v236
    %v238 = vcombine.high %v214, 0.0
    %v239 = vcombine.high %v221, 0.0
    %v240 = vcombine.high %v230, 0.0
    %v241 = vcombine.high %v237, 0.0
    %v242 = vcombine.low %v151, %v165
    %v243 = vcombine.high %v151, %v165
    %v245 = vunpack.c.l.s4 1983009808
    %v246 = vunpack.c.0.s8 %v245
    %v247 = vlaneseq
    %v248 = vshrl.u32 %v247, 7
    %v249 = vsub.s32 %v246, %v248
    %v250 = vrot.slane %v242, %v249
    %v252 = vunpack.c.l.s4 1983009808
    %v253 = vunpack.c.0.s8 %v252
    %v254 = vlaneseq
    %v255 = vshrl.u32 %v254, 7
    %v256 = vsub.s32 %v253, %v255
    %v257 = vrot.slane %v243, %v256
    %v258 = vcombine.low %v159, %v171
    %v259 = vcombine.high %v159, %v171
    %v261 = vunpack.c.l.s4 1983009808
    %v262 = vunpack.c.0.s8 %v261
    %v263 = vlaneseq
    %v264 = vshrl.u32 %v263, 7
    %v265 = vsub.s32 %v262, %v264
    %v266 = vrot.slane %v258, %v265
    %v268 = vunpack.c.l.s4 1983009808
    %v269 = vunpack.c.0.s8 %v268
    %v270 = vlaneseq
    %v271 = vshrl.u32 %v270, 7
    %v272 = vsub.s32 %v269, %v271
    %v273 = vrot.slane %v259, %v272
    %v274 = vcombine.low %v250, %v266
    %v275 = vcombine.high %v250, %v266
    %v277 = vunpack.c.l.s4 1934713408
    %v278 = vunpack.c.0.s8 %v277
    %v279 = vlaneseq
    %v280 = vshrl.u32 %v279, 7
    %v281 = vsub.s32 %v278, %v280
    %v282 = vrot.slane %v274, %v281
    %v284 = vunpack.c.l.s4 1934713408
    %v285 = vunpack.c.0.s8 %v284
    %v286 = vlaneseq
    %v287 = vshrl.u32 %v286, 7
    %v288 = vsub.s32 %v285, %v287
    %v289 = vrot.slane %v275, %v288
    %v290 = vcombine.low %v257, %v273
    %v291 = vcombine.high %v257, %v273
    %v293 = vunpack.c.l.s4 1934713408
    %v294 = vunpack.c.0.s8 %v293
    %v295 = vlaneseq
    %v296 = vshrl.u32 %v295, 7
    %v297 = vsub.s32 %v294, %v296
    %v298 = vrot.slane %v290, %v297
    %v300 = vunpack.c.l.s4 1934713408
    %v301 = vunpack.c.0.s8 %v300
    %v302 = vlaneseq
    %v303 = vshrl.u32 %v302, 7
    %v304 = vsub.s32 %v301, %v303
    %v305 = vrot.slane %v291, %v304
    %v306 = vcombine.high %v282, 0.0
    %v307 = vcombine.high %v289, 0.0
    %v308 = vcombine.high %v298, 0.0
    %v309 = vcombine.high %v305, 0.0
    %v310 = vcombine.low %v214, %v221
    %v312 = vunpack.c.l.s4 1983009808
    %v313 = vunpack.c.0.s8 %v312
    %v314 = vlaneseq
    %v315 = vshrl.u32 %v314, 7
    %v316 = vsub.s32 %v313, %v315
    %v317 = vrot.slane %v310, %v316
    %v318 = vcombine.low %v238, %v239
    %v320 = vunpack.c.l.s4 1983009808
    %v321 = vunpack.c.0.s8 %v320
    %v322 = vlaneseq
    %v323 = vshrl.u32 %v322, 7
    %v324 = vsub.s32 %v321, %v323
    %v325 = vrot.slane %v318, %v324
    %v326 = vcombine.low %v230, %v237
    %v328 = vunpack.c.l.s4 1983009808
    %v329 = vunpack.c.0.s8 %v328
    %v330 = vlaneseq
    %v331 = vshrl.u32 %v330, 7
    %v332 = vsub.s32 %v329, %v331
    %v333 = vrot.slane %v326, %v332
    %v334 = vcombine.low %v240, %v241
    %v336 = vunpack.c.l.s4 1983009808
    %v337 = vunpack.c.0.s8 %v336
    %v338 = vlaneseq
    %v339 = vshrl.u32 %v338, 7
    %v340 = vsub.s32 %v337, %v339
    %v341 = vrot.slane %v334, %v340
    %v342 = vcombine.low %v317, %v325
    %v343 = vcombine.high %v317, %v325
    %v345 = vunpack.c.l.s4 1934713408
    %v346 = vunpack.c.0.s8 %v345
    %v347 = vlaneseq
    %v348 = vshrl.u32 %v347, 7
    %v349 = vsub.s32 %v346, %v348
    %v350 = vrot.slane %v342, %v349
    %v352 = vunpack.c.l.s4 1934713408
    %v353 = vunpack.c.0.s8 %v352
    %v354 = vlaneseq
    %v355 = vshrl.u32 %v354, 7
    %v356 = vsub.s32 %v353, %v355
    %v357 = vrot.slane %v343, %v356
    %v358 = vcombine.low %v333, %v341
    %v359 = vcombine.high %v333, %v341
    %v361 = vunpack.c.l.s4 1934713408
    %v362 = vunpack.c.0.s8 %v361
    %v363 = vlaneseq
    %v364 = vshrl.u32 %v363, 7
    %v365 = vsub.s32 %v362, %v364
    %v366 = vrot.slane %v358, %v365
    %v368 = vunpack.c.l.s4 1934713408
    %v369 = vunpack.c.0.s8 %v368
    %v370 = vlaneseq
    %v371 = vshrl.u32 %v370, 7
    %v372 = vsub.s32 %v369, %v371
    %v373 = vrot.slane %v359, %v372
    %v374 = vcombine.low %v350, %v366
    %v375 = vcombine.high %v350, %v366
    %v376 = vcombine.low %v357, %v373
    %v377 = vcombine.high %v357, %v373
    %v378 = vcombine.low %v282, %v289
    %v380 = vunpack.c.l.s4 1983009808
    %v381 = vunpack.c.0.s8 %v380
    %v382 = vlaneseq
    %v383 = vshrl.u32 %v382, 7
    %v384 = vsub.s32 %v381, %v383
    %v385 = vrot.slane %v378, %v384
    %v386 = vcombine.low %v306, %v307
    %v388 = vunpack.c.l.s4 1983009808
    %v389 = vunpack.c.0.s8 %v388
    %v390 = vlaneseq
    %v391 = vshrl.u32 %v390, 7
    %v392 = vsub.s32 %v389, %v391
    %v393 = vrot.slane %v386, %v392
    %v394 = vcombine.low %v298, %v305
    %v396 = vunpack.c.l.s4 1983009808
    %v397 = vunpack.c.0.s8 %v396
    %v398 = vlaneseq
    %v399 = vshrl.u32 %v398, 7
    %v400 = vsub.s32 %v397, %v399
    %v401 = vrot.slane %v394, %v400
    %v402 = vcombine.low %v308, %v309
    %v404 = vunpack.c.l.s4 1983009808
    %v405 = vunpack.c.0.s8 %v404
    %v406 = vlaneseq
    %v407 = vshrl.u32 %v406, 7
    %v408 = vsub.s32 %v405, %v407
    %v409 = vrot.slane %v402, %v408
    %v410 = vcombine.low %v385, %v393
    %v411 = vcombine.high %v385, %v393
    %v413 = vunpack.c.l.s4 1934713408
    %v414 = vunpack.c.0.s8 %v413
    %v415 = vlaneseq
    %v416 = vshrl.u32 %v415, 7
    %v417 = vsub.s32 %v414, %v416
    %v418 = vrot.slane %v410, %v417
    %v420 = vunpack.c.l.s4 1934713408
    %v421 = vunpack.c.0.s8 %v420
    %v422 = vlaneseq
    %v423 = vshrl.u32 %v422, 7
    %v424 = vsub.s32 %v421, %v423
    %v425 = vrot.slane %v411, %v424
    %v426 = vcombine.low %v401, %v409
    %v427 = vcombine.high %v401, %v409
    %v429 = vunpack.c.l.s4 1934713408
    %v430 = vunpack.c.0.s8 %v429
    %v431 = vlaneseq
    %v432 = vshrl.u32 %v431, 7
    %v433 = vsub.s32 %v430, %v432
    %v434 = vrot.slane %v426, %v433
    %v436 = vunpack.c.l.s4 1934713408
    %v437 = vunpack.c.0.s8 %v436
    %v438 = vlaneseq
    %v439 = vshrl.u32 %v438, 7
    %v440 = vsub.s32 %v437, %v439
    %v441 = vrot.slane %v427, %v440
    %v442 = vcombine.low %v418, %v434
    %v443 = vcombine.high %v418, %v434
    %v444 = vcombine.low %v425, %v441
    %v445 = vcombine.high %v425, %v441
    %446 = vrot.lane.b32.xlu0 %v146, 96
    %v447 = vpop.permute.xlu0 %446
    %448 = vrot.lane.b32.xlu0 %v151, 96
    %v449 = vpop.permute.xlu0 %448
    %450 = vrot.lane.b32.xlu0 %v157, 96
    %v451 = vpop.permute.xlu0 %450
    %452 = vrot.lane.b32.xlu0 %v159, 96
    %v453 = vpop.permute.xlu0 %452
    %454 = vrot.lane.b32.xlu0 %v163, 96
    %v455 = vpop.permute.xlu0 %454
    %456 = vrot.lane.b32.xlu0 %v165, 96
    %v457 = vpop.permute.xlu0 %456
    %458 = vrot.lane.b32.xlu0 %v169, 96
    %v459 = vpop.permute.xlu0 %458
    %460 = vrot.lane.b32.xlu0 %v171, 96
    %v461 = vpop.permute.xlu0 %460
    %v470 = vcombine.low %v447, %v455
    %v471 = vcombine.high %v447, %v455
    %v473 = vunpack.c.l.s4 1983009808
    %v474 = vunpack.c.0.s8 %v473
    %v475 = vlaneseq
    %v476 = vshrl.u32 %v475, 7
    %v477 = vsub.s32 %v474, %v476
    %v478 = vrot.slane %v470, %v477
    %v480 = vunpack.c.l.s4 1983009808
    %v481 = vunpack.c.0.s8 %v480
    %v482 = vlaneseq
    %v483 = vshrl.u32 %v482, 7
    %v484 = vsub.s32 %v481, %v483
    %v485 = vrot.slane %v471, %v484
    %v486 = vcombine.low %v451, %v459
    %v487 = vcombine.high %v451, %v459
    %v489 = vunpack.c.l.s4 1983009808
    %v490 = vunpack.c.0.s8 %v489
    %v491 = vlaneseq
    %v492 = vshrl.u32 %v491, 7
    %v493 = vsub.s32 %v490, %v492
    %v494 = vrot.slane %v486, %v493
    %v496 = vunpack.c.l.s4 1983009808
    %v497 = vunpack.c.0.s8 %v496
    %v498 = vlaneseq
    %v499 = vshrl.u32 %v498, 7
    %v500 = vsub.s32 %v497, %v499
    %v501 = vrot.slane %v487, %v500
    %v502 = vcombine.low %v478, %v494
    %v503 = vcombine.high %v478, %v494
    %v505 = vunpack.c.l.s4 1934713408
    %v506 = vunpack.c.0.s8 %v505
    %v507 = vlaneseq
    %v508 = vshrl.u32 %v507, 7
    %v509 = vsub.s32 %v506, %v508
    %v510 = vrot.slane %v502, %v509
    %v512 = vunpack.c.l.s4 1934713408
    %v513 = vunpack.c.0.s8 %v512
    %v514 = vlaneseq
    %v515 = vshrl.u32 %v514, 7
    %v516 = vsub.s32 %v513, %v515
    %v517 = vrot.slane %v503, %v516
    %v518 = vcombine.low %v485, %v501
    %v519 = vcombine.high %v485, %v501
    %v521 = vunpack.c.l.s4 1934713408
    %v522 = vunpack.c.0.s8 %v521
    %v523 = vlaneseq
    %v524 = vshrl.u32 %v523, 7
    %v525 = vsub.s32 %v522, %v524
    %v526 = vrot.slane %v518, %v525
    %v528 = vunpack.c.l.s4 1934713408
    %v529 = vunpack.c.0.s8 %v528
    %v530 = vlaneseq
    %v531 = vshrl.u32 %v530, 7
    %v532 = vsub.s32 %v529, %v531
    %v533 = vrot.slane %v519, %v532
    %v534 = vcombine.high %v510, 0.0
    %v535 = vcombine.high %v517, 0.0
    %v536 = vcombine.high %v526, 0.0
    %v537 = vcombine.high %v533, 0.0
    %v538 = vcombine.low %v449, %v457
    %v539 = vcombine.high %v449, %v457
    %v541 = vunpack.c.l.s4 1983009808
    %v542 = vunpack.c.0.s8 %v541
    %v543 = vlaneseq
    %v544 = vshrl.u32 %v543, 7
    %v545 = vsub.s32 %v542, %v544
    %v546 = vrot.slane %v538, %v545
    %v548 = vunpack.c.l.s4 1983009808
    %v549 = vunpack.c.0.s8 %v548
    %v550 = vlaneseq
    %v551 = vshrl.u32 %v550, 7
    %v552 = vsub.s32 %v549, %v551
    %v553 = vrot.slane %v539, %v552
    %v554 = vcombine.low %v453, %v461
    %v555 = vcombine.high %v453, %v461
    %v557 = vunpack.c.l.s4 1983009808
    %v558 = vunpack.c.0.s8 %v557
    %v559 = vlaneseq
    %v560 = vshrl.u32 %v559, 7
    %v561 = vsub.s32 %v558, %v560
    %v562 = vrot.slane %v554, %v561
    %v564 = vunpack.c.l.s4 1983009808
    %v565 = vunpack.c.0.s8 %v564
    %v566 = vlaneseq
    %v567 = vshrl.u32 %v566, 7
    %v568 = vsub.s32 %v565, %v567
    %v569 = vrot.slane %v555, %v568
    %v570 = vcombine.low %v546, %v562
    %v571 = vcombine.high %v546, %v562
    %v573 = vunpack.c.l.s4 1934713408
    %v574 = vunpack.c.0.s8 %v573
    %v575 = vlaneseq
    %v576 = vshrl.u32 %v575, 7
    %v577 = vsub.s32 %v574, %v576
    %v578 = vrot.slane %v570, %v577
    %v580 = vunpack.c.l.s4 1934713408
    %v581 = vunpack.c.0.s8 %v580
    %v582 = vlaneseq
    %v583 = vshrl.u32 %v582, 7
    %v584 = vsub.s32 %v581, %v583
    %v585 = vrot.slane %v571, %v584
    %v586 = vcombine.low %v553, %v569
    %v587 = vcombine.high %v553, %v569
    %v589 = vunpack.c.l.s4 1934713408
    %v590 = vunpack.c.0.s8 %v589
    %v591 = vlaneseq
    %v592 = vshrl.u32 %v591, 7
    %v593 = vsub.s32 %v590, %v592
    %v594 = vrot.slane %v586, %v593
    %v596 = vunpack.c.l.s4 1934713408
    %v597 = vunpack.c.0.s8 %v596
    %v598 = vlaneseq
    %v599 = vshrl.u32 %v598, 7
    %v600 = vsub.s32 %v597, %v599
    %v601 = vrot.slane %v587, %v600
    %v602 = vcombine.high %v578, 0.0
    %v603 = vcombine.high %v585, 0.0
    %v604 = vcombine.high %v594, 0.0
    %v605 = vcombine.high %v601, 0.0
    %v606 = vcombine.low %v510, %v517
    %v608 = vunpack.c.l.s4 1983009808
    %v609 = vunpack.c.0.s8 %v608
    %v610 = vlaneseq
    %v611 = vshrl.u32 %v610, 7
    %v612 = vsub.s32 %v609, %v611
    %v613 = vrot.slane %v606, %v612
    %v614 = vcombine.low %v534, %v535
    %v616 = vunpack.c.l.s4 1983009808
    %v617 = vunpack.c.0.s8 %v616
    %v618 = vlaneseq
    %v619 = vshrl.u32 %v618, 7
    %v620 = vsub.s32 %v617, %v619
    %v621 = vrot.slane %v614, %v620
    %v622 = vcombine.low %v526, %v533
    %v624 = vunpack.c.l.s4 1983009808
    %v625 = vunpack.c.0.s8 %v624
    %v626 = vlaneseq
    %v627 = vshrl.u32 %v626, 7
    %v628 = vsub.s32 %v625, %v627
    %v629 = vrot.slane %v622, %v628
    %v630 = vcombine.low %v536, %v537
    %v632 = vunpack.c.l.s4 1983009808
    %v633 = vunpack.c.0.s8 %v632
    %v634 = vlaneseq
    %v635 = vshrl.u32 %v634, 7
    %v636 = vsub.s32 %v633, %v635
    %v637 = vrot.slane %v630, %v636
    %v638 = vcombine.low %v613, %v621
    %v639 = vcombine.high %v613, %v621
    %v641 = vunpack.c.l.s4 1934713408
    %v642 = vunpack.c.0.s8 %v641
    %v643 = vlaneseq
    %v644 = vshrl.u32 %v643, 7
    %v645 = vsub.s32 %v642, %v644
    %v646 = vrot.slane %v638, %v645
    %v648 = vunpack.c.l.s4 1934713408
    %v649 = vunpack.c.0.s8 %v648
    %v650 = vlaneseq
    %v651 = vshrl.u32 %v650, 7
    %v652 = vsub.s32 %v649, %v651
    %v653 = vrot.slane %v639, %v652
    %v654 = vcombine.low %v629, %v637
    %v655 = vcombine.high %v629, %v637
    %v657 = vunpack.c.l.s4 1934713408
    %v658 = vunpack.c.0.s8 %v657
    %v659 = vlaneseq
    %v660 = vshrl.u32 %v659, 7
    %v661 = vsub.s32 %v658, %v660
    %v662 = vrot.slane %v654, %v661
    %v664 = vunpack.c.l.s4 1934713408
    %v665 = vunpack.c.0.s8 %v664
    %v666 = vlaneseq
    %v667 = vshrl.u32 %v666, 7
    %v668 = vsub.s32 %v665, %v667
    %v669 = vrot.slane %v655, %v668
    %v670 = vcombine.low %v646, %v662
    %v671 = vcombine.high %v646, %v662
    %v672 = vcombine.low %v653, %v669
    %v673 = vcombine.high %v653, %v669
    %v674 = vcombine.low %v578, %v585
    %v676 = vunpack.c.l.s4 1983009808
    %v677 = vunpack.c.0.s8 %v676
    %v678 = vlaneseq
    %v679 = vshrl.u32 %v678, 7
    %v680 = vsub.s32 %v677, %v679
    %v681 = vrot.slane %v674, %v680
    %v682 = vcombine.low %v602, %v603
    %v684 = vunpack.c.l.s4 1983009808
    %v685 = vunpack.c.0.s8 %v684
    %v686 = vlaneseq
    %v687 = vshrl.u32 %v686, 7
    %v688 = vsub.s32 %v685, %v687
    %v689 = vrot.slane %v682, %v688
    %v690 = vcombine.low %v594, %v601
    %v692 = vunpack.c.l.s4 1983009808
    %v693 = vunpack.c.0.s8 %v692
    %v694 = vlaneseq
    %v695 = vshrl.u32 %v694, 7
    %v696 = vsub.s32 %v693, %v695
    %v697 = vrot.slane %v690, %v696
    %v698 = vcombine.low %v604, %v605
    %v700 = vunpack.c.l.s4 1983009808
    %v701 = vunpack.c.0.s8 %v700
    %v702 = vlaneseq
    %v703 = vshrl.u32 %v702, 7
    %v704 = vsub.s32 %v701, %v703
    %v705 = vrot.slane %v698, %v704
    %v706 = vcombine.low %v681, %v689
    %v707 = vcombine.high %v681, %v689
    %v709 = vunpack.c.l.s4 1934713408
    %v710 = vunpack.c.0.s8 %v709
    %v711 = vlaneseq
    %v712 = vshrl.u32 %v711, 7
    %v713 = vsub.s32 %v710, %v712
    %v714 = vrot.slane %v706, %v713
    %v716 = vunpack.c.l.s4 1934713408
    %v717 = vunpack.c.0.s8 %v716
    %v718 = vlaneseq
    %v719 = vshrl.u32 %v718, 7
    %v720 = vsub.s32 %v717, %v719
    %v721 = vrot.slane %v707, %v720
    %v722 = vcombine.low %v697, %v705
    %v723 = vcombine.high %v697, %v705
    %v725 = vunpack.c.l.s4 1934713408
    %v726 = vunpack.c.0.s8 %v725
    %v727 = vlaneseq
    %v728 = vshrl.u32 %v727, 7
    %v729 = vsub.s32 %v726, %v728
    %v730 = vrot.slane %v722, %v729
    %v732 = vunpack.c.l.s4 1934713408
    %v733 = vunpack.c.0.s8 %v732
    %v734 = vlaneseq
    %v735 = vshrl.u32 %v734, 7
    %v736 = vsub.s32 %v733, %v735
    %v737 = vrot.slane %v723, %v736
    %v738 = vcombine.low %v714, %v730
    %v739 = vcombine.high %v714, %v730
    %v740 = vcombine.low %v721, %v737
    %v741 = vcombine.high %v721, %v737
    %742 = vrot.lane.b32.xlu0 %v146, 64
    %v743 = vpop.permute.xlu0 %742
    %744 = vrot.lane.b32.xlu0 %v151, 64
    %v745 = vpop.permute.xlu0 %744
    %746 = vrot.lane.b32.xlu0 %v157, 64
    %v747 = vpop.permute.xlu0 %746
    %748 = vrot.lane.b32.xlu0 %v159, 64
    %v749 = vpop.permute.xlu0 %748
    %750 = vrot.lane.b32.xlu0 %v163, 64
    %v751 = vpop.permute.xlu0 %750
    %752 = vrot.lane.b32.xlu0 %v165, 64
    %v753 = vpop.permute.xlu0 %752
    %754 = vrot.lane.b32.xlu0 %v169, 64
    %v755 = vpop.permute.xlu0 %754
    %756 = vrot.lane.b32.xlu0 %v171, 64
    %v757 = vpop.permute.xlu0 %756
    %v766 = vcombine.low %v743, %v751
    %v767 = vcombine.high %v743, %v751
    %v769 = vunpack.c.l.s4 1983009808
    %v770 = vunpack.c.0.s8 %v769
    %v771 = vlaneseq
    %v772 = vshrl.u32 %v771, 7
    %v773 = vsub.s32 %v770, %v772
    %v774 = vrot.slane %v766, %v773
    %v776 = vunpack.c.l.s4 1983009808
    %v777 = vunpack.c.0.s8 %v776
    %v778 = vlaneseq
    %v779 = vshrl.u32 %v778, 7
    %v780 = vsub.s32 %v777, %v779
    %v781 = vrot.slane %v767, %v780
    %v782 = vcombine.low %v747, %v755
    %v783 = vcombine.high %v747, %v755
    %v785 = vunpack.c.l.s4 1983009808
    %v786 = vunpack.c.0.s8 %v785
    %v787 = vlaneseq
    %v788 = vshrl.u32 %v787, 7
    %v789 = vsub.s32 %v786, %v788
    %v790 = vrot.slane %v782, %v789
    %v792 = vunpack.c.l.s4 1983009808
    %v793 = vunpack.c.0.s8 %v792
    %v794 = vlaneseq
    %v795 = vshrl.u32 %v794, 7
    %v796 = vsub.s32 %v793, %v795
    %v797 = vrot.slane %v783, %v796
    %v798 = vcombine.low %v774, %v790
    %v799 = vcombine.high %v774, %v790
    %v801 = vunpack.c.l.s4 1934713408
    %v802 = vunpack.c.0.s8 %v801
    %v803 = vlaneseq
    %v804 = vshrl.u32 %v803, 7
    %v805 = vsub.s32 %v802, %v804
    %v806 = vrot.slane %v798, %v805
    %v808 = vunpack.c.l.s4 1934713408
    %v809 = vunpack.c.0.s8 %v808
    %v810 = vlaneseq
    %v811 = vshrl.u32 %v810, 7
    %v812 = vsub.s32 %v809, %v811
    %v813 = vrot.slane %v799, %v812
    %v814 = vcombine.low %v781, %v797
    %v815 = vcombine.high %v781, %v797
    %v817 = vunpack.c.l.s4 1934713408
    %v818 = vunpack.c.0.s8 %v817
    %v819 = vlaneseq
    %v820 = vshrl.u32 %v819, 7
    %v821 = vsub.s32 %v818, %v820
    %v822 = vrot.slane %v814, %v821
    %v824 = vunpack.c.l.s4 1934713408
    %v825 = vunpack.c.0.s8 %v824
    %v826 = vlaneseq
    %v827 = vshrl.u32 %v826, 7
    %v828 = vsub.s32 %v825, %v827
    %v829 = vrot.slane %v815, %v828
    %v830 = vcombine.high %v806, 0.0
    %v831 = vcombine.high %v813, 0.0
    %v832 = vcombine.high %v822, 0.0
    %v833 = vcombine.high %v829, 0.0
    %v834 = vcombine.low %v745, %v753
    %v835 = vcombine.high %v745, %v753
    %v837 = vunpack.c.l.s4 1983009808
    %v838 = vunpack.c.0.s8 %v837
    %v839 = vlaneseq
    %v840 = vshrl.u32 %v839, 7
    %v841 = vsub.s32 %v838, %v840
    %v842 = vrot.slane %v834, %v841
    %v844 = vunpack.c.l.s4 1983009808
    %v845 = vunpack.c.0.s8 %v844
    %v846 = vlaneseq
    %v847 = vshrl.u32 %v846, 7
    %v848 = vsub.s32 %v845, %v847
    %v849 = vrot.slane %v835, %v848
    %v850 = vcombine.low %v749, %v757
    %v851 = vcombine.high %v749, %v757
    %v853 = vunpack.c.l.s4 1983009808
    %v854 = vunpack.c.0.s8 %v853
    %v855 = vlaneseq
    %v856 = vshrl.u32 %v855, 7
    %v857 = vsub.s32 %v854, %v856
    %v858 = vrot.slane %v850, %v857
    %v860 = vunpack.c.l.s4 1983009808
    %v861 = vunpack.c.0.s8 %v860
    %v862 = vlaneseq
    %v863 = vshrl.u32 %v862, 7
    %v864 = vsub.s32 %v861, %v863
    %v865 = vrot.slane %v851, %v864
    %v866 = vcombine.low %v842, %v858
    %v867 = vcombine.high %v842, %v858
    %v869 = vunpack.c.l.s4 1934713408
    %v870 = vunpack.c.0.s8 %v869
    %v871 = vlaneseq
    %v872 = vshrl.u32 %v871, 7
    %v873 = vsub.s32 %v870, %v872
    %v874 = vrot.slane %v866, %v873
    %v876 = vunpack.c.l.s4 1934713408
    %v877 = vunpack.c.0.s8 %v876
    %v878 = vlaneseq
    %v879 = vshrl.u32 %v878, 7
    %v880 = vsub.s32 %v877, %v879
    %v881 = vrot.slane %v867, %v880
    %v882 = vcombine.low %v849, %v865
    %v883 = vcombine.high %v849, %v865
    %v885 = vunpack.c.l.s4 1934713408
    %v886 = vunpack.c.0.s8 %v885
    %v887 = vlaneseq
    %v888 = vshrl.u32 %v887, 7
    %v889 = vsub.s32 %v886, %v888
    %v890 = vrot.slane %v882, %v889
    %v892 = vunpack.c.l.s4 1934713408
    %v893 = vunpack.c.0.s8 %v892
    %v894 = vlaneseq
    %v895 = vshrl.u32 %v894, 7
    %v896 = vsub.s32 %v893, %v895
    %v897 = vrot.slane %v883, %v896
    %v898 = vcombine.high %v874, 0.0
    %v899 = vcombine.high %v881, 0.0
    %v900 = vcombine.high %v890, 0.0
    %v901 = vcombine.high %v897, 0.0
    %v902 = vcombine.low %v806, %v813
    %v904 = vunpack.c.l.s4 1983009808
    %v905 = vunpack.c.0.s8 %v904
    %v906 = vlaneseq
    %v907 = vshrl.u32 %v906, 7
    %v908 = vsub.s32 %v905, %v907
    %v909 = vrot.slane %v902, %v908
    %v910 = vcombine.low %v830, %v831
    %v912 = vunpack.c.l.s4 1983009808
    %v913 = vunpack.c.0.s8 %v912
    %v914 = vlaneseq
    %v915 = vshrl.u32 %v914, 7
    %v916 = vsub.s32 %v913, %v915
    %v917 = vrot.slane %v910, %v916
    %v918 = vcombine.low %v822, %v829
    %v920 = vunpack.c.l.s4 1983009808
    %v921 = vunpack.c.0.s8 %v920
    %v922 = vlaneseq
    %v923 = vshrl.u32 %v922, 7
    %v924 = vsub.s32 %v921, %v923
    %v925 = vrot.slane %v918, %v924
    %v926 = vcombine.low %v832, %v833
    %v928 = vunpack.c.l.s4 1983009808
    %v929 = vunpack.c.0.s8 %v928
    %v930 = vlaneseq
    %v931 = vshrl.u32 %v930, 7
    %v932 = vsub.s32 %v929, %v931
    %v933 = vrot.slane %v926, %v932
    %v934 = vcombine.low %v909, %v917
    %v935 = vcombine.high %v909, %v917
    %v937 = vunpack.c.l.s4 1934713408
    %v938 = vunpack.c.0.s8 %v937
    %v939 = vlaneseq
    %v940 = vshrl.u32 %v939, 7
    %v941 = vsub.s32 %v938, %v940
    %v942 = vrot.slane %v934, %v941
    %v944 = vunpack.c.l.s4 1934713408
    %v945 = vunpack.c.0.s8 %v944
    %v946 = vlaneseq
    %v947 = vshrl.u32 %v946, 7
    %v948 = vsub.s32 %v945, %v947
    %v949 = vrot.slane %v935, %v948
    %v950 = vcombine.low %v925, %v933
    %v951 = vcombine.high %v925, %v933
    %v953 = vunpack.c.l.s4 1934713408
    %v954 = vunpack.c.0.s8 %v953
    %v955 = vlaneseq
    %v956 = vshrl.u32 %v955, 7
    %v957 = vsub.s32 %v954, %v956
    %v958 = vrot.slane %v950, %v957
    %v960 = vunpack.c.l.s4 1934713408
    %v961 = vunpack.c.0.s8 %v960
    %v962 = vlaneseq
    %v963 = vshrl.u32 %v962, 7
    %v964 = vsub.s32 %v961, %v963
    %v965 = vrot.slane %v951, %v964
    %v966 = vcombine.low %v942, %v958
    %v967 = vcombine.high %v942, %v958
    %v968 = vcombine.low %v949, %v965
    %v969 = vcombine.high %v949, %v965
    %v970 = vcombine.low %v874, %v881
    %v972 = vunpack.c.l.s4 1983009808
    %v973 = vunpack.c.0.s8 %v972
    %v974 = vlaneseq
    %v975 = vshrl.u32 %v974, 7
    %v976 = vsub.s32 %v973, %v975
    %v977 = vrot.slane %v970, %v976
    %v978 = vcombine.low %v898, %v899
    %v980 = vunpack.c.l.s4 1983009808
    %v981 = vunpack.c.0.s8 %v980
    %v982 = vlaneseq
    %v983 = vshrl.u32 %v982, 7
    %v984 = vsub.s32 %v981, %v983
    %v985 = vrot.slane %v978, %v984
    %v986 = vcombine.low %v890, %v897
    %v988 = vunpack.c.l.s4 1983009808
    %v989 = vunpack.c.0.s8 %v988
    %v990 = vlaneseq
    %v991 = vshrl.u32 %v990, 7
    %v992 = vsub.s32 %v989, %v991
    %v993 = vrot.slane %v986, %v992
    %v994 = vcombine.low %v900, %v901
    %v996 = vunpack.c.l.s4 1983009808
    %v997 = vunpack.c.0.s8 %v996
    %v998 = vlaneseq
    %v999 = vshrl.u32 %v998, 7
    %v1000 = vsub.s32 %v997, %v999
    %v1001 = vrot.slane %v994, %v1000
    %v1002 = vcombine.low %v977, %v985
    %v1003 = vcombine.high %v977, %v985
    %v1005 = vunpack.c.l.s4 1934713408
    %v1006 = vunpack.c.0.s8 %v1005
    %v1007 = vlaneseq
    %v1008 = vshrl.u32 %v1007, 7
    %v1009 = vsub.s32 %v1006, %v1008
    %v1010 = vrot.slane %v1002, %v1009
    %v1012 = vunpack.c.l.s4 1934713408
    %v1013 = vunpack.c.0.s8 %v1012
    %v1014 = vlaneseq
    %v1015 = vshrl.u32 %v1014, 7
    %v1016 = vsub.s32 %v1013, %v1015
    %v1017 = vrot.slane %v1003, %v1016
    %v1018 = vcombine.low %v993, %v1001
    %v1019 = vcombine.high %v993, %v1001
    %v1021 = vunpack.c.l.s4 1934713408
    %v1022 = vunpack.c.0.s8 %v1021
    %v1023 = vlaneseq
    %v1024 = vshrl.u32 %v1023, 7
    %v1025 = vsub.s32 %v1022, %v1024
    %v1026 = vrot.slane %v1018, %v1025
    %v1028 = vunpack.c.l.s4 1934713408
    %v1029 = vunpack.c.0.s8 %v1028
    %v1030 = vlaneseq
    %v1031 = vshrl.u32 %v1030, 7
    %v1032 = vsub.s32 %v1029, %v1031
    %v1033 = vrot.slane %v1019, %v1032
    %v1034 = vcombine.low %v1010, %v1026
    %v1035 = vcombine.high %v1010, %v1026
    %v1036 = vcombine.low %v1017, %v1033
    %v1037 = vcombine.high %v1017, %v1033
    %vm1038 = vcmask 64512
    %v1040 = vsel %vm1038, %v374, 0
    %v1043 = vsel %vm1038, %v670, 0
    %1045 = vmatprep.subr.mxu0 0.0
    %1046 = vmatpush1.xpose.msra.mxu0 %v1043
    %1047 = vmatprep.subr.mxu0 0.0
    %1048 = vmatpush1.xpose.msra.mxu0 0.0
    %1049 = vmatprep.subr.mxu0 0.0
    %1050 = vmatpush1.xpose.msra.mxu0 0.0
    %1051 = vmatprep.subr.mxu0 0.0
    %1052 = vmatpush1.xpose.msra.mxu0 0.0
    %1053 = vmatprep.subr.mxu0 0.0
    %1054 = vmatpush1.xpose.msra.mxu0 0.0
    %1055 = vmatprep.subr.mxu0 0.0
    %1056 = vmatpush1.xpose.msra.mxu0 0.0
    %1057 = vmatprep.subr.mxu0 0.0
    %1058 = vmatpush1.xpose.msra.mxu0 0.0
    %1059 = vmatprep.subr.mxu0 0.0
    %1060 = vmatpush1.xpose.msra.mxu0 0.0
    %1061 = vmatprep.subr.mxu0 0.0
    %1062 = vmatpush1.xpose.msra.mxu0 0.0
    %1063 = vmatprep.subr.mxu0 0.0
    %1064 = vmatpush1.xpose.msra.mxu0 0.0
    %1065 = vmatprep.subr.mxu0 0.0
    %1066 = vmatpush1.xpose.msra.mxu0 0.0
    %1067 = vmatprep.subr.mxu0 0.0
    %1068 = vmatpush1.xpose.msra.mxu0 0.0
    %1069 = vmatprep.subr.mxu0 0.0
    %1070 = vmatpush1.xpose.msra.mxu0 0.0
    %1071 = vmatprep.subr.mxu0 0.0
    %1072 = vmatpush1.xpose.msra.mxu0 0.0
    %1073 = vmatprep.subr.mxu0 0.0
    %1074 = vmatpush1.xpose.msra.mxu0 0.0
    %1075 = vmatprep.subr.mxu0 0.0
    %1076 = vmatpush1.xpose.msra.mxu0 0.0
    %1077 = vmatprep.subr.mxu0 0.0
    %1078 = vmatpush1.xpose.msra.mxu0 0.0
    %1079 = vmatprep.subr.mxu0 0.0
    %1080 = vmatpush1.xpose.msra.mxu0 0.0
    %1081 = vmatprep.subr.mxu0 0.0
    %1082 = vmatpush1.xpose.msra.mxu0 0.0
    %1083 = vmatprep.subr.mxu0 0.0
    %1084 = vmatpush1.xpose.msra.mxu0 0.0
    %1085 = vmatprep.subr.mxu0 0.0
    %1086 = vmatpush1.xpose.msra.mxu0 0.0
    %1087 = vmatprep.subr.mxu0 0.0
    %1088 = vmatpush1.xpose.msra.mxu0 0.0
    %1089 = vmatprep.subr.mxu0 0.0
    %1090 = vmatpush1.xpose.msra.mxu0 0.0
    %1091 = vmatprep.subr.mxu0 0.0
    %1092 = vmatpush1.xpose.msra.mxu0 0.0
    %1093 = vmatprep.subr.mxu0 0.0
    %1094 = vmatpush1.xpose.msra.mxu0 0.0
    %1095 = vmatprep.subr.mxu0 0.0
    %1096 = vmatpush1.xpose.msra.mxu0 0.0
    %1097 = vmatprep.subr.mxu0 0.0
    %1098 = vmatpush1.xpose.msra.mxu0 0.0
    %1099 = vmatprep.subr.mxu0 0.0
    %1100 = vmatpush1.xpose.msra.mxu0 0.0
    %1101 = vmatprep.subr.mxu0 0.0
    %1102 = vmatpush1.xpose.msra.mxu0 0.0
    %1103 = vmatprep.subr.mxu0 0.0
    %1104 = vmatpush1.xpose.msra.mxu0 0.0
    %1105 = vmatprep.subr.mxu0 0.0
    %1106 = vmatpush1.xpose.msra.mxu0 0.0
    %1107 = vmatprep.subr.mxu0 0.0
    %1108 = vmatpush1.xpose.msra.mxu0 0.0
    %1109 = vmatprep.mubr.f32.mxu0 0.0
    %1110 = vmatmul.mubr.f32.gmra.mrb[0].mxu0 %v1040
    %v1111 = vpop.f32.mrb[0].mxu0
    %v1112 = vadd.f32 0.0, %v1111
    %v1113 = vpop.f32.mrb[0].mxu0
    %1114 = vdwg.mxu0
    %v1116 = vsel %vm1038, %v375, 0
    %v1119 = vsel %vm1038, %v671, 0
    %1121 = vmatprep.subr.mxu0 0.0
    %1122 = vmatpush1.xpose.msra.mxu0 %v1119
    %1123 = vmatprep.subr.mxu0 0.0
    %1124 = vmatpush1.xpose.msra.mxu0 0.0
    %1125 = vmatprep.subr.mxu0 0.0
    %1126 = vmatpush1.xpose.msra.mxu0 0.0
    %1127 = vmatprep.subr.mxu0 0.0
    %1128 = vmatpush1.xpose.msra.mxu0 0.0
    %1129 = vmatprep.subr.mxu0 0.0
    %1130 = vmatpush1.xpose.msra.mxu0 0.0
    %1131 = vmatprep.subr.mxu0 0.0
    %1132 = vmatpush1.xpose.msra.mxu0 0.0
    %1133 = vmatprep.subr.mxu0 0.0
    %1134 = vmatpush1.xpose.msra.mxu0 0.0
    %1135 = vmatprep.subr.mxu0 0.0
    %1136 = vmatpush1.xpose.msra.mxu0 0.0
    %1137 = vmatprep.subr.mxu0 0.0
    %1138 = vmatpush1.xpose.msra.mxu0 0.0
    %1139 = vmatprep.subr.mxu0 0.0
    %1140 = vmatpush1.xpose.msra.mxu0 0.0
    %1141 = vmatprep.subr.mxu0 0.0
    %1142 = vmatpush1.xpose.msra.mxu0 0.0
    %1143 = vmatprep.subr.mxu0 0.0
    %1144 = vmatpush1.xpose.msra.mxu0 0.0
    %1145 = vmatprep.subr.mxu0 0.0
    %1146 = vmatpush1.xpose.msra.mxu0 0.0
    %1147 = vmatprep.subr.mxu0 0.0
    %1148 = vmatpush1.xpose.msra.mxu0 0.0
    %1149 = vmatprep.subr.mxu0 0.0
    %1150 = vmatpush1.xpose.msra.mxu0 0.0
    %1151 = vmatprep.subr.mxu0 0.0
    %1152 = vmatpush1.xpose.msra.mxu0 0.0
    %1153 = vmatprep.subr.mxu0 0.0
    %1154 = vmatpush1.xpose.msra.mxu0 0.0
    %1155 = vmatprep.subr.mxu0 0.0
    %1156 = vmatpush1.xpose.msra.mxu0 0.0
    %1157 = vmatprep.subr.mxu0 0.0
    %1158 = vmatpush1.xpose.msra.mxu0 0.0
    %1159 = vmatprep.subr.mxu0 0.0
    %1160 = vmatpush1.xpose.msra.mxu0 0.0
    %1161 = vmatprep.subr.mxu0 0.0
    %1162 = vmatpush1.xpose.msra.mxu0 0.0
    %1163 = vmatprep.subr.mxu0 0.0
    %1164 = vmatpush1.xpose.msra.mxu0 0.0
    %1165 = vmatprep.subr.mxu0 0.0
    %1166 = vmatpush1.xpose.msra.mxu0 0.0
    %1167 = vmatprep.subr.mxu0 0.0
    %1168 = vmatpush1.xpose.msra.mxu0 0.0
    %1169 = vmatprep.subr.mxu0 0.0
    %1170 = vmatpush1.xpose.msra.mxu0 0.0
    %1171 = vmatprep.subr.mxu0 0.0
    %1172 = vmatpush1.xpose.msra.mxu0 0.0
    %1173 = vmatprep.subr.mxu0 0.0
    %1174 = vmatpush1.xpose.msra.mxu0 0.0
    %1175 = vmatprep.subr.mxu0 0.0
    %1176 = vmatpush1.xpose.msra.mxu0 0.0
    %1177 = vmatprep.subr.mxu0 0.0
    %1178 = vmatpush1.xpose.msra.mxu0 0.0
    %1179 = vmatprep.subr.mxu0 0.0
    %1180 = vmatpush1.xpose.msra.mxu0 0.0
    %1181 = vmatprep.subr.mxu0 0.0
    %1182 = vmatpush1.xpose.msra.mxu0 0.0
    %1183 = vmatprep.subr.mxu0 0.0
    %1184 = vmatpush1.xpose.msra.mxu0 0.0
    %1185 = vmatprep.mubr.f32.mxu0 0.0
    %1186 = vmatmul.mubr.f32.gmra.mrb[0].mxu0 %v1116
    %v1187 = vpop.f32.mrb[0].mxu0
    %v1188 = vadd.f32 0.0, %v1187
    %v1189 = vpop.f32.mrb[0].mxu0
    %1190 = vdwg.mxu0
    %v1192 = vsel %vm1038, %v376, 0
    %v1195 = vsel %vm1038, %v672, 0
    %1197 = vmatprep.subr.mxu0 0.0
    %1198 = vmatpush1.xpose.msra.mxu0 %v1195
    %1199 = vmatprep.subr.mxu0 0.0
    %1200 = vmatpush1.xpose.msra.mxu0 0.0
    %1201 = vmatprep.subr.mxu0 0.0
    %1202 = vmatpush1.xpose.msra.mxu0 0.0
    %1203 = vmatprep.subr.mxu0 0.0
    %1204 = vmatpush1.xpose.msra.mxu0 0.0
    %1205 = vmatprep.subr.mxu0 0.0
    %1206 = vmatpush1.xpose.msra.mxu0 0.0
    %1207 = vmatprep.subr.mxu0 0.0
    %1208 = vmatpush1.xpose.msra.mxu0 0.0
    %1209 = vmatprep.subr.mxu0 0.0
    %1210 = vmatpush1.xpose.msra.mxu0 0.0
    %1211 = vmatprep.subr.mxu0 0.0
    %1212 = vmatpush1.xpose.msra.mxu0 0.0
    %1213 = vmatprep.subr.mxu0 0.0
    %1214 = vmatpush1.xpose.msra.mxu0 0.0
    %1215 = vmatprep.subr.mxu0 0.0
    %1216 = vmatpush1.xpose.msra.mxu0 0.0
    %1217 = vmatprep.subr.mxu0 0.0
    %1218 = vmatpush1.xpose.msra.mxu0 0.0
    %1219 = vmatprep.subr.mxu0 0.0
    %1220 = vmatpush1.xpose.msra.mxu0 0.0
    %1221 = vmatprep.subr.mxu0 0.0
    %1222 = vmatpush1.xpose.msra.mxu0 0.0
    %1223 = vmatprep.subr.mxu0 0.0
    %1224 = vmatpush1.xpose.msra.mxu0 0.0
    %1225 = vmatprep.subr.mxu0 0.0
    %1226 = vmatpush1.xpose.msra.mxu0 0.0
    %1227 = vmatprep.subr.mxu0 0.0
    %1228 = vmatpush1.xpose.msra.mxu0 0.0
    %1229 = vmatprep.subr.mxu0 0.0
    %1230 = vmatpush1.xpose.msra.mxu0 0.0
    %1231 = vmatprep.subr.mxu0 0.0
    %1232 = vmatpush1.xpose.msra.mxu0 0.0
    %1233 = vmatprep.subr.mxu0 0.0
    %1234 = vmatpush1.xpose.msra.mxu0 0.0
    %1235 = vmatprep.subr.mxu0 0.0
    %1236 = vmatpush1.xpose.msra.mxu0 0.0
    %1237 = vmatprep.subr.mxu0 0.0
    %1238 = vmatpush1.xpose.msra.mxu0 0.0
    %1239 = vmatprep.subr.mxu0 0.0
    %1240 = vmatpush1.xpose.msra.mxu0 0.0
    %1241 = vmatprep.subr.mxu0 0.0
    %1242 = vmatpush1.xpose.msra.mxu0 0.0
    %1243 = vmatprep.subr.mxu0 0.0
    %1244 = vmatpush1.xpose.msra.mxu0 0.0
    %1245 = vmatprep.subr.mxu0 0.0
    %1246 = vmatpush1.xpose.msra.mxu0 0.0
    %1247 = vmatprep.subr.mxu0 0.0
    %1248 = vmatpush1.xpose.msra.mxu0 0.0
    %1249 = vmatprep.subr.mxu0 0.0
    %1250 = vmatpush1.xpose.msra.mxu0 0.0
    %1251 = vmatprep.subr.mxu0 0.0
    %1252 = vmatpush1.xpose.msra.mxu0 0.0
    %1253 = vmatprep.subr.mxu0 0.0
    %1254 = vmatpush1.xpose.msra.mxu0 0.0
    %1255 = vmatprep.subr.mxu0 0.0
    %1256 = vmatpush1.xpose.msra.mxu0 0.0
    %1257 = vmatprep.subr.mxu0 0.0
    %1258 = vmatpush1.xpose.msra.mxu0 0.0
    %1259 = vmatprep.subr.mxu0 0.0
    %1260 = vmatpush1.xpose.msra.mxu0 0.0
    %1261 = vmatprep.mubr.f32.mxu0 0.0
    %1262 = vmatmul.mubr.f32.gmra.mrb[0].mxu0 %v1192
    %v1263 = vpop.f32.mrb[0].mxu0
    %v1264 = vadd.f32 0.0, %v1263
    %v1265 = vpop.f32.mrb[0].mxu0
    %1266 = vdwg.mxu0
    %v1268 = vsel %vm1038, %v377, 0
    %v1271 = vsel %vm1038, %v673, 0
    %1273 = vmatprep.subr.mxu0 0.0
    %1274 = vmatpush1.xpose.msra.mxu0 %v1271
    %1275 = vmatprep.subr.mxu0 0.0
    %1276 = vmatpush1.xpose.msra.mxu0 0.0
    %1277 = vmatprep.subr.mxu0 0.0
    %1278 = vmatpush1.xpose.msra.mxu0 0.0
    %1279 = vmatprep.subr.mxu0 0.0
    %1280 = vmatpush1.xpose.msra.mxu0 0.0
    %1281 = vmatprep.subr.mxu0 0.0
    %1282 = vmatpush1.xpose.msra.mxu0 0.0
    %1283 = vmatprep.subr.mxu0 0.0
    %1284 = vmatpush1.xpose.msra.mxu0 0.0
    %1285 = vmatprep.subr.mxu0 0.0
    %1286 = vmatpush1.xpose.msra.mxu0 0.0
    %1287 = vmatprep.subr.mxu0 0.0
    %1288 = vmatpush1.xpose.msra.mxu0 0.0
    %1289 = vmatprep.subr.mxu0 0.0
    %1290 = vmatpush1.xpose.msra.mxu0 0.0
    %1291 = vmatprep.subr.mxu0 0.0
    %1292 = vmatpush1.xpose.msra.mxu0 0.0
    %1293 = vmatprep.subr.mxu0 0.0
    %1294 = vmatpush1.xpose.msra.mxu0 0.0
    %1295 = vmatprep.subr.mxu0 0.0
    %1296 = vmatpush1.xpose.msra.mxu0 0.0
    %1297 = vmatprep.subr.mxu0 0.0
    %1298 = vmatpush1.xpose.msra.mxu0 0.0
    %1299 = vmatprep.subr.mxu0 0.0
    %1300 = vmatpush1.xpose.msra.mxu0 0.0
    %1301 = vmatprep.subr.mxu0 0.0
    %1302 = vmatpush1.xpose.msra.mxu0 0.0
    %1303 = vmatprep.subr.mxu0 0.0
    %1304 = vmatpush1.xpose.msra.mxu0 0.0
    %1305 = vmatprep.subr.mxu0 0.0
    %1306 = vmatpush1.xpose.msra.mxu0 0.0
    %1307 = vmatprep.subr.mxu0 0.0
    %1308 = vmatpush1.xpose.msra.mxu0 0.0
    %1309 = vmatprep.subr.mxu0 0.0
    %1310 = vmatpush1.xpose.msra.mxu0 0.0
    %1311 = vmatprep.subr.mxu0 0.0
    %1312 = vmatpush1.xpose.msra.mxu0 0.0
    %1313 = vmatprep.subr.mxu0 0.0
    %1314 = vmatpush1.xpose.msra.mxu0 0.0
    %1315 = vmatprep.subr.mxu0 0.0
    %1316 = vmatpush1.xpose.msra.mxu0 0.0
    %1317 = vmatprep.subr.mxu0 0.0
    %1318 = vmatpush1.xpose.msra.mxu0 0.0
    %1319 = vmatprep.subr.mxu0 0.0
    %1320 = vmatpush1.xpose.msra.mxu0 0.0
    %1321 = vmatprep.subr.mxu0 0.0
    %1322 = vmatpush1.xpose.msra.mxu0 0.0
    %1323 = vmatprep.subr.mxu0 0.0
    %1324 = vmatpush1.xpose.msra.mxu0 0.0
    %1325 = vmatprep.subr.mxu0 0.0
    %1326 = vmatpush1.xpose.msra.mxu0 0.0
    %1327 = vmatprep.subr.mxu0 0.0
    %1328 = vmatpush1.xpose.msra.mxu0 0.0
    %1329 = vmatprep.subr.mxu0 0.0
    %1330 = vmatpush1.xpose.msra.mxu0 0.0
    %1331 = vmatprep.subr.mxu0 0.0
    %1332 = vmatpush1.xpose.msra.mxu0 0.0
    %1333 = vmatprep.subr.mxu0 0.0
    %1334 = vmatpush1.xpose.msra.mxu0 0.0
    %1335 = vmatprep.subr.mxu0 0.0
    %1336 = vmatpush1.xpose.msra.mxu0 0.0
    %1337 = vmatprep.mubr.f32.mxu0 0.0
    %1338 = vmatmul.mubr.f32.gmra.mrb[0].mxu0 %v1268
    %v1339 = vpop.f32.mrb[0].mxu0
    %v1340 = vadd.f32 0.0, %v1339
    %v1341 = vpop.f32.mrb[0].mxu0
    %1342 = vdwg.mxu0
    %v1344 = vsel %vm1038, %v442, 0
    %v1347 = vsel %vm1038, %v738, 0
    %1349 = vmatprep.subr.mxu0 0.0
    %1350 = vmatpush1.xpose.msra.mxu0 %v1347
    %1351 = vmatprep.subr.mxu0 0.0
    %1352 = vmatpush1.xpose.msra.mxu0 0.0
    %1353 = vmatprep.subr.mxu0 0.0
    %1354 = vmatpush1.xpose.msra.mxu0 0.0
    %1355 = vmatprep.subr.mxu0 0.0
    %1356 = vmatpush1.xpose.msra.mxu0 0.0
    %1357 = vmatprep.subr.mxu0 0.0
    %1358 = vmatpush1.xpose.msra.mxu0 0.0
    %1359 = vmatprep.subr.mxu0 0.0
    %1360 = vmatpush1.xpose.msra.mxu0 0.0
    %1361 = vmatprep.subr.mxu0 0.0
    %1362 = vmatpush1.xpose.msra.mxu0 0.0
    %1363 = vmatprep.subr.mxu0 0.0
    %1364 = vmatpush1.xpose.msra.mxu0 0.0
    %1365 = vmatprep.subr.mxu0 0.0
    %1366 = vmatpush1.xpose.msra.mxu0 0.0
    %1367 = vmatprep.subr.mxu0 0.0
    %1368 = vmatpush1.xpose.msra.mxu0 0.0
    %1369 = vmatprep.subr.mxu0 0.0
    %1370 = vmatpush1.xpose.msra.mxu0 0.0
    %1371 = vmatprep.subr.mxu0 0.0
    %1372 = vmatpush1.xpose.msra.mxu0 0.0
    %1373 = vmatprep.subr.mxu0 0.0
    %1374 = vmatpush1.xpose.msra.mxu0 0.0
    %1375 = vmatprep.subr.mxu0 0.0
    %1376 = vmatpush1.xpose.msra.mxu0 0.0
    %1377 = vmatprep.subr.mxu0 0.0
    %1378 = vmatpush1.xpose.msra.mxu0 0.0
    %1379 = vmatprep.subr.mxu0 0.0
    %1380 = vmatpush1.xpose.msra.mxu0 0.0
    %1381 = vmatprep.subr.mxu0 0.0
    %1382 = vmatpush1.xpose.msra.mxu0 0.0
    %1383 = vmatprep.subr.mxu0 0.0
    %1384 = vmatpush1.xpose.msra.mxu0 0.0
    %1385 = vmatprep.subr.mxu0 0.0
    %1386 = vmatpush1.xpose.msra.mxu0 0.0
    %1387 = vmatprep.subr.mxu0 0.0
    %1388 = vmatpush1.xpose.msra.mxu0 0.0
    %1389 = vmatprep.subr.mxu0 0.0
    %1390 = vmatpush1.xpose.msra.mxu0 0.0
    %1391 = vmatprep.subr.mxu0 0.0
    %1392 = vmatpush1.xpose.msra.mxu0 0.0
    %1393 = vmatprep.subr.mxu0 0.0
    %1394 = vmatpush1.xpose.msra.mxu0 0.0
    %1395 = vmatprep.subr.mxu0 0.0
    %1396 = vmatpush1.xpose.msra.mxu0 0.0
    %1397 = vmatprep.subr.mxu0 0.0
    %1398 = vmatpush1.xpose.msra.mxu0 0.0
    %1399 = vmatprep.subr.mxu0 0.0
    %1400 = vmatpush1.xpose.msra.mxu0 0.0
    %1401 = vmatprep.subr.mxu0 0.0
    %1402 = vmatpush1.xpose.msra.mxu0 0.0
    %1403 = vmatprep.subr.mxu0 0.0
    %1404 = vmatpush1.xpose.msra.mxu0 0.0
    %1405 = vmatprep.subr.mxu0 0.0
    %1406 = vmatpush1.xpose.msra.mxu0 0.0
    %1407 = vmatprep.subr.mxu0 0.0
    %1408 = vmatpush1.xpose.msra.mxu0 0.0
    %1409 = vmatprep.subr.mxu0 0.0
    %1410 = vmatpush1.xpose.msra.mxu0 0.0
    %1411 = vmatprep.subr.mxu0 0.0
    %1412 = vmatpush1.xpose.msra.mxu0 0.0
    %1413 = vmatprep.mubr.f32.mxu0 0.0
    %1414 = vmatmul.mubr.f32.gmra.mrb[0].mxu0 %v1344
    %v1415 = vpop.f32.mrb[0].mxu0
    %v1416 = vadd.f32 0.0, %v1415
    %v1417 = vpop.f32.mrb[0].mxu0
    %1418 = vdwg.mxu0
    %v1420 = vsel %vm1038, %v443, 0
    %v1423 = vsel %vm1038, %v739, 0
    %1425 = vmatprep.subr.mxu0 0.0
    %1426 = vmatpush1.xpose.msra.mxu0 %v1423
    %1427 = vmatprep.subr.mxu0 0.0
    %1428 = vmatpush1.xpose.msra.mxu0 0.0
    %1429 = vmatprep.subr.mxu0 0.0
    %1430 = vmatpush1.xpose.msra.mxu0 0.0
    %1431 = vmatprep.subr.mxu0 0.0
    %1432 = vmatpush1.xpose.msra.mxu0 0.0
    %1433 = vmatprep.subr.mxu0 0.0
    %1434 = vmatpush1.xpose.msra.mxu0 0.0
    %1435 = vmatprep.subr.mxu0 0.0
    %1436 = vmatpush1.xpose.msra.mxu0 0.0
    %1437 = vmatprep.subr.mxu0 0.0
    %1438 = vmatpush1.xpose.msra.mxu0 0.0
    %1439 = vmatprep.subr.mxu0 0.0
    %1440 = vmatpush1.xpose.msra.mxu0 0.0
    %1441 = vmatprep.subr.mxu0 0.0
    %1442 = vmatpush1.xpose.msra.mxu0 0.0
    %1443 = vmatprep.subr.mxu0 0.0
    %1444 = vmatpush1.xpose.msra.mxu0 0.0
    %1445 = vmatprep.subr.mxu0 0.0
    %1446 = vmatpush1.xpose.msra.mxu0 0.0
    %1447 = vmatprep.subr.mxu0 0.0
    %1448 = vmatpush1.xpose.msra.mxu0 0.0
    %1449 = vmatprep.subr.mxu0 0.0
    %1450 = vmatpush1.xpose.msra.mxu0 0.0
    %1451 = vmatprep.subr.mxu0 0.0
    %1452 = vmatpush1.xpose.msra.mxu0 0.0
    %1453 = vmatprep.subr.mxu0 0.0
    %1454 = vmatpush1.xpose.msra.mxu0 0.0
    %1455 = vmatprep.subr.mxu0 0.0
    %1456 = vmatpush1.xpose.msra.mxu0 0.0
    %1457 = vmatprep.subr.mxu0 0.0
    %1458 = vmatpush1.xpose.msra.mxu0 0.0
    %1459 = vmatprep.subr.mxu0 0.0
    %1460 = vmatpush1.xpose.msra.mxu0 0.0
    %1461 = vmatprep.subr.mxu0 0.0
    %1462 = vmatpush1.xpose.msra.mxu0 0.0
    %1463 = vmatprep.subr.mxu0 0.0
    %1464 = vmatpush1.xpose.msra.mxu0 0.0
    %1465 = vmatprep.subr.mxu0 0.0
    %1466 = vmatpush1.xpose.msra.mxu0 0.0
    %1467 = vmatprep.subr.mxu0 0.0
    %1468 = vmatpush1.xpose.msra.mxu0 0.0
    %1469 = vmatprep.subr.mxu0 0.0
    %1470 = vmatpush1.xpose.msra.mxu0 0.0
    %1471 = vmatprep.subr.mxu0 0.0
    %1472 = vmatpush1.xpose.msra.mxu0 0.0
    %1473 = vmatprep.subr.mxu0 0.0
    %1474 = vmatpush1.xpose.msra.mxu0 0.0
    %1475 = vmatprep.subr.mxu0 0.0
    %1476 = vmatpush1.xpose.msra.mxu0 0.0
    %1477 = vmatprep.subr.mxu0 0.0
    %1478 = vmatpush1.xpose.msra.mxu0 0.0
    %1479 = vmatprep.subr.mxu0 0.0
    %1480 = vmatpush1.xpose.msra.mxu0 0.0
    %1481 = vmatprep.subr.mxu0 0.0
    %1482 = vmatpush1.xpose.msra.mxu0 0.0
    %1483 = vmatprep.subr.mxu0 0.0
    %1484 = vmatpush1.xpose.msra.mxu0 0.0
    %1485 = vmatprep.subr.mxu0 0.0
    %1486 = vmatpush1.xpose.msra.mxu0 0.0
    %1487 = vmatprep.subr.mxu0 0.0
    %1488 = vmatpush1.xpose.msra.mxu0 0.0
    %1489 = vmatprep.mubr.f32.mxu0 0.0
    %1490 = vmatmul.mubr.f32.gmra.mrb[0].mxu0 %v1420
    %v1491 = vpop.f32.mrb[0].mxu0
    %v1492 = vadd.f32 0.0, %v1491
    %v1493 = vpop.f32.mrb[0].mxu0
    %1494 = vdwg.mxu0
    %v1496 = vsel %vm1038, %v444, 0
    %v1499 = vsel %vm1038, %v740, 0
    %1501 = vmatprep.subr.mxu0 0.0
    %1502 = vmatpush1.xpose.msra.mxu0 %v1499
    %1503 = vmatprep.subr.mxu0 0.0
    %1504 = vmatpush1.xpose.msra.mxu0 0.0
    %1505 = vmatprep.subr.mxu0 0.0
    %1506 = vmatpush1.xpose.msra.mxu0 0.0
    %1507 = vmatprep.subr.mxu0 0.0
    %1508 = vmatpush1.xpose.msra.mxu0 0.0
    %1509 = vmatprep.subr.mxu0 0.0
    %1510 = vmatpush1.xpose.msra.mxu0 0.0
    %1511 = vmatprep.subr.mxu0 0.0
    %1512 = vmatpush1.xpose.msra.mxu0 0.0
    %1513 = vmatprep.subr.mxu0 0.0
    %1514 = vmatpush1.xpose.msra.mxu0 0.0
    %1515 = vmatprep.subr.mxu0 0.0
    %1516 = vmatpush1.xpose.msra.mxu0 0.0
    %1517 = vmatprep.subr.mxu0 0.0
    %1518 = vmatpush1.xpose.msra.mxu0 0.0
    %1519 = vmatprep.subr.mxu0 0.0
    %1520 = vmatpush1.xpose.msra.mxu0 0.0
    %1521 = vmatprep.subr.mxu0 0.0
    %1522 = vmatpush1.xpose.msra.mxu0 0.0
    %1523 = vmatprep.subr.mxu0 0.0
    %1524 = vmatpush1.xpose.msra.mxu0 0.0
    %1525 = vmatprep.subr.mxu0 0.0
    %1526 = vmatpush1.xpose.msra.mxu0 0.0
    %1527 = vmatprep.subr.mxu0 0.0
    %1528 = vmatpush1.xpose.msra.mxu0 0.0
    %1529 = vmatprep.subr.mxu0 0.0
    %1530 = vmatpush1.xpose.msra.mxu0 0.0
    %1531 = vmatprep.subr.mxu0 0.0
    %1532 = vmatpush1.xpose.msra.mxu0 0.0
    %1533 = vmatprep.subr.mxu0 0.0
    %1534 = vmatpush1.xpose.msra.mxu0 0.0
    %1535 = vmatprep.subr.mxu0 0.0
    %1536 = vmatpush1.xpose.msra.mxu0 0.0
    %1537 = vmatprep.subr.mxu0 0.0
    %1538 = vmatpush1.xpose.msra.mxu0 0.0
    %1539 = vmatprep.subr.mxu0 0.0
    %1540 = vmatpush1.xpose.msra.mxu0 0.0
    %1541 = vmatprep.subr.mxu0 0.0
    %1542 = vmatpush1.xpose.msra.mxu0 0.0
    %1543 = vmatprep.subr.mxu0 0.0
    %1544 = vmatpush1.xpose.msra.mxu0 0.0
    %1545 = vmatprep.subr.mxu0 0.0
    %1546 = vmatpush1.xpose.msra.mxu0 0.0
    %1547 = vmatprep.subr.mxu0 0.0
    %1548 = vmatpush1.xpose.msra.mxu0 0.0
    %1549 = vmatprep.subr.mxu0 0.0
    %1550 = vmatpush1.xpose.msra.mxu0 0.0
    %1551 = vmatprep.subr.mxu0 0.0
    %1552 = vmatpush1.xpose.msra.mxu0 0.0
    %1553 = vmatprep.subr.mxu0 0.0
    %1554 = vmatpush1.xpose.msra.mxu0 0.0
    %1555 = vmatprep.subr.mxu0 0.0
    %1556 = vmatpush1.xpose.msra.mxu0 0.0
    %1557 = vmatprep.subr.mxu0 0.0
    %1558 = vmatpush1.xpose.msra.mxu0 0.0
    %1559 = vmatprep.subr.mxu0 0.0
    %1560 = vmatpush1.xpose.msra.mxu0 0.0
    %1561 = vmatprep.subr.mxu0 0.0
    %1562 = vmatpush1.xpose.msra.mxu0 0.0
    %1563 = vmatprep.subr.mxu0 0.0
    %1564 = vmatpush1.xpose.msra.mxu0 0.0
    %1565 = vmatprep.mubr.f32.mxu0 0.0
    %1566 = vmatmul.mubr.f32.gmra.mrb[0].mxu0 %v1496
    %v1567 = vpop.f32.mrb[0].mxu0
    %v1568 = vadd.f32 0.0, %v1567
    %v1569 = vpop.f32.mrb[0].mxu0
    %1570 = vdwg.mxu0
    %v1572 = vsel %vm1038, %v445, 0
    %v1575 = vsel %vm1038, %v741, 0
    %1577 = vmatprep.subr.mxu0 0.0
    %1578 = vmatpush1.xpose.msra.mxu0 %v1575
    %1579 = vmatprep.subr.mxu0 0.0
    %1580 = vmatpush1.xpose.msra.mxu0 0.0
    %1581 = vmatprep.subr.mxu0 0.0
    %1582 = vmatpush1.xpose.msra.mxu0 0.0
    %1583 = vmatprep.subr.mxu0 0.0
    %1584 = vmatpush1.xpose.msra.mxu0 0.0
    %1585 = vmatprep.subr.mxu0 0.0
    %1586 = vmatpush1.xpose.msra.mxu0 0.0
    %1587 = vmatprep.subr.mxu0 0.0
    %1588 = vmatpush1.xpose.msra.mxu0 0.0
    %1589 = vmatprep.subr.mxu0 0.0
    %1590 = vmatpush1.xpose.msra.mxu0 0.0
    %1591 = vmatprep.subr.mxu0 0.0
    %1592 = vmatpush1.xpose.msra.mxu0 0.0
    %1593 = vmatprep.subr.mxu0 0.0
    %1594 = vmatpush1.xpose.msra.mxu0 0.0
    %1595 = vmatprep.subr.mxu0 0.0
    %1596 = vmatpush1.xpose.msra.mxu0 0.0
    %1597 = vmatprep.subr.mxu0 0.0
    %1598 = vmatpush1.xpose.msra.mxu0 0.0
    %1599 = vmatprep.subr.mxu0 0.0
    %1600 = vmatpush1.xpose.msra.mxu0 0.0
    %1601 = vmatprep.subr.mxu0 0.0
    %1602 = vmatpush1.xpose.msra.mxu0 0.0
    %1603 = vmatprep.subr.mxu0 0.0
    %1604 = vmatpush1.xpose.msra.mxu0 0.0
    %1605 = vmatprep.subr.mxu0 0.0
    %1606 = vmatpush1.xpose.msra.mxu0 0.0
    %1607 = vmatprep.subr.mxu0 0.0
    %1608 = vmatpush1.xpose.msra.mxu0 0.0
    %1609 = vmatprep.subr.mxu0 0.0
    %1610 = vmatpush1.xpose.msra.mxu0 0.0
    %1611 = vmatprep.subr.mxu0 0.0
    %1612 = vmatpush1.xpose.msra.mxu0 0.0
    %1613 = vmatprep.subr.mxu0 0.0
    %1614 = vmatpush1.xpose.msra.mxu0 0.0
    %1615 = vmatprep.subr.mxu0 0.0
    %1616 = vmatpush1.xpose.msra.mxu0 0.0
    %1617 = vmatprep.subr.mxu0 0.0
    %1618 = vmatpush1.xpose.msra.mxu0 0.0
    %1619 = vmatprep.subr.mxu0 0.0
    %1620 = vmatpush1.xpose.msra.mxu0 0.0
    %1621 = vmatprep.subr.mxu0 0.0
    %1622 = vmatpush1.xpose.msra.mxu0 0.0
    %1623 = vmatprep.subr.mxu0 0.0
    %1624 = vmatpush1.xpose.msra.mxu0 0.0
    %1625 = vmatprep.subr.mxu0 0.0
    %1626 = vmatpush1.xpose.msra.mxu0 0.0
    %1627 = vmatprep.subr.mxu0 0.0
    %1628 = vmatpush1.xpose.msra.mxu0 0.0
    %1629 = vmatprep.subr.mxu0 0.0
    %1630 = vmatpush1.xpose.msra.mxu0 0.0
    %1631 = vmatprep.subr.mxu0 0.0
    %1632 = vmatpush1.xpose.msra.mxu0 0.0
    %1633 = vmatprep.subr.mxu0 0.0
    %1634 = vmatpush1.xpose.msra.mxu0 0.0
    %1635 = vmatprep.subr.mxu0 0.0
    %1636 = vmatpush1.xpose.msra.mxu0 0.0
    %1637 = vmatprep.subr.mxu0 0.0
    %1638 = vmatpush1.xpose.msra.mxu0 0.0
    %1639 = vmatprep.subr.mxu0 0.0
    %1640 = vmatpush1.xpose.msra.mxu0 0.0
    %1641 = vmatprep.mubr.f32.mxu0 0.0
    %1642 = vmatmul.mubr.f32.gmra.mrb[0].mxu0 %v1572
    %v1643 = vpop.f32.mrb[0].mxu0
    %v1644 = vadd.f32 0.0, %v1643
    %v1645 = vpop.f32.mrb[0].mxu0
    %1646 = vdwg.mxu0
    %v1647 = vsel %vm1038, %v1112, -inf
    %1648 = vmax.xlane.f32.xlu0 %v1647
    %v1649 = vpop.xlane.xlu0 %1648
    %v1650 = vsel %vm1038, %v1188, -inf
    %1651 = vmax.xlane.f32.xlu0 %v1650
    %v1652 = vpop.xlane.xlu0 %1651
    %v1653 = vsel %vm1038, %v1264, -inf
    %1654 = vmax.xlane.f32.xlu0 %v1653
    %v1655 = vpop.xlane.xlu0 %1654
    %v1656 = vsel %vm1038, %v1340, -inf
    %1657 = vmax.xlane.f32.xlu0 %v1656
    %v1658 = vpop.xlane.xlu0 %1657
    %v1659 = vsel %vm1038, %v1416, -inf
    %1660 = vmax.xlane.f32.xlu0 %v1659
    %v1661 = vpop.xlane.xlu0 %1660
    %v1662 = vsel %vm1038, %v1492, -inf
    %1663 = vmax.xlane.f32.xlu0 %v1662
    %v1664 = vpop.xlane.xlu0 %1663
    %v1665 = vsel %vm1038, %v1568, -inf
    %1666 = vmax.xlane.f32.xlu0 %v1665
    %v1667 = vpop.xlane.xlu0 %1666
    %v1668 = vsel %vm1038, %v1644, -inf
    %1669 = vmax.xlane.f32.xlu0 %v1668
    %v1670 = vpop.xlane.xlu0 %1669
    %v1671 = vsub.f32 %v1112, %v1649
    %v1672 = vsub.f32 %v1188, %v1652
    %v1673 = vsub.f32 %v1264, %v1655
    %v1674 = vsub.f32 %v1340, %v1658
    %v1675 = vsub.f32 %v1416, %v1661
    %v1676 = vsub.f32 %v1492, %v1664
    %v1677 = vsub.f32 %v1568, %v1667
    %v1678 = vsub.f32 %v1644, %v1670
    %v1679 = vmul.f32 %v1671, 1.442695
    %v1680 = vpow.pop %v1679
    %v1681 = vmul.f32 %v1672, 1.442695
    %v1682 = vpow.pop %v1681
    %v1683 = vmul.f32 %v1673, 1.442695
    %v1684 = vpow.pop %v1683
    %v1685 = vmul.f32 %v1674, 1.442695
    %v1686 = vpow.pop %v1685
    %v1687 = vmul.f32 %v1675, 1.442695
    %v1688 = vpow.pop %v1687
    %v1689 = vmul.f32 %v1676, 1.442695
    %v1690 = vpow.pop %v1689
    %v1691 = vmul.f32 %v1677, 1.442695
    %v1692 = vpow.pop %v1691
    %v1693 = vmul.f32 %v1678, 1.442695
    %v1694 = vpow.pop %v1693
    %v1695 = vsel %vm1038, %v1680, 0.0
    %1696 = vadd.xlane.f32.xlu0 %v1695
    %v1697 = vpop.xlane.xlu0 %1696
    %v1698 = vsel %vm1038, %v1682, 0.0
    %1699 = vadd.xlane.f32.xlu0 %v1698
    %v1700 = vpop.xlane.xlu0 %1699
    %v1701 = vsel %vm1038, %v1684, 0.0
    %1702 = vadd.xlane.f32.xlu0 %v1701
    %v1703 = vpop.xlane.xlu0 %1702
    %v1704 = vsel %vm1038, %v1686, 0.0
    %1705 = vadd.xlane.f32.xlu0 %v1704
    %v1706 = vpop.xlane.xlu0 %1705
    %v1707 = vsel %vm1038, %v1688, 0.0
    %1708 = vadd.xlane.f32.xlu0 %v1707
    %v1709 = vpop.xlane.xlu0 %1708
    %v1710 = vsel %vm1038, %v1690, 0.0
    %1711 = vadd.xlane.f32.xlu0 %v1710
    %v1712 = vpop.xlane.xlu0 %1711
    %v1713 = vsel %vm1038, %v1692, 0.0
    %1714 = vadd.xlane.f32.xlu0 %v1713
    %v1715 = vpop.xlane.xlu0 %1714
    %v1716 = vsel %vm1038, %v1694, 0.0
    %1717 = vadd.xlane.f32.xlu0 %v1716
    %v1718 = vpop.xlane.xlu0 %1717
    %v1719 = vrcp.pop %v1697
    %v1720 = vmul.f32 %v1680, %v1719
    %v1721 = vrcp.pop %v1700
    %v1722 = vmul.f32 %v1682, %v1721
    %v1723 = vrcp.pop %v1703
    %v1724 = vmul.f32 %v1684, %v1723
    %v1725 = vrcp.pop %v1706
    %v1726 = vmul.f32 %v1686, %v1725
    %v1727 = vrcp.pop %v1709
    %v1728 = vmul.f32 %v1688, %v1727
    %v1729 = vrcp.pop %v1712
    %v1730 = vmul.f32 %v1690, %v1729
    %v1731 = vrcp.pop %v1715
    %v1732 = vmul.f32 %v1692, %v1731
    %v1733 = vrcp.pop %v1718
    %v1734 = vmul.f32 %v1694, %v1733
    %v1736 = vsel %vm1038, %v1720, 0
    %1738 = vmatprep.subr.mxu0 0.0
    %1739 = vmatpush1.msra.mxu0 %v966
    %1740 = vmatprep.subr.mxu0 0.0
    %1741 = vmatpush1.msra.mxu0 0.0
    %1742 = vmatprep.subr.mxu0 0.0
    %1743 = vmatpush1.msra.mxu0 0.0
    %1744 = vmatprep.subr.mxu0 0.0
    %1745 = vmatpush1.msra.mxu0 0.0
    %1746 = vmatprep.subr.mxu0 0.0
    %1747 = vmatpush1.msra.mxu0 0.0
    %1748 = vmatprep.subr.mxu0 0.0
    %1749 = vmatpush1.msra.mxu0 0.0
    %1750 = vmatprep.subr.mxu0 0.0
    %1751 = vmatpush1.msra.mxu0 0.0
    %1752 = vmatprep.subr.mxu0 0.0
    %1753 = vmatpush1.msra.mxu0 0.0
    %1754 = vmatprep.subr.mxu0 0.0
    %1755 = vmatpush1.msra.mxu0 0.0
    %1756 = vmatprep.subr.mxu0 0.0
    %1757 = vmatpush1.msra.mxu0 0.0
    %1758 = vmatprep.subr.mxu0 0.0
    %1759 = vmatpush1.msra.mxu0 0.0
    %1760 = vmatprep.subr.mxu0 0.0
    %1761 = vmatpush1.msra.mxu0 0.0
    %1762 = vmatprep.subr.mxu0 0.0
    %1763 = vmatpush1.msra.mxu0 0.0
    %1764 = vmatprep.subr.mxu0 0.0
    %1765 = vmatpush1.msra.mxu0 0.0
    %1766 = vmatprep.subr.mxu0 0.0
    %1767 = vmatpush1.msra.mxu0 0.0
    %1768 = vmatprep.subr.mxu0 0.0
    %1769 = vmatpush1.msra.mxu0 0.0
    %1770 = vmatprep.subr.mxu0 0.0
    %1771 = vmatpush1.msra.mxu0 0.0
    %1772 = vmatprep.subr.mxu0 0.0
    %1773 = vmatpush1.msra.mxu0 0.0
    %1774 = vmatprep.subr.mxu0 0.0
    %1775 = vmatpush1.msra.mxu0 0.0
    %1776 = vmatprep.subr.mxu0 0.0
    %1777 = vmatpush1.msra.mxu0 0.0
    %1778 = vmatprep.subr.mxu0 0.0
    %1779 = vmatpush1.msra.mxu0 0.0
    %1780 = vmatprep.subr.mxu0 0.0
    %1781 = vmatpush1.msra.mxu0 0.0
    %1782 = vmatprep.subr.mxu0 0.0
    %1783 = vmatpush1.msra.mxu0 0.0
    %1784 = vmatprep.subr.mxu0 0.0
    %1785 = vmatpush1.msra.mxu0 0.0
    %1786 = vmatprep.subr.mxu0 0.0
    %1787 = vmatpush1.msra.mxu0 0.0
    %1788 = vmatprep.subr.mxu0 0.0
    %1789 = vmatpush1.msra.mxu0 0.0
    %1790 = vmatprep.subr.mxu0 0.0
    %1791 = vmatpush1.msra.mxu0 0.0
    %1792 = vmatprep.subr.mxu0 0.0
    %1793 = vmatpush1.msra.mxu0 0.0
    %1794 = vmatprep.subr.mxu0 0.0
    %1795 = vmatpush1.msra.mxu0 0.0
    %1796 = vmatprep.subr.mxu0 0.0
    %1797 = vmatpush1.msra.mxu0 0.0
    %1798 = vmatprep.subr.mxu0 0.0
    %1799 = vmatpush1.msra.mxu0 0.0
    %1800 = vmatprep.subr.mxu0 0.0
    %1801 = vmatpush1.msra.mxu0 0.0
    %1802 = vmatprep.mubr.f32.mxu0 0.0
    %1803 = vmatmul.mubr.f32.gmra.mrb[0].mxu0 %v1736
    %v1804 = vpop.f32.mrb[0].mxu0
    %v1805 = vadd.f32 0.0, %v1804
    %v1806 = vpop.f32.mrb[0].mxu0
    %1807 = vdwg.mxu0
    %v1809 = vsel %vm1038, %v1722, 0
    %1811 = vmatprep.subr.mxu0 0.0
    %1812 = vmatpush1.msra.mxu0 %v967
    %1813 = vmatprep.subr.mxu0 0.0
    %1814 = vmatpush1.msra.mxu0 0.0
    %1815 = vmatprep.subr.mxu0 0.0
    %1816 = vmatpush1.msra.mxu0 0.0
    %1817 = vmatprep.subr.mxu0 0.0
    %1818 = vmatpush1.msra.mxu0 0.0
    %1819 = vmatprep.subr.mxu0 0.0
    %1820 = vmatpush1.msra.mxu0 0.0
    %1821 = vmatprep.subr.mxu0 0.0
    %1822 = vmatpush1.msra.mxu0 0.0
    %1823 = vmatprep.subr.mxu0 0.0
    %1824 = vmatpush1.msra.mxu0 0.0
    %1825 = vmatprep.subr.mxu0 0.0
    %1826 = vmatpush1.msra.mxu0 0.0
    %1827 = vmatprep.subr.mxu0 0.0
    %1828 = vmatpush1.msra.mxu0 0.0
    %1829 = vmatprep.subr.mxu0 0.0
    %1830 = vmatpush1.msra.mxu0 0.0
    %1831 = vmatprep.subr.mxu0 0.0
    %1832 = vmatpush1.msra.mxu0 0.0
    %1833 = vmatprep.subr.mxu0 0.0
    %1834 = vmatpush1.msra.mxu0 0.0
    %1835 = vmatprep.subr.mxu0 0.0
    %1836 = vmatpush1.msra.mxu0 0.0
    %1837 = vmatprep.subr.mxu0 0.0
    %1838 = vmatpush1.msra.mxu0 0.0
    %1839 = vmatprep.subr.mxu0 0.0
    %1840 = vmatpush1.msra.mxu0 0.0
    %1841 = vmatprep.subr.mxu0 0.0
    %1842 = vmatpush1.msra.mxu0 0.0
    %1843 = vmatprep.subr.mxu0 0.0
    %1844 = vmatpush1.msra.mxu0 0.0
    %1845 = vmatprep.subr.mxu0 0.0
    %1846 = vmatpush1.msra.mxu0 0.0
    %1847 = vmatprep.subr.mxu0 0.0
    %1848 = vmatpush1.msra.mxu0 0.0
    %1849 = vmatprep.subr.mxu0 0.0
    %1850 = vmatpush1.msra.mxu0 0.0
    %1851 = vmatprep.subr.mxu0 0.0
    %1852 = vmatpush1.msra.mxu0 0.0
    %1853 = vmatprep.subr.mxu0 0.0
    %1854 = vmatpush1.msra.mxu0 0.0
    %1855 = vmatprep.subr.mxu0 0.0
    %1856 = vmatpush1.msra.mxu0 0.0
    %1857 = vmatprep.subr.mxu0 0.0
    %1858 = vmatpush1.msra.mxu0 0.0
    %1859 = vmatprep.subr.mxu0 0.0
    %1860 = vmatpush1.msra.mxu0 0.0
    %1861 = vmatprep.subr.mxu0 0.0
    %1862 = vmatpush1.msra.mxu0 0.0
    %1863 = vmatprep.subr.mxu0 0.0
    %1864 = vmatpush1.msra.mxu0 0.0
    %1865 = vmatprep.subr.mxu0 0.0
    %1866 = vmatpush1.msra.mxu0 0.0
    %1867 = vmatprep.subr.mxu0 0.0
    %1868 = vmatpush1.msra.mxu0 0.0
    %1869 = vmatprep.subr.mxu0 0.0
    %1870 = vmatpush1.msra.mxu0 0.0
    %1871 = vmatprep.subr.mxu0 0.0
    %1872 = vmatpush1.msra.mxu0 0.0
    %1873 = vmatprep.subr.mxu0 0.0
    %1874 = vmatpush1.msra.mxu0 0.0
    %1875 = vmatprep.mubr.f32.mxu0 0.0
    %1876 = vmatmul.mubr.f32.gmra.mrb[0].mxu0 %v1809
    %v1877 = vpop.f32.mrb[0].mxu0
    %v1878 = vadd.f32 0.0, %v1877
    %v1879 = vpop.f32.mrb[0].mxu0
    %1880 = vdwg.mxu0
    %v1882 = vsel %vm1038, %v1724, 0
    %1884 = vmatprep.subr.mxu0 0.0
    %1885 = vmatpush1.msra.mxu0 %v968
    %1886 = vmatprep.subr.mxu0 0.0
    %1887 = vmatpush1.msra.mxu0 0.0
    %1888 = vmatprep.subr.mxu0 0.0
    %1889 = vmatpush1.msra.mxu0 0.0
    %1890 = vmatprep.subr.mxu0 0.0
    %1891 = vmatpush1.msra.mxu0 0.0
    %1892 = vmatprep.subr.mxu0 0.0
    %1893 = vmatpush1.msra.mxu0 0.0
    %1894 = vmatprep.subr.mxu0 0.0
    %1895 = vmatpush1.msra.mxu0 0.0
    %1896 = vmatprep.subr.mxu0 0.0
    %1897 = vmatpush1.msra.mxu0 0.0
    %1898 = vmatprep.subr.mxu0 0.0
    %1899 = vmatpush1.msra.mxu0 0.0
    %1900 = vmatprep.subr.mxu0 0.0
    %1901 = vmatpush1.msra.mxu0 0.0
    %1902 = vmatprep.subr.mxu0 0.0
    %1903 = vmatpush1.msra.mxu0 0.0
    %1904 = vmatprep.subr.mxu0 0.0
    %1905 = vmatpush1.msra.mxu0 0.0
    %1906 = vmatprep.subr.mxu0 0.0
    %1907 = vmatpush1.msra.mxu0 0.0
    %1908 = vmatprep.subr.mxu0 0.0
    %1909 = vmatpush1.msra.mxu0 0.0
    %1910 = vmatprep.subr.mxu0 0.0
    %1911 = vmatpush1.msra.mxu0 0.0
    %1912 = vmatprep.subr.mxu0 0.0
    %1913 = vmatpush1.msra.mxu0 0.0
    %1914 = vmatprep.subr.mxu0 0.0
    %1915 = vmatpush1.msra.mxu0 0.0
    %1916 = vmatprep.subr.mxu0 0.0
    %1917 = vmatpush1.msra.mxu0 0.0
    %1918 = vmatprep.subr.mxu0 0.0
    %1919 = vmatpush1.msra.mxu0 0.0
    %1920 = vmatprep.subr.mxu0 0.0
    %1921 = vmatpush1.msra.mxu0 0.0
    %1922 = vmatprep.subr.mxu0 0.0
    %1923 = vmatpush1.msra.mxu0 0.0
    %1924 = vmatprep.subr.mxu0 0.0
    %1925 = vmatpush1.msra.mxu0 0.0
    %1926 = vmatprep.subr.mxu0 0.0
    %1927 = vmatpush1.msra.mxu0 0.0
    %1928 = vmatprep.subr.mxu0 0.0
    %1929 = vmatpush1.msra.mxu0 0.0
    %1930 = vmatprep.subr.mxu0 0.0
    %1931 = vmatpush1.msra.mxu0 0.0
    %1932 = vmatprep.subr.mxu0 0.0
    %1933 = vmatpush1.msra.mxu0 0.0
    %1934 = vmatprep.subr.mxu0 0.0
    %1935 = vmatpush1.msra.mxu0 0.0
    %1936 = vmatprep.subr.mxu0 0.0
    %1937 = vmatpush1.msra.mxu0 0.0
    %1938 = vmatprep.subr.mxu0 0.0
    %1939 = vmatpush1.msra.mxu0 0.0
    %1940 = vmatprep.subr.mxu0 0.0
    %1941 = vmatpush1.msra.mxu0 0.0
    %1942 = vmatprep.subr.mxu0 0.0
    %1943 = vmatpush1.msra.mxu0 0.0
    %1944 = vmatprep.subr.mxu0 0.0
    %1945 = vmatpush1.msra.mxu0 0.0
    %1946 = vmatprep.subr.mxu0 0.0
    %1947 = vmatpush1.msra.mxu0 0.0
    %1948 = vmatprep.mubr.f32.mxu0 0.0
    %1949 = vmatmul.mubr.f32.gmra.mrb[0].mxu0 %v1882
    %v1950 = vpop.f32.mrb[0].mxu0
    %v1951 = vadd.f32 0.0, %v1950
    %v1952 = vpop.f32.mrb[0].mxu0
    %1953 = vdwg.mxu0
    %v1955 = vsel %vm1038, %v1726, 0
    %1957 = vmatprep.subr.mxu0 0.0
    %1958 = vmatpush1.msra.mxu0 %v969
    %1959 = vmatprep.subr.mxu0 0.0
    %1960 = vmatpush1.msra.mxu0 0.0
    %1961 = vmatprep.subr.mxu0 0.0
    %1962 = vmatpush1.msra.mxu0 0.0
    %1963 = vmatprep.subr.mxu0 0.0
    %1964 = vmatpush1.msra.mxu0 0.0
    %1965 = vmatprep.subr.mxu0 0.0
    %1966 = vmatpush1.msra.mxu0 0.0
    %1967 = vmatprep.subr.mxu0 0.0
    %1968 = vmatpush1.msra.mxu0 0.0
    %1969 = vmatprep.subr.mxu0 0.0
    %1970 = vmatpush1.msra.mxu0 0.0
    %1971 = vmatprep.subr.mxu0 0.0
    %1972 = vmatpush1.msra.mxu0 0.0
    %1973 = vmatprep.subr.mxu0 0.0
    %1974 = vmatpush1.msra.mxu0 0.0
    %1975 = vmatprep.subr.mxu0 0.0
    %1976 = vmatpush1.msra.mxu0 0.0
    %1977 = vmatprep.subr.mxu0 0.0
    %1978 = vmatpush1.msra.mxu0 0.0
    %1979 = vmatprep.subr.mxu0 0.0
    %1980 = vmatpush1.msra.mxu0 0.0
    %1981 = vmatprep.subr.mxu0 0.0
    %1982 = vmatpush1.msra.mxu0 0.0
    %1983 = vmatprep.subr.mxu0 0.0
    %1984 = vmatpush1.msra.mxu0 0.0
    %1985 = vmatprep.subr.mxu0 0.0
    %1986 = vmatpush1.msra.mxu0 0.0
    %1987 = vmatprep.subr.mxu0 0.0
    %1988 = vmatpush1.msra.mxu0 0.0
    %1989 = vmatprep.subr.mxu0 0.0
    %1990 = vmatpush1.msra.mxu0 0.0
    %1991 = vmatprep.subr.mxu0 0.0
    %1992 = vmatpush1.msra.mxu0 0.0
    %1993 = vmatprep.subr.mxu0 0.0
    %1994 = vmatpush1.msra.mxu0 0.0
    %1995 = vmatprep.subr.mxu0 0.0
    %1996 = vmatpush1.msra.mxu0 0.0
    %1997 = vmatprep.subr.mxu0 0.0
    %1998 = vmatpush1.msra.mxu0 0.0
    %1999 = vmatprep.subr.mxu0 0.0
    %2000 = vmatpush1.msra.mxu0 0.0
    %2001 = vmatprep.subr.mxu0 0.0
    %2002 = vmatpush1.msra.mxu0 0.0
    %2003 = vmatprep.subr.mxu0 0.0
    %2004 = vmatpush1.msra.mxu0 0.0
    %2005 = vmatprep.subr.mxu0 0.0
    %2006 = vmatpush1.msra.mxu0 0.0
    %2007 = vmatprep.subr.mxu0 0.0
    %2008 = vmatpush1.msra.mxu0 0.0
    %2009 = vmatprep.subr.mxu0 0.0
    %2010 = vmatpush1.msra.mxu0 0.0
    %2011 = vmatprep.subr.mxu0 0.0
    %2012 = vmatpush1.msra.mxu0 0.0
    %2013 = vmatprep.subr.mxu0 0.0
    %2014 = vmatpush1.msra.mxu0 0.0
    %2015 = vmatprep.subr.mxu0 0.0
    %2016 = vmatpush1.msra.mxu0 0.0
    %2017 = vmatprep.subr.mxu0 0.0
    %2018 = vmatpush1.msra.mxu0 0.0
    %2019 = vmatprep.subr.mxu0 0.0
    %2020 = vmatpush1.msra.mxu0 0.0
    %2021 = vmatprep.mubr.f32.mxu0 0.0
    %2022 = vmatmul.mubr.f32.gmra.mrb[0].mxu0 %v1955
    %v2023 = vpop.f32.mrb[0].mxu0
    %v2024 = vadd.f32 0.0, %v2023
    %v2025 = vpop.f32.mrb[0].mxu0
    %2026 = vdwg.mxu0
    %v2028 = vsel %vm1038, %v1728, 0
    %2030 = vmatprep.subr.mxu0 0.0
    %2031 = vmatpush1.msra.mxu0 %v1034
    %2032 = vmatprep.subr.mxu0 0.0
    %2033 = vmatpush1.msra.mxu0 0.0
    %2034 = vmatprep.subr.mxu0 0.0
    %2035 = vmatpush1.msra.mxu0 0.0
    %2036 = vmatprep.subr.mxu0 0.0
    %2037 = vmatpush1.msra.mxu0 0.0
    %2038 = vmatprep.subr.mxu0 0.0
    %2039 = vmatpush1.msra.mxu0 0.0
    %2040 = vmatprep.subr.mxu0 0.0
    %2041 = vmatpush1.msra.mxu0 0.0
    %2042 = vmatprep.subr.mxu0 0.0
    %2043 = vmatpush1.msra.mxu0 0.0
    %2044 = vmatprep.subr.mxu0 0.0
    %2045 = vmatpush1.msra.mxu0 0.0
    %2046 = vmatprep.subr.mxu0 0.0
    %2047 = vmatpush1.msra.mxu0 0.0
    %2048 = vmatprep.subr.mxu0 0.0
    %2049 = vmatpush1.msra.mxu0 0.0
    %2050 = vmatprep.subr.mxu0 0.0
    %2051 = vmatpush1.msra.mxu0 0.0
    %2052 = vmatprep.subr.mxu0 0.0
    %2053 = vmatpush1.msra.mxu0 0.0
    %2054 = vmatprep.subr.mxu0 0.0
    %2055 = vmatpush1.msra.mxu0 0.0
    %2056 = vmatprep.subr.mxu0 0.0
    %2057 = vmatpush1.msra.mxu0 0.0
    %2058 = vmatprep.subr.mxu0 0.0
    %2059 = vmatpush1.msra.mxu0 0.0
    %2060 = vmatprep.subr.mxu0 0.0
    %2061 = vmatpush1.msra.mxu0 0.0
    %2062 = vmatprep.subr.mxu0 0.0
    %2063 = vmatpush1.msra.mxu0 0.0
    %2064 = vmatprep.subr.mxu0 0.0
    %2065 = vmatpush1.msra.mxu0 0.0
    %2066 = vmatprep.subr.mxu0 0.0
    %2067 = vmatpush1.msra.mxu0 0.0
    %2068 = vmatprep.subr.mxu0 0.0
    %2069 = vmatpush1.msra.mxu0 0.0
    %2070 = vmatprep.subr.mxu0 0.0
    %2071 = vmatpush1.msra.mxu0 0.0
    %2072 = vmatprep.subr.mxu0 0.0
    %2073 = vmatpush1.msra.mxu0 0.0
    %2074 = vmatprep.subr.mxu0 0.0
    %2075 = vmatpush1.msra.mxu0 0.0
    %2076 = vmatprep.subr.mxu0 0.0
    %2077 = vmatpush1.msra.mxu0 0.0
    %2078 = vmatprep.subr.mxu0 0.0
    %2079 = vmatpush1.msra.mxu0 0.0
    %2080 = vmatprep.subr.mxu0 0.0
    %2081 = vmatpush1.msra.mxu0 0.0
    %2082 = vmatprep.subr.mxu0 0.0
    %2083 = vmatpush1.msra.mxu0 0.0
    %2084 = vmatprep.subr.mxu0 0.0
    %2085 = vmatpush1.msra.mxu0 0.0
    %2086 = vmatprep.subr.mxu0 0.0
    %2087 = vmatpush1.msra.mxu0 0.0
    %2088 = vmatprep.subr.mxu0 0.0
    %2089 = vmatpush1.msra.mxu0 0.0
    %2090 = vmatprep.subr.mxu0 0.0
    %2091 = vmatpush1.msra.mxu0 0.0
    %2092 = vmatprep.subr.mxu0 0.0
    %2093 = vmatpush1.msra.mxu0 0.0
    %2094 = vmatprep.mubr.f32.mxu0 0.0
    %2095 = vmatmul.mubr.f32.gmra.mrb[0].mxu0 %v2028
    %v2096 = vpop.f32.mrb[0].mxu0
    %v2097 = vadd.f32 0.0, %v2096
    %v2098 = vpop.f32.mrb[0].mxu0
    %2099 = vdwg.mxu0
    %v2101 = vsel %vm1038, %v1730, 0
    %2103 = vmatprep.subr.mxu0 0.0
    %2104 = vmatpush1.msra.mxu0 %v1035
    %2105 = vmatprep.subr.mxu0 0.0
    %2106 = vmatpush1.msra.mxu0 0.0
    %2107 = vmatprep.subr.mxu0 0.0
    %2108 = vmatpush1.msra.mxu0 0.0
    %2109 = vmatprep.subr.mxu0 0.0
    %2110 = vmatpush1.msra.mxu0 0.0
    %2111 = vmatprep.subr.mxu0 0.0
    %2112 = vmatpush1.msra.mxu0 0.0
    %2113 = vmatprep.subr.mxu0 0.0
    %2114 = vmatpush1.msra.mxu0 0.0
    %2115 = vmatprep.subr.mxu0 0.0
    %2116 = vmatpush1.msra.mxu0 0.0
    %2117 = vmatprep.subr.mxu0 0.0
    %2118 = vmatpush1.msra.mxu0 0.0
    %2119 = vmatprep.subr.mxu0 0.0
    %2120 = vmatpush1.msra.mxu0 0.0
    %2121 = vmatprep.subr.mxu0 0.0
    %2122 = vmatpush1.msra.mxu0 0.0
    %2123 = vmatprep.subr.mxu0 0.0
    %2124 = vmatpush1.msra.mxu0 0.0
    %2125 = vmatprep.subr.mxu0 0.0
    %2126 = vmatpush1.msra.mxu0 0.0
    %2127 = vmatprep.subr.mxu0 0.0
    %2128 = vmatpush1.msra.mxu0 0.0
    %2129 = vmatprep.subr.mxu0 0.0
    %2130 = vmatpush1.msra.mxu0 0.0
    %2131 = vmatprep.subr.mxu0 0.0
    %2132 = vmatpush1.msra.mxu0 0.0
    %2133 = vmatprep.subr.mxu0 0.0
    %2134 = vmatpush1.msra.mxu0 0.0
    %2135 = vmatprep.subr.mxu0 0.0
    %2136 = vmatpush1.msra.mxu0 0.0
    %2137 = vmatprep.subr.mxu0 0.0
    %2138 = vmatpush1.msra.mxu0 0.0
    %2139 = vmatprep.subr.mxu0 0.0
    %2140 = vmatpush1.msra.mxu0 0.0
    %2141 = vmatprep.subr.mxu0 0.0
    %2142 = vmatpush1.msra.mxu0 0.0
    %2143 = vmatprep.subr.mxu0 0.0
    %2144 = vmatpush1.msra.mxu0 0.0
    %2145 = vmatprep.subr.mxu0 0.0
    %2146 = vmatpush1.msra.mxu0 0.0
    %2147 = vmatprep.subr.mxu0 0.0
    %2148 = vmatpush1.msra.mxu0 0.0
    %2149 = vmatprep.subr.mxu0 0.0
    %2150 = vmatpush1.msra.mxu0 0.0
    %2151 = vmatprep.subr.mxu0 0.0
    %2152 = vmatpush1.msra.mxu0 0.0
    %2153 = vmatprep.subr.mxu0 0.0
    %2154 = vmatpush1.msra.mxu0 0.0
    %2155 = vmatprep.subr.mxu0 0.0
    %2156 = vmatpush1.msra.mxu0 0.0
    %2157 = vmatprep.subr.mxu0 0.0
    %2158 = vmatpush1.msra.mxu0 0.0
    %2159 = vmatprep.subr.mxu0 0.0
    %2160 = vmatpush1.msra.mxu0 0.0
    %2161 = vmatprep.subr.mxu0 0.0
    %2162 = vmatpush1.msra.mxu0 0.0
    %2163 = vmatprep.subr.mxu0 0.0
    %2164 = vmatpush1.msra.mxu0 0.0
    %2165 = vmatprep.subr.mxu0 0.0
    %2166 = vmatpush1.msra.mxu0 0.0
    %2167 = vmatprep.mubr.f32.mxu0 0.0
    %2168 = vmatmul.mubr.f32.gmra.mrb[0].mxu0 %v2101
    %v2169 = vpop.f32.mrb[0].mxu0
    %v2170 = vadd.f32 0.0, %v2169
    %v2171 = vpop.f32.mrb[0].mxu0
    %2172 = vdwg.mxu0
    %v2174 = vsel %vm1038, %v1732, 0
    %2176 = vmatprep.subr.mxu0 0.0
    %2177 = vmatpush1.msra.mxu0 %v1036
    %2178 = vmatprep.subr.mxu0 0.0
    %2179 = vmatpush1.msra.mxu0 0.0
    %2180 = vmatprep.subr.mxu0 0.0
    %2181 = vmatpush1.msra.mxu0 0.0
    %2182 = vmatprep.subr.mxu0 0.0
    %2183 = vmatpush1.msra.mxu0 0.0
    %2184 = vmatprep.subr.mxu0 0.0
    %2185 = vmatpush1.msra.mxu0 0.0
    %2186 = vmatprep.subr.mxu0 0.0
    %2187 = vmatpush1.msra.mxu0 0.0
    %2188 = vmatprep.subr.mxu0 0.0
    %2189 = vmatpush1.msra.mxu0 0.0
    %2190 = vmatprep.subr.mxu0 0.0
    %2191 = vmatpush1.msra.mxu0 0.0
    %2192 = vmatprep.subr.mxu0 0.0
    %2193 = vmatpush1.msra.mxu0 0.0
    %2194 = vmatprep.subr.mxu0 0.0
    %2195 = vmatpush1.msra.mxu0 0.0
    %2196 = vmatprep.subr.mxu0 0.0
    %2197 = vmatpush1.msra.mxu0 0.0
    %2198 = vmatprep.subr.mxu0 0.0
    %2199 = vmatpush1.msra.mxu0 0.0
    %2200 = vmatprep.subr.mxu0 0.0
    %2201 = vmatpush1.msra.mxu0 0.0
    %2202 = vmatprep.subr.mxu0 0.0
    %2203 = vmatpush1.msra.mxu0 0.0
    %2204 = vmatprep.subr.mxu0 0.0
    %2205 = vmatpush1.msra.mxu0 0.0
    %2206 = vmatprep.subr.mxu0 0.0
    %2207 = vmatpush1.msra.mxu0 0.0
    %2208 = vmatprep.subr.mxu0 0.0
    %2209 = vmatpush1.msra.mxu0 0.0
    %2210 = vmatprep.subr.mxu0 0.0
    %2211 = vmatpush1.msra.mxu0 0.0
    %2212 = vmatprep.subr.mxu0 0.0
    %2213 = vmatpush1.msra.mxu0 0.0
    %2214 = vmatprep.subr.mxu0 0.0
    %2215 = vmatpush1.msra.mxu0 0.0
    %2216 = vmatprep.subr.mxu0 0.0
    %2217 = vmatpush1.msra.mxu0 0.0
    %2218 = vmatprep.subr.mxu0 0.0
    %2219 = vmatpush1.msra.mxu0 0.0
    %2220 = vmatprep.subr.mxu0 0.0
    %2221 = vmatpush1.msra.mxu0 0.0
    %2222 = vmatprep.subr.mxu0 0.0
    %2223 = vmatpush1.msra.mxu0 0.0
    %2224 = vmatprep.subr.mxu0 0.0
    %2225 = vmatpush1.msra.mxu0 0.0
    %2226 = vmatprep.subr.mxu0 0.0
    %2227 = vmatpush1.msra.mxu0 0.0
    %2228 = vmatprep.subr.mxu0 0.0
    %2229 = vmatpush1.msra.mxu0 0.0
    %2230 = vmatprep.subr.mxu0 0.0
    %2231 = vmatpush1.msra.mxu0 0.0
    %2232 = vmatprep.subr.mxu0 0.0
    %2233 = vmatpush1.msra.mxu0 0.0
    %2234 = vmatprep.subr.mxu0 0.0
    %2235 = vmatpush1.msra.mxu0 0.0
    %2236 = vmatprep.subr.mxu0 0.0
    %2237 = vmatpush1.msra.mxu0 0.0
    %2238 = vmatprep.subr.mxu0 0.0
    %2239 = vmatpush1.msra.mxu0 0.0
    %2240 = vmatprep.mubr.f32.mxu0 0.0
    %2241 = vmatmul.mubr.f32.gmra.mrb[0].mxu0 %v2174
    %v2242 = vpop.f32.mrb[0].mxu0
    %v2243 = vadd.f32 0.0, %v2242
    %v2244 = vpop.f32.mrb[0].mxu0
    %2245 = vdwg.mxu0
    %v2247 = vsel %vm1038, %v1734, 0
    %2249 = vmatprep.subr.mxu0 0.0
    %2250 = vmatpush1.msra.mxu0 %v1037
    %2251 = vmatprep.subr.mxu0 0.0
    %2252 = vmatpush1.msra.mxu0 0.0
    %2253 = vmatprep.subr.mxu0 0.0
    %2254 = vmatpush1.msra.mxu0 0.0
    %2255 = vmatprep.subr.mxu0 0.0
    %2256 = vmatpush1.msra.mxu0 0.0
    %2257 = vmatprep.subr.mxu0 0.0
    %2258 = vmatpush1.msra.mxu0 0.0
    %2259 = vmatprep.subr.mxu0 0.0
    %2260 = vmatpush1.msra.mxu0 0.0
    %2261 = vmatprep.subr.mxu0 0.0
    %2262 = vmatpush1.msra.mxu0 0.0
    %2263 = vmatprep.subr.mxu0 0.0
    %2264 = vmatpush1.msra.mxu0 0.0
    %2265 = vmatprep.subr.mxu0 0.0
    %2266 = vmatpush1.msra.mxu0 0.0
    %2267 = vmatprep.subr.mxu0 0.0
    %2268 = vmatpush1.msra.mxu0 0.0
    %2269 = vmatprep.subr.mxu0 0.0
    %2270 = vmatpush1.msra.mxu0 0.0
    %2271 = vmatprep.subr.mxu0 0.0
    %2272 = vmatpush1.msra.mxu0 0.0
    %2273 = vmatprep.subr.mxu0 0.0
    %2274 = vmatpush1.msra.mxu0 0.0
    %2275 = vmatprep.subr.mxu0 0.0
    %2276 = vmatpush1.msra.mxu0 0.0
    %2277 = vmatprep.subr.mxu0 0.0
    %2278 = vmatpush1.msra.mxu0 0.0
    %2279 = vmatprep.subr.mxu0 0.0
    %2280 = vmatpush1.msra.mxu0 0.0
    %2281 = vmatprep.subr.mxu0 0.0
    %2282 = vmatpush1.msra.mxu0 0.0
    %2283 = vmatprep.subr.mxu0 0.0
    %2284 = vmatpush1.msra.mxu0 0.0
    %2285 = vmatprep.subr.mxu0 0.0
    %2286 = vmatpush1.msra.mxu0 0.0
    %2287 = vmatprep.subr.mxu0 0.0
    %2288 = vmatpush1.msra.mxu0 0.0
    %2289 = vmatprep.subr.mxu0 0.0
    %2290 = vmatpush1.msra.mxu0 0.0
    %2291 = vmatprep.subr.mxu0 0.0
    %2292 = vmatpush1.msra.mxu0 0.0
    %2293 = vmatprep.subr.mxu0 0.0
    %2294 = vmatpush1.msra.mxu0 0.0
    %2295 = vmatprep.subr.mxu0 0.0
    %2296 = vmatpush1.msra.mxu0 0.0
    %2297 = vmatprep.subr.mxu0 0.0
    %2298 = vmatpush1.msra.mxu0 0.0
    %2299 = vmatprep.subr.mxu0 0.0
    %2300 = vmatpush1.msra.mxu0 0.0
    %2301 = vmatprep.subr.mxu0 0.0
    %2302 = vmatpush1.msra.mxu0 0.0
    %2303 = vmatprep.subr.mxu0 0.0
    %2304 = vmatpush1.msra.mxu0 0.0
    %2305 = vmatprep.subr.mxu0 0.0
    %2306 = vmatpush1.msra.mxu0 0.0
    %2307 = vmatprep.subr.mxu0 0.0
    %2308 = vmatpush1.msra.mxu0 0.0
    %2309 = vmatprep.subr.mxu0 0.0
    %2310 = vmatpush1.msra.mxu0 0.0
    %2311 = vmatprep.subr.mxu0 0.0
    %2312 = vmatpush1.msra.mxu0 0.0
    %2313 = vmatprep.mubr.f32.mxu0 0.0
    %2314 = vmatmul.mubr.f32.gmra.mrb[0].mxu0 %v2247
    %v2315 = vpop.f32.mrb[0].mxu0
    %v2316 = vadd.f32 0.0, %v2315
    %v2317 = vpop.f32.mrb[0].mxu0
    %2318 = vdwg.mxu0
    %v2319 = vcombine.low %v1805, %v1951
    %v2320 = vcombine.high %v1805, %v1951
    %v2322 = vunpack.c.l.s4 1983009808
    %v2323 = vunpack.c.0.s8 %v2322
    %v2324 = vlaneseq
    %v2325 = vshrl.u32 %v2324, 7
    %v2326 = vsub.s32 %v2323, %v2325
    %v2327 = vrot.slane %v2319, %v2326
    %v2329 = vunpack.c.l.s4 1983009808
    %v2330 = vunpack.c.0.s8 %v2329
    %v2331 = vlaneseq
    %v2332 = vshrl.u32 %v2331, 7
    %v2333 = vsub.s32 %v2330, %v2332
    %v2334 = vrot.slane %v2320, %v2333
    %v2335 = vcombine.low %v1878, %v2024
    %v2336 = vcombine.high %v1878, %v2024
    %v2338 = vunpack.c.l.s4 1983009808
    %v2339 = vunpack.c.0.s8 %v2338
    %v2340 = vlaneseq
    %v2341 = vshrl.u32 %v2340, 7
    %v2342 = vsub.s32 %v2339, %v2341
    %v2343 = vrot.slane %v2335, %v2342
    %v2345 = vunpack.c.l.s4 1983009808
    %v2346 = vunpack.c.0.s8 %v2345
    %v2347 = vlaneseq
    %v2348 = vshrl.u32 %v2347, 7
    %v2349 = vsub.s32 %v2346, %v2348
    %v2350 = vrot.slane %v2336, %v2349
    %v2351 = vcombine.low %v2327, %v2343
    %v2352 = vcombine.high %v2327, %v2343
    %v2354 = vunpack.c.l.s4 1934713408
    %v2355 = vunpack.c.0.s8 %v2354
    %v2356 = vlaneseq
    %v2357 = vshrl.u32 %v2356, 7
    %v2358 = vsub.s32 %v2355, %v2357
    %v2359 = vrot.slane %v2351, %v2358
    %v2361 = vunpack.c.l.s4 1934713408
    %v2362 = vunpack.c.0.s8 %v2361
    %v2363 = vlaneseq
    %v2364 = vshrl.u32 %v2363, 7
    %v2365 = vsub.s32 %v2362, %v2364
    %v2366 = vrot.slane %v2352, %v2365
    %v2367 = vcombine.low %v2334, %v2350
    %v2368 = vcombine.high %v2334, %v2350
    %v2370 = vunpack.c.l.s4 1934713408
    %v2371 = vunpack.c.0.s8 %v2370
    %v2372 = vlaneseq
    %v2373 = vshrl.u32 %v2372, 7
    %v2374 = vsub.s32 %v2371, %v2373
    %v2375 = vrot.slane %v2367, %v2374
    %v2377 = vunpack.c.l.s4 1934713408
    %v2378 = vunpack.c.0.s8 %v2377
    %v2379 = vlaneseq
    %v2380 = vshrl.u32 %v2379, 7
    %v2381 = vsub.s32 %v2378, %v2380
    %v2382 = vrot.slane %v2368, %v2381
    %v2383 = vcombine.high %v2359, 0.0
    %v2384 = vcombine.high %v2366, 0.0
    %v2385 = vcombine.high %v2375, 0.0
    %v2386 = vcombine.high %v2382, 0.0
    %v2387 = vcombine.low %v2097, %v2243
    %v2388 = vcombine.high %v2097, %v2243
    %v2390 = vunpack.c.l.s4 1983009808
    %v2391 = vunpack.c.0.s8 %v2390
    %v2392 = vlaneseq
    %v2393 = vshrl.u32 %v2392, 7
    %v2394 = vsub.s32 %v2391, %v2393
    %v2395 = vrot.slane %v2387, %v2394
    %v2397 = vunpack.c.l.s4 1983009808
    %v2398 = vunpack.c.0.s8 %v2397
    %v2399 = vlaneseq
    %v2400 = vshrl.u32 %v2399, 7
    %v2401 = vsub.s32 %v2398, %v2400
    %v2402 = vrot.slane %v2388, %v2401
    %v2403 = vcombine.low %v2170, %v2316
    %v2404 = vcombine.high %v2170, %v2316
    %v2406 = vunpack.c.l.s4 1983009808
    %v2407 = vunpack.c.0.s8 %v2406
    %v2408 = vlaneseq
    %v2409 = vshrl.u32 %v2408, 7
    %v2410 = vsub.s32 %v2407, %v2409
    %v2411 = vrot.slane %v2403, %v2410
    %v2413 = vunpack.c.l.s4 1983009808
    %v2414 = vunpack.c.0.s8 %v2413
    %v2415 = vlaneseq
    %v2416 = vshrl.u32 %v2415, 7
    %v2417 = vsub.s32 %v2414, %v2416
    %v2418 = vrot.slane %v2404, %v2417
    %v2419 = vcombine.low %v2395, %v2411
    %v2420 = vcombine.high %v2395, %v2411
    %v2422 = vunpack.c.l.s4 1934713408
    %v2423 = vunpack.c.0.s8 %v2422
    %v2424 = vlaneseq
    %v2425 = vshrl.u32 %v2424, 7
    %v2426 = vsub.s32 %v2423, %v2425
    %v2427 = vrot.slane %v2419, %v2426
    %v2429 = vunpack.c.l.s4 1934713408
    %v2430 = vunpack.c.0.s8 %v2429
    %v2431 = vlaneseq
    %v2432 = vshrl.u32 %v2431, 7
    %v2433 = vsub.s32 %v2430, %v2432
    %v2434 = vrot.slane %v2420, %v2433
    %v2435 = vcombine.low %v2402, %v2418
    %v2436 = vcombine.high %v2402, %v2418
    %v2438 = vunpack.c.l.s4 1934713408
    %v2439 = vunpack.c.0.s8 %v2438
    %v2440 = vlaneseq
    %v2441 = vshrl.u32 %v2440, 7
    %v2442 = vsub.s32 %v2439, %v2441
    %v2443 = vrot.slane %v2435, %v2442
    %v2445 = vunpack.c.l.s4 1934713408
    %v2446 = vunpack.c.0.s8 %v2445
    %v2447 = vlaneseq
    %v2448 = vshrl.u32 %v2447, 7
    %v2449 = vsub.s32 %v2446, %v2448
    %v2450 = vrot.slane %v2436, %v2449
    %v2451 = vcombine.high %v2427, 0.0
    %v2452 = vcombine.high %v2434, 0.0
    %v2453 = vcombine.high %v2443, 0.0
    %v2454 = vcombine.high %v2450, 0.0
    %v2455 = vcombine.low %v2359, %v2366
    %v2457 = vunpack.c.l.s4 1983009808
    %v2458 = vunpack.c.0.s8 %v2457
    %v2459 = vlaneseq
    %v2460 = vshrl.u32 %v2459, 7
    %v2461 = vsub.s32 %v2458, %v2460
    %v2462 = vrot.slane %v2455, %v2461
    %v2463 = vcombine.low %v2383, %v2384
    %v2465 = vunpack.c.l.s4 1983009808
    %v2466 = vunpack.c.0.s8 %v2465
    %v2467 = vlaneseq
    %v2468 = vshrl.u32 %v2467, 7
    %v2469 = vsub.s32 %v2466, %v2468
    %v2470 = vrot.slane %v2463, %v2469
    %v2471 = vcombine.low %v2375, %v2382
    %v2473 = vunpack.c.l.s4 1983009808
    %v2474 = vunpack.c.0.s8 %v2473
    %v2475 = vlaneseq
    %v2476 = vshrl.u32 %v2475, 7
    %v2477 = vsub.s32 %v2474, %v2476
    %v2478 = vrot.slane %v2471, %v2477
    %v2479 = vcombine.low %v2385, %v2386
    %v2481 = vunpack.c.l.s4 1983009808
    %v2482 = vunpack.c.0.s8 %v2481
    %v2483 = vlaneseq
    %v2484 = vshrl.u32 %v2483, 7
    %v2485 = vsub.s32 %v2482, %v2484
    %v2486 = vrot.slane %v2479, %v2485
    %v2487 = vcombine.low %v2462, %v2470
    %v2488 = vcombine.high %v2462, %v2470
    %v2490 = vunpack.c.l.s4 1934713408
    %v2491 = vunpack.c.0.s8 %v2490
    %v2492 = vlaneseq
    %v2493 = vshrl.u32 %v2492, 7
    %v2494 = vsub.s32 %v2491, %v2493
    %v2495 = vrot.slane %v2487, %v2494
    %v2497 = vunpack.c.l.s4 1934713408
    %v2498 = vunpack.c.0.s8 %v2497
    %v2499 = vlaneseq
    %v2500 = vshrl.u32 %v2499, 7
    %v2501 = vsub.s32 %v2498, %v2500
    %v2502 = vrot.slane %v2488, %v2501
    %v2503 = vcombine.low %v2478, %v2486
    %v2504 = vcombine.high %v2478, %v2486
    %v2506 = vunpack.c.l.s4 1934713408
    %v2507 = vunpack.c.0.s8 %v2506
    %v2508 = vlaneseq
    %v2509 = vshrl.u32 %v2508, 7
    %v2510 = vsub.s32 %v2507, %v2509
    %v2511 = vrot.slane %v2503, %v2510
    %v2513 = vunpack.c.l.s4 1934713408
    %v2514 = vunpack.c.0.s8 %v2513
    %v2515 = vlaneseq
    %v2516 = vshrl.u32 %v2515, 7
    %v2517 = vsub.s32 %v2514, %v2516
    %v2518 = vrot.slane %v2504, %v2517
    %v2519 = vcombine.low %v2495, %v2511
    %v2520 = vcombine.high %v2495, %v2511
    %v2521 = vcombine.low %v2502, %v2518
    %v2522 = vcombine.high %v2502, %v2518
    %v2523 = vcombine.low %v2427, %v2434
    %v2525 = vunpack.c.l.s4 1983009808
    %v2526 = vunpack.c.0.s8 %v2525
    %v2527 = vlaneseq
    %v2528 = vshrl.u32 %v2527, 7
    %v2529 = vsub.s32 %v2526, %v2528
    %v2530 = vrot.slane %v2523, %v2529
    %v2531 = vcombine.low %v2451, %v2452
    %v2533 = vunpack.c.l.s4 1983009808
    %v2534 = vunpack.c.0.s8 %v2533
    %v2535 = vlaneseq
    %v2536 = vshrl.u32 %v2535, 7
    %v2537 = vsub.s32 %v2534, %v2536
    %v2538 = vrot.slane %v2531, %v2537
    %v2539 = vcombine.low %v2443, %v2450
    %v2541 = vunpack.c.l.s4 1983009808
    %v2542 = vunpack.c.0.s8 %v2541
    %v2543 = vlaneseq
    %v2544 = vshrl.u32 %v2543, 7
    %v2545 = vsub.s32 %v2542, %v2544
    %v2546 = vrot.slane %v2539, %v2545
    %v2547 = vcombine.low %v2453, %v2454
    %v2549 = vunpack.c.l.s4 1983009808
    %v2550 = vunpack.c.0.s8 %v2549
    %v2551 = vlaneseq
    %v2552 = vshrl.u32 %v2551, 7
    %v2553 = vsub.s32 %v2550, %v2552
    %v2554 = vrot.slane %v2547, %v2553
    %v2555 = vcombine.low %v2530, %v2538
    %v2556 = vcombine.high %v2530, %v2538
    %v2558 = vunpack.c.l.s4 1934713408
    %v2559 = vunpack.c.0.s8 %v2558
    %v2560 = vlaneseq
    %v2561 = vshrl.u32 %v2560, 7
    %v2562 = vsub.s32 %v2559, %v2561
    %v2563 = vrot.slane %v2555, %v2562
    %v2565 = vunpack.c.l.s4 1934713408
    %v2566 = vunpack.c.0.s8 %v2565
    %v2567 = vlaneseq
    %v2568 = vshrl.u32 %v2567, 7
    %v2569 = vsub.s32 %v2566, %v2568
    %v2570 = vrot.slane %v2556, %v2569
    %v2571 = vcombine.low %v2546, %v2554
    %v2572 = vcombine.high %v2546, %v2554
    %v2574 = vunpack.c.l.s4 1934713408
    %v2575 = vunpack.c.0.s8 %v2574
    %v2576 = vlaneseq
    %v2577 = vshrl.u32 %v2576, 7
    %v2578 = vsub.s32 %v2575, %v2577
    %v2579 = vrot.slane %v2571, %v2578
    %v2581 = vunpack.c.l.s4 1934713408
    %v2582 = vunpack.c.0.s8 %v2581
    %v2583 = vlaneseq
    %v2584 = vshrl.u32 %v2583, 7
    %v2585 = vsub.s32 %v2582, %v2584
    %v2586 = vrot.slane %v2572, %v2585
    %v2587 = vcombine.low %v2563, %v2579
    %v2588 = vcombine.high %v2563, %v2579
    %v2589 = vcombine.low %v2570, %v2586
    %v2590 = vcombine.high %v2570, %v2586
    %2593 = vrot.lane.b32.xlu0 %v2520, 8
    %v2594 = vpop.permute.xlu0 %2593
    %2595 = vrot.lane.b32.xlu0 %v2588, 8
    %v2596 = vpop.permute.xlu0 %2595
    %2601 = vrot.lane.b32.xlu0 %v2521, 16
    %v2602 = vpop.permute.xlu0 %2601
    %2603 = vrot.lane.b32.xlu0 %v2589, 16
    %v2604 = vpop.permute.xlu0 %2603
    %2609 = vrot.lane.b32.xlu0 %v2522, 24
    %v2610 = vpop.permute.xlu0 %2609
    %2611 = vrot.lane.b32.xlu0 %v2590, 24
    %v2612 = vpop.permute.xlu0 %2611
    %v2615 = vsel %vm1038, %v2519, %v2594
    %v2616 = vsel %vm1038, %v2587, %v2596
    %vm2617 = vcmask 130048
    %v2618 = vsel %vm2617, %v2615, %v2602
    %v2619 = vsel %vm2617, %v2616, %v2604
    %vm2620 = vcmask 195584
    %v2621 = vsel %vm2620, %v2618, %v2610
    %v2622 = vsel %vm2620, %v2619, %v2612
    %v2623 = vld [vmem:[%s3] sm:$0xff]
    %v2624 = vld [vmem:[%s3 + $0x8] sm:$0xff]
    %v2625 = vld [vmem:[%s3 + $0x10] sm:$0xff]
    %v2626 = vld [vmem:[%s3 + $0x18] sm:$0xff]
    %v2627 = vld [vmem:[%s4] sm:$0x1]
    %v2629 = vlaneseq
    %v2630 = vshrl.u32 %v2629, 7
    %v2631 = vsub.s32 0, %v2630
    %v2632 = vrot.slane %v2627, %v2631
    %v2635 = vsel %vm72, %v2621, 0
    %v2638 = vsel %vm72, %v2622, 0
    %2640 = vmatprep.subr.mxu0 0.0
    %2641 = vmatpush1.msra.mxu0 %v2623
    %2642 = vmatprep.subr.mxu0 0.0
    %2643 = vmatpush1.msra.mxu0 %v2624
    %2644 = vmatprep.subr.mxu0 0.0
    %2645 = vmatpush1.msra.mxu0 %v2625
    %2646 = vmatprep.subr.mxu0 0.0
    %2647 = vmatpush1.msra.mxu0 %v2626
    %2648 = vmatprep.subr.mxu0 0.0
    %2649 = vmatpush1.msra.mxu0 0.0
    %2650 = vmatprep.subr.mxu0 0.0
    %2651 = vmatpush1.msra.mxu0 0.0
    %2652 = vmatprep.subr.mxu0 0.0
    %2653 = vmatpush1.msra.mxu0 0.0
    %2654 = vmatprep.subr.mxu0 0.0
    %2655 = vmatpush1.msra.mxu0 0.0
    %2656 = vmatprep.subr.mxu0 0.0
    %2657 = vmatpush1.msra.mxu0 0.0
    %2658 = vmatprep.subr.mxu0 0.0
    %2659 = vmatpush1.msra.mxu0 0.0
    %2660 = vmatprep.subr.mxu0 0.0
    %2661 = vmatpush1.msra.mxu0 0.0
    %2662 = vmatprep.subr.mxu0 0.0
    %2663 = vmatpush1.msra.mxu0 0.0
    %2664 = vmatprep.subr.mxu0 0.0
    %2665 = vmatpush1.msra.mxu0 0.0
    %2666 = vmatprep.subr.mxu0 0.0
    %2667 = vmatpush1.msra.mxu0 0.0
    %2668 = vmatprep.subr.mxu0 0.0
    %2669 = vmatpush1.msra.mxu0 0.0
    %2670 = vmatprep.subr.mxu0 0.0
    %2671 = vmatpush1.msra.mxu0 0.0
    %2672 = vmatprep.subr.mxu0 0.0
    %2673 = vmatpush1.msra.mxu0 0.0
    %2674 = vmatprep.subr.mxu0 0.0
    %2675 = vmatpush1.msra.mxu0 0.0
    %2676 = vmatprep.subr.mxu0 0.0
    %2677 = vmatpush1.msra.mxu0 0.0
    %2678 = vmatprep.subr.mxu0 0.0
    %2679 = vmatpush1.msra.mxu0 0.0
    %2680 = vmatprep.subr.mxu0 0.0
    %2681 = vmatpush1.msra.mxu0 0.0
    %2682 = vmatprep.subr.mxu0 0.0
    %2683 = vmatpush1.msra.mxu0 0.0
    %2684 = vmatprep.subr.mxu0 0.0
    %2685 = vmatpush1.msra.mxu0 0.0
    %2686 = vmatprep.subr.mxu0 0.0
    %2687 = vmatpush1.msra.mxu0 0.0
    %2688 = vmatprep.subr.mxu0 0.0
    %2689 = vmatpush1.msra.mxu0 0.0
    %2690 = vmatprep.subr.mxu0 0.0
    %2691 = vmatpush1.msra.mxu0 0.0
    %2692 = vmatprep.subr.mxu0 0.0
    %2693 = vmatpush1.msra.mxu0 0.0
    %2694 = vmatprep.subr.mxu0 0.0
    %2695 = vmatpush1.msra.mxu0 0.0
    %2696 = vmatprep.subr.mxu0 0.0
    %2697 = vmatpush1.msra.mxu0 0.0
    %2698 = vmatprep.subr.mxu0 0.0
    %2699 = vmatpush1.msra.mxu0 0.0
    %2700 = vmatprep.subr.mxu0 0.0
    %2701 = vmatpush1.msra.mxu0 0.0
    %2702 = vmatprep.subr.mxu0 0.0
    %2703 = vmatpush1.msra.mxu0 0.0
    %2704 = vmatprep.mubr.f32.mxu0 0.0
    %2705 = vmatmul.mubr.f32.gmra.mrb[0].mxu0 %v2635
    %v2706 = vpop.f32.mrb[0].mxu0
    %v2707 = vadd.f32 %v2632, %v2706
    %v2708 = vpop.f32.mrb[0].mxu0
    %2709 = vmatprep.mubr.f32.mxu0 0.0
    %2710 = vmatmul.mubr.f32.gmra.mrb[0].mxu0 %v2638
    %v2711 = vpop.f32.mrb[0].mxu0
    %v2712 = vadd.f32 %v2632, %v2711
    %v2713 = vpop.f32.mrb[0].mxu0
    %2714 = vdwg.mxu0
    %v2715 = vadd.f32 %v59, %v2707
    %v2716 = vadd.f32 %v60, %v2712
    %v2717 = vld [vmem:[%s5] sm:$0x1]
    %v2718 = vld [vmem:[%s6] sm:$0x1]
    %v2719 = vsel %vm72, %v2715, 0.0
    %2720 = vadd.xlane.f32.xlu0 %v2719
    %v2721 = vpop.xlane.xlu0 %2720
    %v2722 = vsel %vm72, %v2716, 0.0
    %2723 = vadd.xlane.f32.xlu0 %v2722
    %v2724 = vpop.xlane.xlu0 %2723
    %v2725 = vrcp.pop 32.0
    %v2726 = vmul.f32 %v2721, %v2725
    %v2727 = vmul.f32 %v2724, %v2725
    %v2728 = vsub.f32 %v2715, %v2726
    %v2729 = vsub.f32 %v2716, %v2727
    %v2730 = vmul.f32 %v2728, %v2728
    %v2731 = vmul.f32 %v2729, %v2729
    %v2732 = vsel %vm72, %v2730, 0.0
    %2733 = vadd.xlane.f32.xlu0 %v2732
    %v2734 = vpop.xlane.xlu0 %2733
    %v2735 = vsel %vm72, %v2731, 0.0
    %2736 = vadd.xlane.f32.xlu0 %v2735
    %v2737 = vpop.xlane.xlu0 %2736
    %v2738 = vmul.f32 %v2734, %v2725
    %v2739 = vmul.f32 %v2737, %v2725
    %v2740 = vadd.f32 %v2738, 1e-05
    %v2741 = vadd.f32 %v2739, 1e-05
    %v2742 = vrsqrt.pop %v2740
    %v2743 = vrsqrt.pop %v2741
    %v2744 = vmul.f32 %v2728, %v2742
    %v2745 = vmul.f32 %v2729, %v2743
    %v2747 = vlaneseq
    %v2748 = vshrl.u32 %v2747, 7
    %v2749 = vsub.s32 0, %v2748
    %v2750 = vrot.slane %v2717, %v2749
    %v2752 = vmul.f32 %v2744, %v2750
    %v2753 = vmul.f32 %v2745, %v2750
    %v2755 = vlaneseq
    %v2756 = vshrl.u32 %v2755, 7
    %v2757 = vsub.s32 0, %v2756
    %v2758 = vrot.slane %v2718, %v2757
    %v2760 = vadd.f32 %v2752, %v2758
    %v2761 = vadd.f32 %v2753, %v2758
    %v2762 = vld [vmem:[%s7] sm:$0xff]
    %v2763 = vld [vmem:[%s7 + $0x8] sm:$0xff]
    %v2764 = vld [vmem:[%s7 + $0x10] sm:$0xff]
    %v2765 = vld [vmem:[%s7 + $0x18] sm:$0xff]
    %v2766 = vld [vmem:[%s8] sm:$0x1]
    %v2768 = vlaneseq
    %v2769 = vshrl.u32 %v2768, 7
    %v2770 = vsub.s32 0, %v2769
    %v2771 = vrot.slane %v2766, %v2770
    %v2774 = vsel %vm72, %v2760, 0
    %v2777 = vsel %vm72, %v2761, 0
    %2779 = vmatprep.subr.mxu0 0.0
    %2780 = vmatpush1.msra.mxu0 %v2762
    %2781 = vmatprep.subr.mxu0 0.0
    %2782 = vmatpush1.msra.mxu0 %v2763
    %2783 = vmatprep.subr.mxu0 0.0
    %2784 = vmatpush1.msra.mxu0 %v2764
    %2785 = vmatprep.subr.mxu0 0.0
    %2786 = vmatpush1.msra.mxu0 %v2765
    %2787 = vmatprep.subr.mxu0 0.0
    %2788 = vmatpush1.msra.mxu0 0.0
    %2789 = vmatprep.subr.mxu0 0.0
    %2790 = vmatpush1.msra.mxu0 0.0
    %2791 = vmatprep.subr.mxu0 0.0
    %2792 = vmatpush1.msra.mxu0 0.0
    %2793 = vmatprep.subr.mxu0 0.0
    %2794 = vmatpush1.msra.mxu0 0.0
    %2795 = vmatprep.subr.mxu0 0.0
    %2796 = vmatpush1.msra.mxu0 0.0
    %2797 = vmatprep.subr.mxu0 0.0
    %2798 = vmatpush1.msra.mxu0 0.0
    %2799 = vmatprep.subr.mxu0 0.0
    %2800 = vmatpush1.msra.mxu0 0.0
    %2801 = vmatprep.subr.mxu0 0.0
    %2802 = vmatpush1.msra.mxu0 0.0
    %2803 = vmatprep.subr.mxu0 0.0
    %2804 = vmatpush1.msra.mxu0 0.0
    %2805 = vmatprep.subr.mxu0 0.0
    %2806 = vmatpush1.msra.mxu0 0.0
    %2807 = vmatprep.subr.mxu0 0.0
    %2808 = vmatpush1.msra.mxu0 0.0
    %2809 = vmatprep.subr.mxu0 0.0
    %2810 = vmatpush1.msra.mxu0 0.0
    %2811 = vmatprep.subr.mxu0 0.0
    %2812 = vmatpush1.msra.mxu0 0.0
    %2813 = vmatprep.subr.mxu0 0.0
    %2814 = vmatpush1.msra.mxu0 0.0
    %2815 = vmatprep.subr.mxu0 0.0
    %2816 = vmatpush1.msra.mxu0 0.0
    %2817 = vmatprep.subr.mxu0 0.0
    %2818 = vmatpush1.msra.mxu0 0.0
    %2819 = vmatprep.subr.mxu0 0.0
    %2820 = vmatpush1.msra.mxu0 0.0
    %2821 = vmatprep.subr.mxu0 0.0
    %2822 = vmatpush1.msra.mxu0 0.0
    %2823 = vmatprep.subr.mxu0 0.0
    %2824 = vmatpush1.msra.mxu0 0.0
    %2825 = vmatprep.subr.mxu0 0.0
    %2826 = vmatpush1.msra.mxu0 0.0
    %2827 = vmatprep.subr.mxu0 0.0
    %2828 = vmatpush1.msra.mxu0 0.0
    %2829 = vmatprep.subr.mxu0 0.0
    %2830 = vmatpush1.msra.mxu0 0.0
    %2831 = vmatprep.subr.mxu0 0.0
    %2832 = vmatpush1.msra.mxu0 0.0
    %2833 = vmatprep.subr.mxu0 0.0
    %2834 = vmatpush1.msra.mxu0 0.0
    %2835 = vmatprep.subr.mxu0 0.0
    %2836 = vmatpush1.msra.mxu0 0.0
    %2837 = vmatprep.subr.mxu0 0.0
    %2838 = vmatpush1.msra.mxu0 0.0
    %2839 = vmatprep.subr.mxu0 0.0
    %2840 = vmatpush1.msra.mxu0 0.0
    %2841 = vmatprep.subr.mxu0 0.0
    %2842 = vmatpush1.msra.mxu0 0.0
    %2843 = vmatprep.mubr.f32.mxu0 0.0
    %2844 = vmatmul.mubr.f32.gmra.mrb[0].mxu0 %v2774
    %v2845 = vpop.f32.mrb[0].mxu0
    %v2846 = vadd.f32 %v2771, %v2845
    %v2847 = vpop.f32.mrb[0].mxu0
    %2848 = vmatprep.mubr.f32.mxu0 0.0
    %2849 = vmatmul.mubr.f32.gmra.mrb[0].mxu0 %v2777
    %v2850 = vpop.f32.mrb[0].mxu0
    %v2851 = vadd.f32 %v2771, %v2850
    %v2852 = vpop.f32.mrb[0].mxu0
    %2853 = vdwg.mxu0
    %v2854 = vmax.f32 %v2846, 0.0
    %v2855 = vmax.f32 %v2851, 0.0
    %v2856 = vld [vmem:[%s9] sm:$0xff]
    %v2857 = vld [vmem:[%s9 + $0x8] sm:$0xff]
    %v2858 = vld [vmem:[%s9 + $0x10] sm:$0xff]
    %v2859 = vld [vmem:[%s9 + $0x18] sm:$0xff]
    %v2860 = vld [vmem:[%s9 + $0x20] sm:$0xff]
    %v2861 = vld [vmem:[%s9 + $0x28] sm:$0xff]
    %v2862 = vld [vmem:[%s9 + $0x30] sm:$0xff]
    %v2863 = vld [vmem:[%s9 + $0x38] sm:$0xff]
    %v2864 = vld [vmem:[%s10] sm:$0x1]
    %v2866 = vlaneseq
    %v2867 = vshrl.u32 %v2866, 7
    %v2868 = vsub.s32 0, %v2867
    %v2869 = vrot.slane %v2864, %v2868
    %vm2871 = vcmask 523264
    %v2873 = vsel %vm2871, %v2854, 0
    %v2876 = vsel %vm2871, %v2855, 0
    %2878 = vmatprep.subr.mxu0 0.0
    %2879 = vmatpush1.msra.mxu0 %v2856
    %2880 = vmatprep.subr.mxu0 0.0
    %2881 = vmatpush1.msra.mxu0 %v2857
    %2882 = vmatprep.subr.mxu0 0.0
    %2883 = vmatpush1.msra.mxu0 %v2858
    %2884 = vmatprep.subr.mxu0 0.0
    %2885 = vmatpush1.msra.mxu0 %v2859
    %2886 = vmatprep.subr.mxu0 0.0
    %2887 = vmatpush1.msra.mxu0 %v2860
    %2888 = vmatprep.subr.mxu0 0.0
    %2889 = vmatpush1.msra.mxu0 %v2861
    %2890 = vmatprep.subr.mxu0 0.0
    %2891 = vmatpush1.msra.mxu0 %v2862
    %2892 = vmatprep.subr.mxu0 0.0
    %2893 = vmatpush1.msra.mxu0 %v2863
    %2894 = vmatprep.subr.mxu0 0.0
    %2895 = vmatpush1.msra.mxu0 0.0
    %2896 = vmatprep.subr.mxu0 0.0
    %2897 = vmatpush1.msra.mxu0 0.0
    %2898 = vmatprep.subr.mxu0 0.0
    %2899 = vmatpush1.msra.mxu0 0.0
    %2900 = vmatprep.subr.mxu0 0.0
    %2901 = vmatpush1.msra.mxu0 0.0
    %2902 = vmatprep.subr.mxu0 0.0
    %2903 = vmatpush1.msra.mxu0 0.0
    %2904 = vmatprep.subr.mxu0 0.0
    %2905 = vmatpush1.msra.mxu0 0.0
    %2906 = vmatprep.subr.mxu0 0.0
    %2907 = vmatpush1.msra.mxu0 0.0
    %2908 = vmatprep.subr.mxu0 0.0
    %2909 = vmatpush1.msra.mxu0 0.0
    %2910 = vmatprep.subr.mxu0 0.0
    %2911 = vmatpush1.msra.mxu0 0.0
    %2912 = vmatprep.subr.mxu0 0.0
    %2913 = vmatpush1.msra.mxu0 0.0
    %2914 = vmatprep.subr.mxu0 0.0
    %2915 = vmatpush1.msra.mxu0 0.0
    %2916 = vmatprep.subr.mxu0 0.0
    %2917 = vmatpush1.msra.mxu0 0.0
    %2918 = vmatprep.subr.mxu0 0.0
    %2919 = vmatpush1.msra.mxu0 0.0
    %2920 = vmatprep.subr.mxu0 0.0
    %2921 = vmatpush1.msra.mxu0 0.0
    %2922 = vmatprep.subr.mxu0 0.0
    %2923 = vmatpush1.msra.mxu0 0.0
    %2924 = vmatprep.subr.mxu0 0.0
    %2925 = vmatpush1.msra.mxu0 0.0
    %2926 = vmatprep.subr.mxu0 0.0
    %2927 = vmatpush1.msra.mxu0 0.0
    %2928 = vmatprep.subr.mxu0 0.0
    %2929 = vmatpush1.msra.mxu0 0.0
    %2930 = vmatprep.subr.mxu0 0.0
    %2931 = vmatpush1.msra.mxu0 0.0
    %2932 = vmatprep.subr.mxu0 0.0
    %2933 = vmatpush1.msra.mxu0 0.0
    %2934 = vmatprep.subr.mxu0 0.0
    %2935 = vmatpush1.msra.mxu0 0.0
    %2936 = vmatprep.subr.mxu0 0.0
    %2937 = vmatpush1.msra.mxu0 0.0
    %2938 = vmatprep.subr.mxu0 0.0
    %2939 = vmatpush1.msra.mxu0 0.0
    %2940 = vmatprep.subr.mxu0 0.0
    %2941 = vmatpush1.msra.mxu0 0.0
    %2942 = vmatprep.mubr.f32.mxu0 0.0
    %2943 = vmatmul.mubr.f32.gmra.mrb[0].mxu0 %v2873
    %v2944 = vpop.f32.mrb[0].mxu0
    %v2945 = vadd.f32 %v2869, %v2944
    %v2946 = vpop.f32.mrb[0].mxu0
    %2947 = vmatprep.mubr.f32.mxu0 0.0
    %2948 = vmatmul.mubr.f32.gmra.mrb[0].mxu0 %v2876
    %v2949 = vpop.f32.mrb[0].mxu0
    %v2950 = vadd.f32 %v2869, %v2949
    %v2951 = vpop.f32.mrb[0].mxu0
    %2952 = vdwg.mxu0
    %v2953 = vadd.f32 %v2760, %v2945
    %v2954 = vadd.f32 %v2761, %v2950
    %v2955 = vld [vmem:[%s11] sm:$0x1]
    %v2956 = vld [vmem:[%s12] sm:$0x1]
    %v2957 = vsel %vm72, %v2953, 0.0
    %2958 = vadd.xlane.f32.xlu0 %v2957
    %v2959 = vpop.xlane.xlu0 %2958
    %v2960 = vsel %vm72, %v2954, 0.0
    %2961 = vadd.xlane.f32.xlu0 %v2960
    %v2962 = vpop.xlane.xlu0 %2961
    %v2963 = vmul.f32 %v2959, %v2725
    %v2964 = vmul.f32 %v2962, %v2725
    %v2965 = vsub.f32 %v2953, %v2963
    %v2966 = vsub.f32 %v2954, %v2964
    %v2967 = vmul.f32 %v2965, %v2965
    %v2968 = vmul.f32 %v2966, %v2966
    %v2969 = vsel %vm72, %v2967, 0.0
    %2970 = vadd.xlane.f32.xlu0 %v2969
    %v2971 = vpop.xlane.xlu0 %2970
    %v2972 = vsel %vm72, %v2968, 0.0
    %2973 = vadd.xlane.f32.xlu0 %v2972
    %v2974 = vpop.xlane.xlu0 %2973
    %v2975 = vmul.f32 %v2971, %v2725
    %v2976 = vmul.f32 %v2974, %v2725
    %v2977 = vadd.f32 %v2975, 1e-05
    %v2978 = vadd.f32 %v2976, 1e-05
    %v2979 = vrsqrt.pop %v2977
    %v2980 = vrsqrt.pop %v2978
    %v2981 = vmul.f32 %v2965, %v2979
    %v2982 = vmul.f32 %v2966, %v2980
    %v2984 = vlaneseq
    %v2985 = vshrl.u32 %v2984, 7
    %v2986 = vsub.s32 0, %v2985
    %v2987 = vrot.slane %v2955, %v2986
    %v2989 = vmul.f32 %v2981, %v2987
    %v2990 = vmul.f32 %v2982, %v2987
    %v2992 = vlaneseq
    %v2993 = vshrl.u32 %v2992, 7
    %v2994 = vsub.s32 0, %v2993
    %v2995 = vrot.slane %v2956, %v2994
    %v2997 = vadd.f32 %v2989, %v2995
    %v2998 = vadd.f32 %v2990, %v2995
    %s2999 = scalar_lea.vmem %s1, 32
    %v3000 = vld [vmem:[%s2999] sm:$0xff]
    %v3001 = vld [vmem:[%s2999 + $0x8] sm:$0xff]
    %v3002 = vld [vmem:[%s2999 + $0x10] sm:$0xff]
    %v3003 = vld [vmem:[%s2999 + $0x18] sm:$0xff]
    %s3004 = scalar_lea.vmem %s2, 1
    %v3005 = vld [vmem:[%s3004] sm:$0x1]
    %v3007 = vlaneseq
    %v3008 = vshrl.u32 %v3007, 7
    %v3009 = vsub.s32 0, %v3008
    %v3010 = vrot.slane %v3005, %v3009
    %v3013 = vsel %vm72, %v2997, 0
    %v3016 = vsel %vm72, %v2998, 0
    %3018 = vmatprep.subr.mxu0 0.0
    %3019 = vmatpush1.msra.mxu0 %v3000
    %3020 = vmatprep.subr.mxu0 0.0
    %3021 = vmatpush1.msra.mxu0 %v3001
    %3022 = vmatprep.subr.mxu0 0.0
    %3023 = vmatpush1.msra.mxu0 %v3002
    %3024 = vmatprep.subr.mxu0 0.0
    %3025 = vmatpush1.msra.mxu0 %v3003
    %3026 = vmatprep.subr.mxu0 0.0
    %3027 = vmatpush1.msra.mxu0 0.0
    %3028 = vmatprep.subr.mxu0 0.0
    %3029 = vmatpush1.msra.mxu0 0.0
    %3030 = vmatprep.subr.mxu0 0.0
    %3031 = vmatpush1.msra.mxu0 0.0
    %3032 = vmatprep.subr.mxu0 0.0
    %3033 = vmatpush1.msra.mxu0 0.0
    %3034 = vmatprep.subr.mxu0 0.0
    %3035 = vmatpush1.msra.mxu0 0.0
    %3036 = vmatprep.subr.mxu0 0.0
    %3037 = vmatpush1.msra.mxu0 0.0
    %3038 = vmatprep.subr.mxu0 0.0
    %3039 = vmatpush1.msra.mxu0 0.0
    %3040 = vmatprep.subr.mxu0 0.0
    %3041 = vmatpush1.msra.mxu0 0.0
    %3042 = vmatprep.subr.mxu0 0.0
    %3043 = vmatpush1.msra.mxu0 0.0
    %3044 = vmatprep.subr.mxu0 0.0
    %3045 = vmatpush1.msra.mxu0 0.0
    %3046 = vmatprep.subr.mxu0 0.0
    %3047 = vmatpush1.msra.mxu0 0.0
    %3048 = vmatprep.subr.mxu0 0.0
    %3049 = vmatpush1.msra.mxu0 0.0
    %3050 = vmatprep.subr.mxu0 0.0
    %3051 = vmatpush1.msra.mxu0 0.0
    %3052 = vmatprep.subr.mxu0 0.0
    %3053 = vmatpush1.msra.mxu0 0.0
    %3054 = vmatprep.subr.mxu0 0.0
    %3055 = vmatpush1.msra.mxu0 0.0
    %3056 = vmatprep.subr.mxu0 0.0
    %3057 = vmatpush1.msra.mxu0 0.0
    %3058 = vmatprep.subr.mxu0 0.0
    %3059 = vmatpush1.msra.mxu0 0.0
    %3060 = vmatprep.subr.mxu0 0.0
    %3061 = vmatpush1.msra.mxu0 0.0
    %3062 = vmatprep.subr.mxu0 0.0
    %3063 = vmatpush1.msra.mxu0 0.0
    %3064 = vmatprep.subr.mxu0 0.0
    %3065 = vmatpush1.msra.mxu0 0.0
    %3066 = vmatprep.subr.mxu0 0.0
    %3067 = vmatpush1.msra.mxu0 0.0
    %3068 = vmatprep.subr.mxu0 0.0
    %3069 = vmatpush1.msra.mxu0 0.0
    %3070 = vmatprep.subr.mxu0 0.0
    %3071 = vmatpush1.msra.mxu0 0.0
    %3072 = vmatprep.subr.mxu0 0.0
    %3073 = vmatpush1.msra.mxu0 0.0
    %3074 = vmatprep.subr.mxu0 0.0
    %3075 = vmatpush1.msra.mxu0 0.0
    %3076 = vmatprep.subr.mxu0 0.0
    %3077 = vmatpush1.msra.mxu0 0.0
    %3078 = vmatprep.subr.mxu0 0.0
    %3079 = vmatpush1.msra.mxu0 0.0
    %3080 = vmatprep.subr.mxu0 0.0
    %3081 = vmatpush1.msra.mxu0 0.0
    %3082 = vmatprep.mubr.f32.mxu0 0.0
    %3083 = vmatmul.mubr.f32.gmra.mrb[0].mxu0 %v3013
    %v3084 = vpop.f32.mrb[0].mxu0
    %v3085 = vadd.f32 %v3010, %v3084
    %v3086 = vpop.f32.mrb[0].mxu0
    %3087 = vmatprep.mubr.f32.mxu0 0.0
    %3088 = vmatmul.mubr.f32.gmra.mrb[0].mxu0 %v3016
    %v3089 = vpop.f32.mrb[0].mxu0
    %v3090 = vadd.f32 %v3010, %v3089
    %v3091 = vpop.f32.mrb[0].mxu0
    %3092 = vdwg.mxu0
    %3095 = vrot.lane.b32.xlu0 %v3085, 120
    %v3096 = vpop.permute.xlu0 %3095
    %3097 = vrot.lane.b32.xlu0 %v3090, 120
    %v3098 = vpop.permute.xlu0 %3097
    %3101 = vrot.lane.b32.xlu0 %v3085, 112
    %v3102 = vpop.permute.xlu0 %3101
    %3103 = vrot.lane.b32.xlu0 %v3090, 112
    %v3104 = vpop.permute.xlu0 %3103
    %3107 = vrot.lane.b32.xlu0 %v3085, 104
    %v3108 = vpop.permute.xlu0 %3107
    %3109 = vrot.lane.b32.xlu0 %v3090, 104
    %v3110 = vpop.permute.xlu0 %3109
    %v3113 = vcombine.low %v3085, %v3102
    %v3114 = vcombine.high %v3085, %v3102
    %v3116 = vunpack.c.l.s4 1983009808
    %v3117 = vunpack.c.0.s8 %v3116
    %v3118 = vlaneseq
    %v3119 = vshrl.u32 %v3118, 7
    %v3120 = vsub.s32 %v3117, %v3119
    %v3121 = vrot.slane %v3113, %v3120
    %v3123 = vunpack.c.l.s4 1983009808
    %v3124 = vunpack.c.0.s8 %v3123
    %v3125 = vlaneseq
    %v3126 = vshrl.u32 %v3125, 7
    %v3127 = vsub.s32 %v3124, %v3126
    %v3128 = vrot.slane %v3114, %v3127
    %v3129 = vcombine.low %v3096, %v3108
    %v3130 = vcombine.high %v3096, %v3108
    %v3132 = vunpack.c.l.s4 1983009808
    %v3133 = vunpack.c.0.s8 %v3132
    %v3134 = vlaneseq
    %v3135 = vshrl.u32 %v3134, 7
    %v3136 = vsub.s32 %v3133, %v3135
    %v3137 = vrot.slane %v3129, %v3136
    %v3139 = vunpack.c.l.s4 1983009808
    %v3140 = vunpack.c.0.s8 %v3139
    %v3141 = vlaneseq
    %v3142 = vshrl.u32 %v3141, 7
    %v3143 = vsub.s32 %v3140, %v3142
    %v3144 = vrot.slane %v3130, %v3143
    %v3145 = vcombine.low %v3121, %v3137
    %v3146 = vcombine.high %v3121, %v3137
    %v3148 = vunpack.c.l.s4 1934713408
    %v3149 = vunpack.c.0.s8 %v3148
    %v3150 = vlaneseq
    %v3151 = vshrl.u32 %v3150, 7
    %v3152 = vsub.s32 %v3149, %v3151
    %v3153 = vrot.slane %v3145, %v3152
    %v3155 = vunpack.c.l.s4 1934713408
    %v3156 = vunpack.c.0.s8 %v3155
    %v3157 = vlaneseq
    %v3158 = vshrl.u32 %v3157, 7
    %v3159 = vsub.s32 %v3156, %v3158
    %v3160 = vrot.slane %v3146, %v3159
    %v3161 = vcombine.low %v3128, %v3144
    %v3162 = vcombine.high %v3128, %v3144
    %v3164 = vunpack.c.l.s4 1934713408
    %v3165 = vunpack.c.0.s8 %v3164
    %v3166 = vlaneseq
    %v3167 = vshrl.u32 %v3166, 7
    %v3168 = vsub.s32 %v3165, %v3167
    %v3169 = vrot.slane %v3161, %v3168
    %v3171 = vunpack.c.l.s4 1934713408
    %v3172 = vunpack.c.0.s8 %v3171
    %v3173 = vlaneseq
    %v3174 = vshrl.u32 %v3173, 7
    %v3175 = vsub.s32 %v3172, %v3174
    %v3176 = vrot.slane %v3162, %v3175
    %v3177 = vcombine.high %v3153, 0.0
    %v3178 = vcombine.high %v3160, 0.0
    %v3179 = vcombine.high %v3169, 0.0
    %v3180 = vcombine.high %v3176, 0.0
    %v3181 = vcombine.low %v3090, %v3104
    %v3182 = vcombine.high %v3090, %v3104
    %v3184 = vunpack.c.l.s4 1983009808
    %v3185 = vunpack.c.0.s8 %v3184
    %v3186 = vlaneseq
    %v3187 = vshrl.u32 %v3186, 7
    %v3188 = vsub.s32 %v3185, %v3187
    %v3189 = vrot.slane %v3181, %v3188
    %v3191 = vunpack.c.l.s4 1983009808
    %v3192 = vunpack.c.0.s8 %v3191
    %v3193 = vlaneseq
    %v3194 = vshrl.u32 %v3193, 7
    %v3195 = vsub.s32 %v3192, %v3194
    %v3196 = vrot.slane %v3182, %v3195
    %v3197 = vcombine.low %v3098, %v3110
    %v3198 = vcombine.high %v3098, %v3110
    %v3200 = vunpack.c.l.s4 1983009808
    %v3201 = vunpack.c.0.s8 %v3200
    %v3202 = vlaneseq
    %v3203 = vshrl.u32 %v3202, 7
    %v3204 = vsub.s32 %v3201, %v3203
    %v3205 = vrot.slane %v3197, %v3204
    %v3207 = vunpack.c.l.s4 1983009808
    %v3208 = vunpack.c.0.s8 %v3207
    %v3209 = vlaneseq
    %v3210 = vshrl.u32 %v3209, 7
    %v3211 = vsub.s32 %v3208, %v3210
    %v3212 = vrot.slane %v3198, %v3211
    %v3213 = vcombine.low %v3189, %v3205
    %v3214 = vcombine.high %v3189, %v3205
    %v3216 = vunpack.c.l.s4 1934713408
    %v3217 = vunpack.c.0.s8 %v3216
    %v3218 = vlaneseq
    %v3219 = vshrl.u32 %v3218, 7
    %v3220 = vsub.s32 %v3217, %v3219
    %v3221 = vrot.slane %v3213, %v3220
    %v3223 = vunpack.c.l.s4 1934713408
    %v3224 = vunpack.c.0.s8 %v3223
    %v3225 = vlaneseq
    %v3226 = vshrl.u32 %v3225, 7
    %v3227 = vsub.s32 %v3224, %v3226
    %v3228 = vrot.slane %v3214, %v3227
    %v3229 = vcombine.low %v3196, %v3212
    %v3230 = vcombine.high %v3196, %v3212
    %v3232 = vunpack.c.l.s4 1934713408
    %v3233 = vunpack.c.0.s8 %v3232
    %v3234 = vlaneseq
    %v3235 = vshrl.u32 %v3234, 7
    %v3236 = vsub.s32 %v3233, %v3235
    %v3237 = vrot.slane %v3229, %v3236
    %v3239 = vunpack.c.l.s4 1934713408
    %v3240 = vunpack.c.0.s8 %v3239
    %v3241 = vlaneseq
    %v3242 = vshrl.u32 %v3241, 7
    %v3243 = vsub.s32 %v3240, %v3242
    %v3244 = vrot.slane %v3230, %v3243
    %v3245 = vcombine.high %v3221, 0.0
    %v3246 = vcombine.high %v3228, 0.0
    %v3247 = vcombine.high %v3237, 0.0
    %v3248 = vcombine.high %v3244, 0.0
    %v3249 = vcombine.low %v3153, %v3160
    %v3251 = vunpack.c.l.s4 1983009808
    %v3252 = vunpack.c.0.s8 %v3251
    %v3253 = vlaneseq
    %v3254 = vshrl.u32 %v3253, 7
    %v3255 = vsub.s32 %v3252, %v3254
    %v3256 = vrot.slane %v3249, %v3255
    %v3257 = vcombine.low %v3177, %v3178
    %v3259 = vunpack.c.l.s4 1983009808
    %v3260 = vunpack.c.0.s8 %v3259
    %v3261 = vlaneseq
    %v3262 = vshrl.u32 %v3261, 7
    %v3263 = vsub.s32 %v3260, %v3262
    %v3264 = vrot.slane %v3257, %v3263
    %v3265 = vcombine.low %v3169, %v3176
    %v3267 = vunpack.c.l.s4 1983009808
    %v3268 = vunpack.c.0.s8 %v3267
    %v3269 = vlaneseq
    %v3270 = vshrl.u32 %v3269, 7
    %v3271 = vsub.s32 %v3268, %v3270
    %v3272 = vrot.slane %v3265, %v3271
    %v3273 = vcombine.low %v3179, %v3180
    %v3275 = vunpack.c.l.s4 1983009808
    %v3276 = vunpack.c.0.s8 %v3275
    %v3277 = vlaneseq
    %v3278 = vshrl.u32 %v3277, 7
    %v3279 = vsub.s32 %v3276, %v3278
    %v3280 = vrot.slane %v3273, %v3279
    %v3281 = vcombine.low %v3256, %v3264
    %v3282 = vcombine.high %v3256, %v3264
    %v3284 = vunpack.c.l.s4 1934713408
    %v3285 = vunpack.c.0.s8 %v3284
    %v3286 = vlaneseq
    %v3287 = vshrl.u32 %v3286, 7
    %v3288 = vsub.s32 %v3285, %v3287
    %v3289 = vrot.slane %v3281, %v3288
    %v3291 = vunpack.c.l.s4 1934713408
    %v3292 = vunpack.c.0.s8 %v3291
    %v3293 = vlaneseq
    %v3294 = vshrl.u32 %v3293, 7
    %v3295 = vsub.s32 %v3292, %v3294
    %v3296 = vrot.slane %v3282, %v3295
    %v3297 = vcombine.low %v3272, %v3280
    %v3298 = vcombine.high %v3272, %v3280
    %v3300 = vunpack.c.l.s4 1934713408
    %v3301 = vunpack.c.0.s8 %v3300
    %v3302 = vlaneseq
    %v3303 = vshrl.u32 %v3302, 7
    %v3304 = vsub.s32 %v3301, %v3303
    %v3305 = vrot.slane %v3297, %v3304
    %v3307 = vunpack.c.l.s4 1934713408
    %v3308 = vunpack.c.0.s8 %v3307
    %v3309 = vlaneseq
    %v3310 = vshrl.u32 %v3309, 7
    %v3311 = vsub.s32 %v3308, %v3310
    %v3312 = vrot.slane %v3298, %v3311
    %v3313 = vcombine.low %v3289, %v3305
    %v3314 = vcombine.high %v3289, %v3305
    %v3315 = vcombine.low %v3296, %v3312
    %v3316 = vcombine.high %v3296, %v3312
    %v3317 = vcombine.low %v3221, %v3228
    %v3319 = vunpack.c.l.s4 1983009808
    %v3320 = vunpack.c.0.s8 %v3319
    %v3321 = vlaneseq
    %v3322 = vshrl.u32 %v3321, 7
    %v3323 = vsub.s32 %v3320, %v3322
    %v3324 = vrot.slane %v3317, %v3323
    %v3325 = vcombine.low %v3245, %v3246
    %v3327 = vunpack.c.l.s4 1983009808
    %v3328 = vunpack.c.0.s8 %v3327
    %v3329 = vlaneseq
    %v3330 = vshrl.u32 %v3329, 7
    %v3331 = vsub.s32 %v3328, %v3330
    %v3332 = vrot.slane %v3325, %v3331
    %v3333 = vcombine.low %v3237, %v3244
    %v3335 = vunpack.c.l.s4 1983009808
    %v3336 = vunpack.c.0.s8 %v3335
    %v3337 = vlaneseq
    %v3338 = vshrl.u32 %v3337, 7
    %v3339 = vsub.s32 %v3336, %v3338
    %v3340 = vrot.slane %v3333, %v3339
    %v3341 = vcombine.low %v3247, %v3248
    %v3343 = vunpack.c.l.s4 1983009808
    %v3344 = vunpack.c.0.s8 %v3343
    %v3345 = vlaneseq
    %v3346 = vshrl.u32 %v3345, 7
    %v3347 = vsub.s32 %v3344, %v3346
    %v3348 = vrot.slane %v3341, %v3347
    %v3349 = vcombine.low %v3324, %v3332
    %v3350 = vcombine.high %v3324, %v3332
    %v3352 = vunpack.c.l.s4 1934713408
    %v3353 = vunpack.c.0.s8 %v3352
    %v3354 = vlaneseq
    %v3355 = vshrl.u32 %v3354, 7
    %v3356 = vsub.s32 %v3353, %v3355
    %v3357 = vrot.slane %v3349, %v3356
    %v3359 = vunpack.c.l.s4 1934713408
    %v3360 = vunpack.c.0.s8 %v3359
    %v3361 = vlaneseq
    %v3362 = vshrl.u32 %v3361, 7
    %v3363 = vsub.s32 %v3360, %v3362
    %v3364 = vrot.slane %v3350, %v3363
    %v3365 = vcombine.low %v3340, %v3348
    %v3366 = vcombine.high %v3340, %v3348
    %v3368 = vunpack.c.l.s4 1934713408
    %v3369 = vunpack.c.0.s8 %v3368
    %v3370 = vlaneseq
    %v3371 = vshrl.u32 %v3370, 7
    %v3372 = vsub.s32 %v3369, %v3371
    %v3373 = vrot.slane %v3365, %v3372
    %v3375 = vunpack.c.l.s4 1934713408
    %v3376 = vunpack.c.0.s8 %v3375
    %v3377 = vlaneseq
    %v3378 = vshrl.u32 %v3377, 7
    %v3379 = vsub.s32 %v3376, %v3378
    %v3380 = vrot.slane %v3366, %v3379
    %v3381 = vcombine.low %v3357, %v3373
    %v3382 = vcombine.high %v3357, %v3373
    %v3383 = vcombine.low %v3364, %v3380
    %v3384 = vcombine.high %v3364, %v3380
    %3385 = vrot.lane.b32.xlu0 %v3085, 96
    %v3386 = vpop.permute.xlu0 %3385
    %3387 = vrot.lane.b32.xlu0 %v3090, 96
    %v3388 = vpop.permute.xlu0 %3387
    %3389 = vrot.lane.b32.xlu0 %v3096, 96
    %v3390 = vpop.permute.xlu0 %3389
    %3391 = vrot.lane.b32.xlu0 %v3098, 96
    %v3392 = vpop.permute.xlu0 %3391
    %3393 = vrot.lane.b32.xlu0 %v3102, 96
    %v3394 = vpop.permute.xlu0 %3393
    %3395 = vrot.lane.b32.xlu0 %v3104, 96
    %v3396 = vpop.permute.xlu0 %3395
    %3397 = vrot.lane.b32.xlu0 %v3108, 96
    %v3398 = vpop.permute.xlu0 %3397
    %3399 = vrot.lane.b32.xlu0 %v3110, 96
    %v3400 = vpop.permute.xlu0 %3399
    %v3409 = vcombine.low %v3386, %v3394
    %v3410 = vcombine.high %v3386, %v3394
    %v3412 = vunpack.c.l.s4 1983009808
    %v3413 = vunpack.c.0.s8 %v3412
    %v3414 = vlaneseq
    %v3415 = vshrl.u32 %v3414, 7
    %v3416 = vsub.s32 %v3413, %v3415
    %v3417 = vrot.slane %v3409, %v3416
    %v3419 = vunpack.c.l.s4 1983009808
    %v3420 = vunpack.c.0.s8 %v3419
    %v3421 = vlaneseq
    %v3422 = vshrl.u32 %v3421, 7
    %v3423 = vsub.s32 %v3420, %v3422
    %v3424 = vrot.slane %v3410, %v3423
    %v3425 = vcombine.low %v3390, %v3398
    %v3426 = vcombine.high %v3390, %v3398
    %v3428 = vunpack.c.l.s4 1983009808
    %v3429 = vunpack.c.0.s8 %v3428
    %v3430 = vlaneseq
    %v3431 = vshrl.u32 %v3430, 7
    %v3432 = vsub.s32 %v3429, %v3431
    %v3433 = vrot.slane %v3425, %v3432
    %v3435 = vunpack.c.l.s4 1983009808
    %v3436 = vunpack.c.0.s8 %v3435
    %v3437 = vlaneseq
    %v3438 = vshrl.u32 %v3437, 7
    %v3439 = vsub.s32 %v3436, %v3438
    %v3440 = vrot.slane %v3426, %v3439
    %v3441 = vcombine.low %v3417, %v3433
    %v3442 = vcombine.high %v3417, %v3433
    %v3444 = vunpack.c.l.s4 1934713408
    %v3445 = vunpack.c.0.s8 %v3444
    %v3446 = vlaneseq
    %v3447 = vshrl.u32 %v3446, 7
    %v3448 = vsub.s32 %v3445, %v3447
    %v3449 = vrot.slane %v3441, %v3448
    %v3451 = vunpack.c.l.s4 1934713408
    %v3452 = vunpack.c.0.s8 %v3451
    %v3453 = vlaneseq
    %v3454 = vshrl.u32 %v3453, 7
    %v3455 = vsub.s32 %v3452, %v3454
    %v3456 = vrot.slane %v3442, %v3455
    %v3457 = vcombine.low %v3424, %v3440
    %v3458 = vcombine.high %v3424, %v3440
    %v3460 = vunpack.c.l.s4 1934713408
    %v3461 = vunpack.c.0.s8 %v3460
    %v3462 = vlaneseq
    %v3463 = vshrl.u32 %v3462, 7
    %v3464 = vsub.s32 %v3461, %v3463
    %v3465 = vrot.slane %v3457, %v3464
    %v3467 = vunpack.c.l.s4 1934713408
    %v3468 = vunpack.c.0.s8 %v3467
    %v3469 = vlaneseq
    %v3470 = vshrl.u32 %v3469, 7
    %v3471 = vsub.s32 %v3468, %v3470
    %v3472 = vrot.slane %v3458, %v3471
    %v3473 = vcombine.high %v3449, 0.0
    %v3474 = vcombine.high %v3456, 0.0
    %v3475 = vcombine.high %v3465, 0.0
    %v3476 = vcombine.high %v3472, 0.0
    %v3477 = vcombine.low %v3388, %v3396
    %v3478 = vcombine.high %v3388, %v3396
    %v3480 = vunpack.c.l.s4 1983009808
    %v3481 = vunpack.c.0.s8 %v3480
    %v3482 = vlaneseq
    %v3483 = vshrl.u32 %v3482, 7
    %v3484 = vsub.s32 %v3481, %v3483
    %v3485 = vrot.slane %v3477, %v3484
    %v3487 = vunpack.c.l.s4 1983009808
    %v3488 = vunpack.c.0.s8 %v3487
    %v3489 = vlaneseq
    %v3490 = vshrl.u32 %v3489, 7
    %v3491 = vsub.s32 %v3488, %v3490
    %v3492 = vrot.slane %v3478, %v3491
    %v3493 = vcombine.low %v3392, %v3400
    %v3494 = vcombine.high %v3392, %v3400
    %v3496 = vunpack.c.l.s4 1983009808
    %v3497 = vunpack.c.0.s8 %v3496
    %v3498 = vlaneseq
    %v3499 = vshrl.u32 %v3498, 7
    %v3500 = vsub.s32 %v3497, %v3499
    %v3501 = vrot.slane %v3493, %v3500
    %v3503 = vunpack.c.l.s4 1983009808
    %v3504 = vunpack.c.0.s8 %v3503
    %v3505 = vlaneseq
    %v3506 = vshrl.u32 %v3505, 7
    %v3507 = vsub.s32 %v3504, %v3506
    %v3508 = vrot.slane %v3494, %v3507
    %v3509 = vcombine.low %v3485, %v3501
    %v3510 = vcombine.high %v3485, %v3501
    %v3512 = vunpack.c.l.s4 1934713408
    %v3513 = vunpack.c.0.s8 %v3512
    %v3514 = vlaneseq
    %v3515 = vshrl.u32 %v3514, 7
    %v3516 = vsub.s32 %v3513, %v3515
    %v3517 = vrot.slane %v3509, %v3516
    %v3519 = vunpack.c.l.s4 1934713408
    %v3520 = vunpack.c.0.s8 %v3519
    %v3521 = vlaneseq
    %v3522 = vshrl.u32 %v3521, 7
    %v3523 = vsub.s32 %v3520, %v3522
    %v3524 = vrot.slane %v3510, %v3523
    %v3525 = vcombine.low %v3492, %v3508
    %v3526 = vcombine.high %v3492, %v3508
    %v3528 = vunpack.c.l.s4 1934713408
    %v3529 = vunpack.c.0.s8 %v3528
    %v3530 = vlaneseq
    %v3531 = vshrl.u32 %v3530, 7
    %v3532 = vsub.s32 %v3529, %v3531
    %v3533 = vrot.slane %v3525, %v3532
    %v3535 = vunpack.c.l.s4 1934713408
    %v3536 = vunpack.c.0.s8 %v3535
    %v3537 = vlaneseq
    %v3538 = vshrl.u32 %v3537, 7
    %v3539 = vsub.s32 %v3536, %v3538
    %v3540 = vrot.slane %v3526, %v3539
    %v3541 = vcombine.high %v3517, 0.0
    %v3542 = vcombine.high %v3524, 0.0
    %v3543 = vcombine.high %v3533, 0.0
    %v3544 = vcombine.high %v3540, 0.0
    %v3545 = vcombine.low %v3449, %v3456
    %v3547 = vunpack.c.l.s4 1983009808
    %v3548 = vunpack.c.0.s8 %v3547
    %v3549 = vlaneseq
    %v3550 = vshrl.u32 %v3549, 7
    %v3551 = vsub.s32 %v3548, %v3550
    %v3552 = vrot.slane %v3545, %v3551
    %v3553 = vcombine.low %v3473, %v3474
    %v3555 = vunpack.c.l.s4 1983009808
    %v3556 = vunpack.c.0.s8 %v3555
    %v3557 = vlaneseq
    %v3558 = vshrl.u32 %v3557, 7
    %v3559 = vsub.s32 %v3556, %v3558
    %v3560 = vrot.slane %v3553, %v3559
    %v3561 = vcombine.low %v3465, %v3472
    %v3563 = vunpack.c.l.s4 1983009808
    %v3564 = vunpack.c.0.s8 %v3563
    %v3565 = vlaneseq
    %v3566 = vshrl.u32 %v3565, 7
    %v3567 = vsub.s32 %v3564, %v3566
    %v3568 = vrot.slane %v3561, %v3567
    %v3569 = vcombine.low %v3475, %v3476
    %v3571 = vunpack.c.l.s4 1983009808
    %v3572 = vunpack.c.0.s8 %v3571
    %v3573 = vlaneseq
    %v3574 = vshrl.u32 %v3573, 7
    %v3575 = vsub.s32 %v3572, %v3574
    %v3576 = vrot.slane %v3569, %v3575
    %v3577 = vcombine.low %v3552, %v3560
    %v3578 = vcombine.high %v3552, %v3560
    %v3580 = vunpack.c.l.s4 1934713408
    %v3581 = vunpack.c.0.s8 %v3580
    %v3582 = vlaneseq
    %v3583 = vshrl.u32 %v3582, 7
    %v3584 = vsub.s32 %v3581, %v3583
    %v3585 = vrot.slane %v3577, %v3584
    %v3587 = vunpack.c.l.s4 1934713408
    %v3588 = vunpack.c.0.s8 %v3587
    %v3589 = vlaneseq
    %v3590 = vshrl.u32 %v3589, 7
    %v3591 = vsub.s32 %v3588, %v3590
    %v3592 = vrot.slane %v3578, %v3591
    %v3593 = vcombine.low %v3568, %v3576
    %v3594 = vcombine.high %v3568, %v3576
    %v3596 = vunpack.c.l.s4 1934713408
    %v3597 = vunpack.c.0.s8 %v3596
    %v3598 = vlaneseq
    %v3599 = vshrl.u32 %v3598, 7
    %v3600 = vsub.s32 %v3597, %v3599
    %v3601 = vrot.slane %v3593, %v3600
    %v3603 = vunpack.c.l.s4 1934713408
    %v3604 = vunpack.c.0.s8 %v3603
    %v3605 = vlaneseq
    %v3606 = vshrl.u32 %v3605, 7
    %v3607 = vsub.s32 %v3604, %v3606
    %v3608 = vrot.slane %v3594, %v3607
    %v3609 = vcombine.low %v3585, %v3601
    %v3610 = vcombine.high %v3585, %v3601
    %v3611 = vcombine.low %v3592, %v3608
    %v3612 = vcombine.high %v3592, %v3608
    %v3613 = vcombine.low %v3517, %v3524
    %v3615 = vunpack.c.l.s4 1983009808
    %v3616 = vunpack.c.0.s8 %v3615
    %v3617 = vlaneseq
    %v3618 = vshrl.u32 %v3617, 7
    %v3619 = vsub.s32 %v3616, %v3618
    %v3620 = vrot.slane %v3613, %v3619
    %v3621 = vcombine.low %v3541, %v3542
    %v3623 = vunpack.c.l.s4 1983009808
    %v3624 = vunpack.c.0.s8 %v3623
    %v3625 = vlaneseq
    %v3626 = vshrl.u32 %v3625, 7
    %v3627 = vsub.s32 %v3624, %v3626
    %v3628 = vrot.slane %v3621, %v3627
    %v3629 = vcombine.low %v3533, %v3540
    %v3631 = vunpack.c.l.s4 1983009808
    %v3632 = vunpack.c.0.s8 %v3631
    %v3633 = vlaneseq
    %v3634 = vshrl.u32 %v3633, 7
    %v3635 = vsub.s32 %v3632, %v3634
    %v3636 = vrot.slane %v3629, %v3635
    %v3637 = vcombine.low %v3543, %v3544
    %v3639 = vunpack.c.l.s4 1983009808
    %v3640 = vunpack.c.0.s8 %v3639
    %v3641 = vlaneseq
    %v3642 = vshrl.u32 %v3641, 7
    %v3643 = vsub.s32 %v3640, %v3642
    %v3644 = vrot.slane %v3637, %v3643
    %v3645 = vcombine.low %v3620, %v3628
    %v3646 = vcombine.high %v3620, %v3628
    %v3648 = vunpack.c.l.s4 1934713408
    %v3649 = vunpack.c.0.s8 %v3648
    %v3650 = vlaneseq
    %v3651 = vshrl.u32 %v3650, 7
    %v3652 = vsub.s32 %v3649, %v3651
    %v3653 = vrot.slane %v3645, %v3652
    %v3655 = vunpack.c.l.s4 1934713408
    %v3656 = vunpack.c.0.s8 %v3655
    %v3657 = vlaneseq
    %v3658 = vshrl.u32 %v3657, 7
    %v3659 = vsub.s32 %v3656, %v3658
    %v3660 = vrot.slane %v3646, %v3659
    %v3661 = vcombine.low %v3636, %v3644
    %v3662 = vcombine.high %v3636, %v3644
    %v3664 = vunpack.c.l.s4 1934713408
    %v3665 = vunpack.c.0.s8 %v3664
    %v3666 = vlaneseq
    %v3667 = vshrl.u32 %v3666, 7
    %v3668 = vsub.s32 %v3665, %v3667
    %v3669 = vrot.slane %v3661, %v3668
    %v3671 = vunpack.c.l.s4 1934713408
    %v3672 = vunpack.c.0.s8 %v3671
    %v3673 = vlaneseq
    %v3674 = vshrl.u32 %v3673, 7
    %v3675 = vsub.s32 %v3672, %v3674
    %v3676 = vrot.slane %v3662, %v3675
    %v3677 = vcombine.low %v3653, %v3669
    %v3678 = vcombine.high %v3653, %v3669
    %v3679 = vcombine.low %v3660, %v3676
    %v3680 = vcombine.high %v3660, %v3676
    %3681 = vrot.lane.b32.xlu0 %v3085, 64
    %v3682 = vpop.permute.xlu0 %3681
    %3683 = vrot.lane.b32.xlu0 %v3090, 64
    %v3684 = vpop.permute.xlu0 %3683
    %3685 = vrot.lane.b32.xlu0 %v3096, 64
    %v3686 = vpop.permute.xlu0 %3685
    %3687 = vrot.lane.b32.xlu0 %v3098, 64
    %v3688 = vpop.permute.xlu0 %3687
    %3689 = vrot.lane.b32.xlu0 %v3102, 64
    %v3690 = vpop.permute.xlu0 %3689
    %3691 = vrot.lane.b32.xlu0 %v3104, 64
    %v3692 = vpop.permute.xlu0 %3691
    %3693 = vrot.lane.b32.xlu0 %v3108, 64
    %v3694 = vpop.permute.xlu0 %3693
    %3695 = vrot.lane.b32.xlu0 %v3110, 64
    %v3696 = vpop.permute.xlu0 %3695
    %v3705 = vcombine.low %v3682, %v3690
    %v3706 = vcombine.high %v3682, %v3690
    %v3708 = vunpack.c.l.s4 1983009808
    %v3709 = vunpack.c.0.s8 %v3708
    %v3710 = vlaneseq
    %v3711 = vshrl.u32 %v3710, 7
    %v3712 = vsub.s32 %v3709, %v3711
    %v3713 = vrot.slane %v3705, %v3712
    %v3715 = vunpack.c.l.s4 1983009808
    %v3716 = vunpack.c.0.s8 %v3715
    %v3717 = vlaneseq
    %v3718 = vshrl.u32 %v3717, 7
    %v3719 = vsub.s32 %v3716, %v3718
    %v3720 = vrot.slane %v3706, %v3719
    %v3721 = vcombine.low %v3686, %v3694
    %v3722 = vcombine.high %v3686, %v3694
    %v3724 = vunpack.c.l.s4 1983009808
    %v3725 = vunpack.c.0.s8 %v3724
    %v3726 = vlaneseq
    %v3727 = vshrl.u32 %v3726, 7
    %v3728 = vsub.s32 %v3725, %v3727
    %v3729 = vrot.slane %v3721, %v3728
    %v3731 = vunpack.c.l.s4 1983009808
    %v3732 = vunpack.c.0.s8 %v3731
    %v3733 = vlaneseq
    %v3734 = vshrl.u32 %v3733, 7
    %v3735 = vsub.s32 %v3732, %v3734
    %v3736 = vrot.slane %v3722, %v3735
    %v3737 = vcombine.low %v3713, %v3729
    %v3738 = vcombine.high %v3713, %v3729
    %v3740 = vunpack.c.l.s4 1934713408
    %v3741 = vunpack.c.0.s8 %v3740
    %v3742 = vlaneseq
    %v3743 = vshrl.u32 %v3742, 7
    %v3744 = vsub.s32 %v3741, %v3743
    %v3745 = vrot.slane %v3737, %v3744
    %v3747 = vunpack.c.l.s4 1934713408
    %v3748 = vunpack.c.0.s8 %v3747
    %v3749 = vlaneseq
    %v3750 = vshrl.u32 %v3749, 7
    %v3751 = vsub.s32 %v3748, %v3750
    %v3752 = vrot.slane %v3738, %v3751
    %v3753 = vcombine.low %v3720, %v3736
    %v3754 = vcombine.high %v3720, %v3736
    %v3756 = vunpack.c.l.s4 1934713408
    %v3757 = vunpack.c.0.s8 %v3756
    %v3758 = vlaneseq
    %v3759 = vshrl.u32 %v3758, 7
    %v3760 = vsub.s32 %v3757, %v3759
    %v3761 = vrot.slane %v3753, %v3760
    %v3763 = vunpack.c.l.s4 1934713408
    %v3764 = vunpack.c.0.s8 %v3763
    %v3765 = vlaneseq
    %v3766 = vshrl.u32 %v3765, 7
    %v3767 = vsub.s32 %v3764, %v3766
    %v3768 = vrot.slane %v3754, %v3767
    %v3769 = vcombine.high %v3745, 0.0
    %v3770 = vcombine.high %v3752, 0.0
    %v3771 = vcombine.high %v3761, 0.0
    %v3772 = vcombine.high %v3768, 0.0
    %v3773 = vcombine.low %v3684, %v3692
    %v3774 = vcombine.high %v3684, %v3692
    %v3776 = vunpack.c.l.s4 1983009808
    %v3777 = vunpack.c.0.s8 %v3776
    %v3778 = vlaneseq
    %v3779 = vshrl.u32 %v3778, 7
    %v3780 = vsub.s32 %v3777, %v3779
    %v3781 = vrot.slane %v3773, %v3780
    %v3783 = vunpack.c.l.s4 1983009808
    %v3784 = vunpack.c.0.s8 %v3783
    %v3785 = vlaneseq
    %v3786 = vshrl.u32 %v3785, 7
    %v3787 = vsub.s32 %v3784, %v3786
    %v3788 = vrot.slane %v3774, %v3787
    %v3789 = vcombine.low %v3688, %v3696
    %v3790 = vcombine.high %v3688, %v3696
    %v3792 = vunpack.c.l.s4 1983009808
    %v3793 = vunpack.c.0.s8 %v3792
    %v3794 = vlaneseq
    %v3795 = vshrl.u32 %v3794, 7
    %v3796 = vsub.s32 %v3793, %v3795
    %v3797 = vrot.slane %v3789, %v3796
    %v3799 = vunpack.c.l.s4 1983009808
    %v3800 = vunpack.c.0.s8 %v3799
    %v3801 = vlaneseq
    %v3802 = vshrl.u32 %v3801, 7
    %v3803 = vsub.s32 %v3800, %v3802
    %v3804 = vrot.slane %v3790, %v3803
    %v3805 = vcombine.low %v3781, %v3797
    %v3806 = vcombine.high %v3781, %v3797
    %v3808 = vunpack.c.l.s4 1934713408
    %v3809 = vunpack.c.0.s8 %v3808
    %v3810 = vlaneseq
    %v3811 = vshrl.u32 %v3810, 7
    %v3812 = vsub.s32 %v3809, %v3811
    %v3813 = vrot.slane %v3805, %v3812
    %v3815 = vunpack.c.l.s4 1934713408
    %v3816 = vunpack.c.0.s8 %v3815
    %v3817 = vlaneseq
    %v3818 = vshrl.u32 %v3817, 7
    %v3819 = vsub.s32 %v3816, %v3818
    %v3820 = vrot.slane %v3806, %v3819
    %v3821 = vcombine.low %v3788, %v3804
    %v3822 = vcombine.high %v3788, %v3804
    %v3824 = vunpack.c.l.s4 1934713408
    %v3825 = vunpack.c.0.s8 %v3824
    %v3826 = vlaneseq
    %v3827 = vshrl.u32 %v3826, 7
    %v3828 = vsub.s32 %v3825, %v3827
    %v3829 = vrot.slane %v3821, %v3828
    %v3831 = vunpack.c.l.s4 1934713408
    %v3832 = vunpack.c.0.s8 %v3831
    %v3833 = vlaneseq
    %v3834 = vshrl.u32 %v3833, 7
    %v3835 = vsub.s32 %v3832, %v3834
    %v3836 = vrot.slane %v3822, %v3835
    %v3837 = vcombine.high %v3813, 0.0
    %v3838 = vcombine.high %v3820, 0.0
    %v3839 = vcombine.high %v3829, 0.0
    %v3840 = vcombine.high %v3836, 0.0
    %v3841 = vcombine.low %v3745, %v3752
    %v3843 = vunpack.c.l.s4 1983009808
    %v3844 = vunpack.c.0.s8 %v3843
    %v3845 = vlaneseq
    %v3846 = vshrl.u32 %v3845, 7
    %v3847 = vsub.s32 %v3844, %v3846
    %v3848 = vrot.slane %v3841, %v3847
    %v3849 = vcombine.low %v3769, %v3770
    %v3851 = vunpack.c.l.s4 1983009808
    %v3852 = vunpack.c.0.s8 %v3851
    %v3853 = vlaneseq
    %v3854 = vshrl.u32 %v3853, 7
    %v3855 = vsub.s32 %v3852, %v3854
    %v3856 = vrot.slane %v3849, %v3855
    %v3857 = vcombine.low %v3761, %v3768
    %v3859 = vunpack.c.l.s4 1983009808
    %v3860 = vunpack.c.0.s8 %v3859
    %v3861 = vlaneseq
    %v3862 = vshrl.u32 %v3861, 7
    %v3863 = vsub.s32 %v3860, %v3862
    %v3864 = vrot.slane %v3857, %v3863
    %v3865 = vcombine.low %v3771, %v3772
    %v3867 = vunpack.c.l.s4 1983009808
    %v3868 = vunpack.c.0.s8 %v3867
    %v3869 = vlaneseq
    %v3870 = vshrl.u32 %v3869, 7
    %v3871 = vsub.s32 %v3868, %v3870
    %v3872 = vrot.slane %v3865, %v3871
    %v3873 = vcombine.low %v3848, %v3856
    %v3874 = vcombine.high %v3848, %v3856
    %v3876 = vunpack.c.l.s4 1934713408
    %v3877 = vunpack.c.0.s8 %v3876
    %v3878 = vlaneseq
    %v3879 = vshrl.u32 %v3878, 7
    %v3880 = vsub.s32 %v3877, %v3879
    %v3881 = vrot.slane %v3873, %v3880
    %v3883 = vunpack.c.l.s4 1934713408
    %v3884 = vunpack.c.0.s8 %v3883
    %v3885 = vlaneseq
    %v3886 = vshrl.u32 %v3885, 7
    %v3887 = vsub.s32 %v3884, %v3886
    %v3888 = vrot.slane %v3874, %v3887
    %v3889 = vcombine.low %v3864, %v3872
    %v3890 = vcombine.high %v3864, %v3872
    %v3892 = vunpack.c.l.s4 1934713408
    %v3893 = vunpack.c.0.s8 %v3892
    %v3894 = vlaneseq
    %v3895 = vshrl.u32 %v3894, 7
    %v3896 = vsub.s32 %v3893, %v3895
    %v3897 = vrot.slane %v3889, %v3896
    %v3899 = vunpack.c.l.s4 1934713408
    %v3900 = vunpack.c.0.s8 %v3899
    %v3901 = vlaneseq
    %v3902 = vshrl.u32 %v3901, 7
    %v3903 = vsub.s32 %v3900, %v3902
    %v3904 = vrot.slane %v3890, %v3903
    %v3905 = vcombine.low %v3881, %v3897
    %v3906 = vcombine.high %v3881, %v3897
    %v3907 = vcombine.low %v3888, %v3904
    %v3908 = vcombine.high %v3888, %v3904
    %v3909 = vcombine.low %v3813, %v3820
    %v3911 = vunpack.c.l.s4 1983009808
    %v3912 = vunpack.c.0.s8 %v3911
    %v3913 = vlaneseq
    %v3914 = vshrl.u32 %v3913, 7
    %v3915 = vsub.s32 %v3912, %v3914
    %v3916 = vrot.slane %v3909, %v3915
    %v3917 = vcombine.low %v3837, %v3838
    %v3919 = vunpack.c.l.s4 1983009808
    %v3920 = vunpack.c.0.s8 %v3919
    %v3921 = vlaneseq
    %v3922 = vshrl.u32 %v3921, 7
    %v3923 = vsub.s32 %v3920, %v3922
    %v3924 = vrot.slane %v3917, %v3923
    %v3925 = vcombine.low %v3829, %v3836
    %v3927 = vunpack.c.l.s4 1983009808
    %v3928 = vunpack.c.0.s8 %v3927
    %v3929 = vlaneseq
    %v3930 = vshrl.u32 %v3929, 7
    %v3931 = vsub.s32 %v3928, %v3930
    %v3932 = vrot.slane %v3925, %v3931
    %v3933 = vcombine.low %v3839, %v3840
    %v3935 = vunpack.c.l.s4 1983009808
    %v3936 = vunpack.c.0.s8 %v3935
    %v3937 = vlaneseq
    %v3938 = vshrl.u32 %v3937, 7
    %v3939 = vsub.s32 %v3936, %v3938
    %v3940 = vrot.slane %v3933, %v3939
    %v3941 = vcombine.low %v3916, %v3924
    %v3942 = vcombine.high %v3916, %v3924
    %v3944 = vunpack.c.l.s4 1934713408
    %v3945 = vunpack.c.0.s8 %v3944
    %v3946 = vlaneseq
    %v3947 = vshrl.u32 %v3946, 7
    %v3948 = vsub.s32 %v3945, %v3947
    %v3949 = vrot.slane %v3941, %v3948
    %v3951 = vunpack.c.l.s4 1934713408
    %v3952 = vunpack.c.0.s8 %v3951
    %v3953 = vlaneseq
    %v3954 = vshrl.u32 %v3953, 7
    %v3955 = vsub.s32 %v3952, %v3954
    %v3956 = vrot.slane %v3942, %v3955
    %v3957 = vcombine.low %v3932, %v3940
    %v3958 = vcombine.high %v3932, %v3940
    %v3960 = vunpack.c.l.s4 1934713408
    %v3961 = vunpack.c.0.s8 %v3960
    %v3962 = vlaneseq
    %v3963 = vshrl.u32 %v3962, 7
    %v3964 = vsub.s32 %v3961, %v3963
    %v3965 = vrot.slane %v3957, %v3964
    %v3967 = vunpack.c.l.s4 1934713408
    %v3968 = vunpack.c.0.s8 %v3967
    %v3969 = vlaneseq
    %v3970 = vshrl.u32 %v3969, 7
    %v3971 = vsub.s32 %v3968, %v3970
    %v3972 = vrot.slane %v3958, %v3971
    %v3973 = vcombine.low %v3949, %v3965
    %v3974 = vcombine.high %v3949, %v3965
    %v3975 = vcombine.low %v3956, %v3972
    %v3976 = vcombine.high %v3956, %v3972
    %v3978 = vsel %vm1038, %v3313, 0
    %v3981 = vsel %vm1038, %v3609, 0
    %3983 = vmatprep.subr.mxu0 0.0
    %3984 = vmatpush1.xpose.msra.mxu0 %v3981
    %3985 = vmatprep.subr.mxu0 0.0
    %3986 = vmatpush1.xpose.msra.mxu0 0.0
    %3987 = vmatprep.subr.mxu0 0.0
    %3988 = vmatpush1.xpose.msra.mxu0 0.0
    %3989 = vmatprep.subr.mxu0 0.0
    %3990 = vmatpush1.xpose.msra.mxu0 0.0
    %3991 = vmatprep.subr.mxu0 0.0
    %3992 = vmatpush1.xpose.msra.mxu0 0.0
    %3993 = vmatprep.subr.mxu0 0.0
    %3994 = vmatpush1.xpose.msra.mxu0 0.0
    %3995 = vmatprep.subr.mxu0 0.0
    %3996 = vmatpush1.xpose.msra.mxu0 0.0
    %3997 = vmatprep.subr.mxu0 0.0
    %3998 = vmatpush1.xpose.msra.mxu0 0.0
    %3999 = vmatprep.subr.mxu0 0.0
    %4000 = vmatpush1.xpose.msra.mxu0 0.0
    %4001 = vmatprep.subr.mxu0 0.0
    %4002 = vmatpush1.xpose.msra.mxu0 0.0
    %4003 = vmatprep.subr.mxu0 0.0
    %4004 = vmatpush1.xpose.msra.mxu0 0.0
    %4005 = vmatprep.subr.mxu0 0.0
    %4006 = vmatpush1.xpose.msra.mxu0 0.0
    %4007 = vmatprep.subr.mxu0 0.0
    %4008 = vmatpush1.xpose.msra.mxu0 0.0
    %4009 = vmatprep.subr.mxu0 0.0
    %4010 = vmatpush1.xpose.msra.mxu0 0.0
    %4011 = vmatprep.subr.mxu0 0.0
    %4012 = vmatpush1.xpose.msra.mxu0 0.0
    %4013 = vmatprep.subr.mxu0 0.0
    %4014 = vmatpush1.xpose.msra.mxu0 0.0
    %4015 = vmatprep.subr.mxu0 0.0
    %4016 = vmatpush1.xpose.msra.mxu0 0.0
    %4017 = vmatprep.subr.mxu0 0.0
    %4018 = vmatpush1.xpose.msra.mxu0 0.0
    %4019 = vmatprep.subr.mxu0 0.0
    %4020 = vmatpush1.xpose.msra.mxu0 0.0
    %4021 = vmatprep.subr.mxu0 0.0
    %4022 = vmatpush1.xpose.msra.mxu0 0.0
    %4023 = vmatprep.subr.mxu0 0.0
    %4024 = vmatpush1.xpose.msra.mxu0 0.0
    %4025 = vmatprep.subr.mxu0 0.0
    %4026 = vmatpush1.xpose.msra.mxu0 0.0
    %4027 = vmatprep.subr.mxu0 0.0
    %4028 = vmatpush1.xpose.msra.mxu0 0.0
    %4029 = vmatprep.subr.mxu0 0.0
    %4030 = vmatpush1.xpose.msra.mxu0 0.0
    %4031 = vmatprep.subr.mxu0 0.0
    %4032 = vmatpush1.xpose.msra.mxu0 0.0
    %4033 = vmatprep.subr.mxu0 0.0
    %4034 = vmatpush1.xpose.msra.mxu0 0.0
    %4035 = vmatprep.subr.mxu0 0.0
    %4036 = vmatpush1.xpose.msra.mxu0 0.0
    %4037 = vmatprep.subr.mxu0 0.0
    %4038 = vmatpush1.xpose.msra.mxu0 0.0
    %4039 = vmatprep.subr.mxu0 0.0
    %4040 = vmatpush1.xpose.msra.mxu0 0.0
    %4041 = vmatprep.subr.mxu0 0.0
    %4042 = vmatpush1.xpose.msra.mxu0 0.0
    %4043 = vmatprep.subr.mxu0 0.0
    %4044 = vmatpush1.xpose.msra.mxu0 0.0
    %4045 = vmatprep.subr.mxu0 0.0
    %4046 = vmatpush1.xpose.msra.mxu0 0.0
    %4047 = vmatprep.mubr.f32.mxu0 0.0
    %4048 = vmatmul.mubr.f32.gmra.mrb[0].mxu0 %v3978
    %v4049 = vpop.f32.mrb[0].mxu0
    %v4050 = vadd.f32 0.0, %v4049
    %v4051 = vpop.f32.mrb[0].mxu0
    %4052 = vdwg.mxu0
    %v4054 = vsel %vm1038, %v3314, 0
    %v4057 = vsel %vm1038, %v3610, 0
    %4059 = vmatprep.subr.mxu0 0.0
    %4060 = vmatpush1.xpose.msra.mxu0 %v4057
    %4061 = vmatprep.subr.mxu0 0.0
    %4062 = vmatpush1.xpose.msra.mxu0 0.0
    %4063 = vmatprep.subr.mxu0 0.0
    %4064 = vmatpush1.xpose.msra.mxu0 0.0
    %4065 = vmatprep.subr.mxu0 0.0
    %4066 = vmatpush1.xpose.msra.mxu0 0.0
    %4067 = vmatprep.subr.mxu0 0.0
    %4068 = vmatpush1.xpose.msra.mxu0 0.0
    %4069 = vmatprep.subr.mxu0 0.0
    %4070 = vmatpush1.xpose.msra.mxu0 0.0
    %4071 = vmatprep.subr.mxu0 0.0
    %4072 = vmatpush1.xpose.msra.mxu0 0.0
    %4073 = vmatprep.subr.mxu0 0.0
    %4074 = vmatpush1.xpose.msra.mxu0 0.0
    %4075 = vmatprep.subr.mxu0 0.0
    %4076 = vmatpush1.xpose.msra.mxu0 0.0
    %4077 = vmatprep.subr.mxu0 0.0
    %4078 = vmatpush1.xpose.msra.mxu0 0.0
    %4079 = vmatprep.subr.mxu0 0.0
    %4080 = vmatpush1.xpose.msra.mxu0 0.0
    %4081 = vmatprep.subr.mxu0 0.0
    %4082 = vmatpush1.xpose.msra.mxu0 0.0
    %4083 = vmatprep.subr.mxu0 0.0
    %4084 = vmatpush1.xpose.msra.mxu0 0.0
    %4085 = vmatprep.subr.mxu0 0.0
    %4086 = vmatpush1.xpose.msra.mxu0 0.0
    %4087 = vmatprep.subr.mxu0 0.0
    %4088 = vmatpush1.xpose.msra.mxu0 0.0
    %4089 = vmatprep.subr.mxu0 0.0
    %4090 = vmatpush1.xpose.msra.mxu0 0.0
    %4091 = vmatprep.subr.mxu0 0.0
    %4092 = vmatpush1.xpose.msra.mxu0 0.0
    %4093 = vmatprep.subr.mxu0 0.0
    %4094 = vmatpush1.xpose.msra.mxu0 0.0
    %4095 = vmatprep.subr.mxu0 0.0
    %4096 = vmatpush1.xpose.msra.mxu0 0.0
    %4097 = vmatprep.subr.mxu0 0.0
    %4098 = vmatpush1.xpose.msra.mxu0 0.0
    %4099 = vmatprep.subr.mxu0 0.0
    %4100 = vmatpush1.xpose.msra.mxu0 0.0
    %4101 = vmatprep.subr.mxu0 0.0
    %4102 = vmatpush1.xpose.msra.mxu0 0.0
    %4103 = vmatprep.subr.mxu0 0.0
    %4104 = vmatpush1.xpose.msra.mxu0 0.0
    %4105 = vmatprep.subr.mxu0 0.0
    %4106 = vmatpush1.xpose.msra.mxu0 0.0
    %4107 = vmatprep.subr.mxu0 0.0
    %4108 = vmatpush1.xpose.msra.mxu0 0.0
    %4109 = vmatprep.subr.mxu0 0.0
    %4110 = vmatpush1.xpose.msra.mxu0 0.0
    %4111 = vmatprep.subr.mxu0 0.0
    %4112 = vmatpush1.xpose.msra.mxu0 0.0
    %4113 = vmatprep.subr.mxu0 0.0
    %4114 = vmatpush1.xpose.msra.mxu0 0.0
    %4115 = vmatprep.subr.mxu0 0.0
    %4116 = vmatpush1.xpose.msra.mxu0 0.0
    %4117 = vmatprep.subr.mxu0 0.0
    %4118 = vmatpush1.xpose.msra.mxu0 0.0
    %4119 = vmatprep.subr.mxu0 0.0
    %4120 = vmatpush1.xpose.msra.mxu0 0.0
    %4121 = vmatprep.subr.mxu0 0.0
    %4122 = vmatpush1.xpose.msra.mxu0 0.0
    %4123 = vmatprep.mubr.f32.mxu0 0.0
    %4124 = vmatmul.mubr.f32.gmra.mrb[0].mxu0 %v4054
    %v4125 = vpop.f32.mrb[0].mxu0
    %v4126 = vadd.f32 0.0, %v4125
    %v4127 = vpop.f32.mrb[0].mxu0
    %4128 = vdwg.mxu0
    %v4130 = vsel %vm1038, %v3315, 0
    %v4133 = vsel %vm1038, %v3611, 0
    %4135 = vmatprep.subr.mxu0 0.0
    %4136 = vmatpush1.xpose.msra.mxu0 %v4133
    %4137 = vmatprep.subr.mxu0 0.0
    %4138 = vmatpush1.xpose.msra.mxu0 0.0
    %4139 = vmatprep.subr.mxu0 0.0
    %4140 = vmatpush1.xpose.msra.mxu0 0.0
    %4141 = vmatprep.subr.mxu0 0.0
    %4142 = vmatpush1.xpose.msra.mxu0 0.0
    %4143 = vmatprep.subr.mxu0 0.0
    %4144 = vmatpush1.xpose.msra.mxu0 0.0
    %4145 = vmatprep.subr.mxu0 0.0
    %4146 = vmatpush1.xpose.msra.mxu0 0.0
    %4147 = vmatprep.subr.mxu0 0.0
    %4148 = vmatpush1.xpose.msra.mxu0 0.0
    %4149 = vmatprep.subr.mxu0 0.0
    %4150 = vmatpush1.xpose.msra.mxu0 0.0
    %4151 = vmatprep.subr.mxu0 0.0
    %4152 = vmatpush1.xpose.msra.mxu0 0.0
    %4153 = vmatprep.subr.mxu0 0.0
    %4154 = vmatpush1.xpose.msra.mxu0 0.0
    %4155 = vmatprep.subr.mxu0 0.0
    %4156 = vmatpush1.xpose.msra.mxu0 0.0
    %4157 = vmatprep.subr.mxu0 0.0
    %4158 = vmatpush1.xpose.msra.mxu0 0.0
    %4159 = vmatprep.subr.mxu0 0.0
    %4160 = vmatpush1.xpose.msra.mxu0 0.0
    %4161 = vmatprep.subr.mxu0 0.0
    %4162 = vmatpush1.xpose.msra.mxu0 0.0
    %4163 = vmatprep.subr.mxu0 0.0
    %4164 = vmatpush1.xpose.msra.mxu0 0.0
    %4165 = vmatprep.subr.mxu0 0.0
    %4166 = vmatpush1.xpose.msra.mxu0 0.0
    %4167 = vmatprep.subr.mxu0 0.0
    %4168 = vmatpush1.xpose.msra.mxu0 0.0
    %4169 = vmatprep.subr.mxu0 0.0
    %4170 = vmatpush1.xpose.msra.mxu0 0.0
    %4171 = vmatprep.subr.mxu0 0.0
    %4172 = vmatpush1.xpose.msra.mxu0 0.0
    %4173 = vmatprep.subr.mxu0 0.0
    %4174 = vmatpush1.xpose.msra.mxu0 0.0
    %4175 = vmatprep.subr.mxu0 0.0
    %4176 = vmatpush1.xpose.msra.mxu0 0.0
    %4177 = vmatprep.subr.mxu0 0.0
    %4178 = vmatpush1.xpose.msra.mxu0 0.0
    %4179 = vmatprep.subr.mxu0 0.0
    %4180 = vmatpush1.xpose.msra.mxu0 0.0
    %4181 = vmatprep.subr.mxu0 0.0
    %4182 = vmatpush1.xpose.msra.mxu0 0.0
    %4183 = vmatprep.subr.mxu0 0.0
    %4184 = vmatpush1.xpose.msra.mxu0 0.0
    %4185 = vmatprep.subr.mxu0 0.0
    %4186 = vmatpush1.xpose.msra.mxu0 0.0
    %4187 = vmatprep.subr.mxu0 0.0
    %4188 = vmatpush1.xpose.msra.mxu0 0.0
    %4189 = vmatprep.subr.mxu0 0.0
    %4190 = vmatpush1.xpose.msra.mxu0 0.0
    %4191 = vmatprep.subr.mxu0 0.0
    %4192 = vmatpush1.xpose.msra.mxu0 0.0
    %4193 = vmatprep.subr.mxu0 0.0
    %4194 = vmatpush1.xpose.msra.mxu0 0.0
    %4195 = vmatprep.subr.mxu0 0.0
    %4196 = vmatpush1.xpose.msra.mxu0 0.0
    %4197 = vmatprep.subr.mxu0 0.0
    %4198 = vmatpush1.xpose.msra.mxu0 0.0
    %4199 = vmatprep.mubr.f32.mxu0 0.0
    %4200 = vmatmul.mubr.f32.gmra.mrb[0].mxu0 %v4130
    %v4201 = vpop.f32.mrb[0].mxu0
    %v4202 = vadd.f32 0.0, %v4201
    %v4203 = vpop.f32.mrb[0].mxu0
    %4204 = vdwg.mxu0
    %v4206 = vsel %vm1038, %v3316, 0
    %v4209 = vsel %vm1038, %v3612, 0
    %4211 = vmatprep.subr.mxu0 0.0
    %4212 = vmatpush1.xpose.msra.mxu0 %v4209
    %4213 = vmatprep.subr.mxu0 0.0
    %4214 = vmatpush1.xpose.msra.mxu0 0.0
    %4215 = vmatprep.subr.mxu0 0.0
    %4216 = vmatpush1.xpose.msra.mxu0 0.0
    %4217 = vmatprep.subr.mxu0 0.0
    %4218 = vmatpush1.xpose.msra.mxu0 0.0
    %4219 = vmatprep.subr.mxu0 0.0
    %4220 = vmatpush1.xpose.msra.mxu0 0.0
    %4221 = vmatprep.subr.mxu0 0.0
    %4222 = vmatpush1.xpose.msra.mxu0 0.0
    %4223 = vmatprep.subr.mxu0 0.0
    %4224 = vmatpush1.xpose.msra.mxu0 0.0
    %4225 = vmatprep.subr.mxu0 0.0
    %4226 = vmatpush1.xpose.msra.mxu0 0.0
    %4227 = vmatprep.subr.mxu0 0.0
    %4228 = vmatpush1.xpose.msra.mxu0 0.0
    %4229 = vmatprep.subr.mxu0 0.0
    %4230 = vmatpush1.xpose.msra.mxu0 0.0
    %4231 = vmatprep.subr.mxu0 0.0
    %4232 = vmatpush1.xpose.msra.mxu0 0.0
    %4233 = vmatprep.subr.mxu0 0.0
    %4234 = vmatpush1.xpose.msra.mxu0 0.0
    %4235 = vmatprep.subr.mxu0 0.0
    %4236 = vmatpush1.xpose.msra.mxu0 0.0
    %4237 = vmatprep.subr.mxu0 0.0
    %4238 = vmatpush1.xpose.msra.mxu0 0.0
    %4239 = vmatprep.subr.mxu0 0.0
    %4240 = vmatpush1.xpose.msra.mxu0 0.0
    %4241 = vmatprep.subr.mxu0 0.0
    %4242 = vmatpush1.xpose.msra.mxu0 0.0
    %4243 = vmatprep.subr.mxu0 0.0
    %4244 = vmatpush1.xpose.msra.mxu0 0.0
    %4245 = vmatprep.subr.mxu0 0.0
    %4246 = vmatpush1.xpose.msra.mxu0 0.0
    %4247 = vmatprep.subr.mxu0 0.0
    %4248 = vmatpush1.xpose.msra.mxu0 0.0
    %4249 = vmatprep.subr.mxu0 0.0
    %4250 = vmatpush1.xpose.msra.mxu0 0.0
    %4251 = vmatprep.subr.mxu0 0.0
    %4252 = vmatpush1.xpose.msra.mxu0 0.0
    %4253 = vmatprep.subr.mxu0 0.0
    %4254 = vmatpush1.xpose.msra.mxu0 0.0
    %4255 = vmatprep.subr.mxu0 0.0
    %4256 = vmatpush1.xpose.msra.mxu0 0.0
    %4257 = vmatprep.subr.mxu0 0.0
    %4258 = vmatpush1.xpose.msra.mxu0 0.0
    %4259 = vmatprep.subr.mxu0 0.0
    %4260 = vmatpush1.xpose.msra.mxu0 0.0
    %4261 = vmatprep.subr.mxu0 0.0
    %4262 = vmatpush1.xpose.msra.mxu0 0.0
    %4263 = vmatprep.subr.mxu0 0.0
    %4264 = vmatpush1.xpose.msra.mxu0 0.0
    %4265 = vmatprep.subr.mxu0 0.0
    %4266 = vmatpush1.xpose.msra.mxu0 0.0
    %4267 = vmatprep.subr.mxu0 0.0
    %4268 = vmatpush1.xpose.msra.mxu0 0.0
    %4269 = vmatprep.subr.mxu0 0.0
    %4270 = vmatpush1.xpose.msra.mxu0 0.0
    %4271 = vmatprep.subr.mxu0 0.0
    %4272 = vmatpush1.xpose.msra.mxu0 0.0
    %4273 = vmatprep.subr.mxu0 0.0
    %4274 = vmatpush1.xpose.msra.mxu0 0.0
    %4275 = vmatprep.mubr.f32.mxu0 0.0
    %4276 = vmatmul.mubr.f32.gmra.mrb[0].mxu0 %v4206
    %v4277 = vpop.f32.mrb[0].mxu0
    %v4278 = vadd.f32 0.0, %v4277
    %v4279 = vpop.f32.mrb[0].mxu0
    %4280 = vdwg.mxu0
    %v4282 = vsel %vm1038, %v3381, 0
    %v4285 = vsel %vm1038, %v3677, 0
    %4287 = vmatprep.subr.mxu0 0.0
    %4288 = vmatpush1.xpose.msra.mxu0 %v4285
    %4289 = vmatprep.subr.mxu0 0.0
    %4290 = vmatpush1.xpose.msra.mxu0 0.0
    %4291 = vmatprep.subr.mxu0 0.0
    %4292 = vmatpush1.xpose.msra.mxu0 0.0
    %4293 = vmatprep.subr.mxu0 0.0
    %4294 = vmatpush1.xpose.msra.mxu0 0.0
    %4295 = vmatprep.subr.mxu0 0.0
    %4296 = vmatpush1.xpose.msra.mxu0 0.0
    %4297 = vmatprep.subr.mxu0 0.0
    %4298 = vmatpush1.xpose.msra.mxu0 0.0
    %4299 = vmatprep.subr.mxu0 0.0
    %4300 = vmatpush1.xpose.msra.mxu0 0.0
    %4301 = vmatprep.subr.mxu0 0.0
    %4302 = vmatpush1.xpose.msra.mxu0 0.0
    %4303 = vmatprep.subr.mxu0 0.0
    %4304 = vmatpush1.xpose.msra.mxu0 0.0
    %4305 = vmatprep.subr.mxu0 0.0
    %4306 = vmatpush1.xpose.msra.mxu0 0.0
    %4307 = vmatprep.subr.mxu0 0.0
    %4308 = vmatpush1.xpose.msra.mxu0 0.0
    %4309 = vmatprep.subr.mxu0 0.0
    %4310 = vmatpush1.xpose.msra.mxu0 0.0
    %4311 = vmatprep.subr.mxu0 0.0
    %4312 = vmatpush1.xpose.msra.mxu0 0.0
    %4313 = vmatprep.subr.mxu0 0.0
    %4314 = vmatpush1.xpose.msra.mxu0 0.0
    %4315 = vmatprep.subr.mxu0 0.0
    %4316 = vmatpush1.xpose.msra.mxu0 0.0
    %4317 = vmatprep.subr.mxu0 0.0
    %4318 = vmatpush1.xpose.msra.mxu0 0.0
    %4319 = vmatprep.subr.mxu0 0.0
    %4320 = vmatpush1.xpose.msra.mxu0 0.0
    %4321 = vmatprep.subr.mxu0 0.0
    %4322 = vmatpush1.xpose.msra.mxu0 0.0
    %4323 = vmatprep.subr.mxu0 0.0
    %4324 = vmatpush1.xpose.msra.mxu0 0.0
    %4325 = vmatprep.subr.mxu0 0.0
    %4326 = vmatpush1.xpose.msra.mxu0 0.0
    %4327 = vmatprep.subr.mxu0 0.0
    %4328 = vmatpush1.xpose.msra.mxu0 0.0
    %4329 = vmatprep.subr.mxu0 0.0
    %4330 = vmatpush1.xpose.msra.mxu0 0.0
    %4331 = vmatprep.subr.mxu0 0.0
    %4332 = vmatpush1.xpose.msra.mxu0 0.0
    %4333 = vmatprep.subr.mxu0 0.0
    %4334 = vmatpush1.xpose.msra.mxu0 0.0
    %4335 = vmatprep.subr.mxu0 0.0
    %4336 = vmatpush1.xpose.msra.mxu0 0.0
    %4337 = vmatprep.subr.mxu0 0.0
    %4338 = vmatpush1.xpose.msra.mxu0 0.0
    %4339 = vmatprep.subr.mxu0 0.0
    %4340 = vmatpush1.xpose.msra.mxu0 0.0
    %4341 = vmatprep.subr.mxu0 0.0
    %4342 = vmatpush1.xpose.msra.mxu0 0.0
    %4343 = vmatprep.subr.mxu0 0.0
    %4344 = vmatpush1.xpose.msra.mxu0 0.0
    %4345 = vmatprep.subr.mxu0 0.0
    %4346 = vmatpush1.xpose.msra.mxu0 0.0
    %4347 = vmatprep.subr.mxu0 0.0
    %4348 = vmatpush1.xpose.msra.mxu0 0.0
    %4349 = vmatprep.subr.mxu0 0.0
    %4350 = vmatpush1.xpose.msra.mxu0 0.0
    %4351 = vmatprep.mubr.f32.mxu0 0.0
    %4352 = vmatmul.mubr.f32.gmra.mrb[0].mxu0 %v4282
    %v4353 = vpop.f32.mrb[0].mxu0
    %v4354 = vadd.f32 0.0, %v4353
    %v4355 = vpop.f32.mrb[0].mxu0
    %4356 = vdwg.mxu0
    %v4358 = vsel %vm1038, %v3382, 0
    %v4361 = vsel %vm1038, %v3678, 0
    %4363 = vmatprep.subr.mxu0 0.0
    %4364 = vmatpush1.xpose.msra.mxu0 %v4361
    %4365 = vmatprep.subr.mxu0 0.0
    %4366 = vmatpush1.xpose.msra.mxu0 0.0
    %4367 = vmatprep.subr.mxu0 0.0
    %4368 = vmatpush1.xpose.msra.mxu0 0.0
    %4369 = vmatprep.subr.mxu0 0.0
    %4370 = vmatpush1.xpose.msra.mxu0 0.0
    %4371 = vmatprep.subr.mxu0 0.0
    %4372 = vmatpush1.xpose.msra.mxu0 0.0
    %4373 = vmatprep.subr.mxu0 0.0
    %4374 = vmatpush1.xpose.msra.mxu0 0.0
    %4375 = vmatprep.subr.mxu0 0.0
    %4376 = vmatpush1.xpose.msra.mxu0 0.0
    %4377 = vmatprep.subr.mxu0 0.0
    %4378 = vmatpush1.xpose.msra.mxu0 0.0
    %4379 = vmatprep.subr.mxu0 0.0
    %4380 = vmatpush1.xpose.msra.mxu0 0.0
    %4381 = vmatprep.subr.mxu0 0.0
    %4382 = vmatpush1.xpose.msra.mxu0 0.0
    %4383 = vmatprep.subr.mxu0 0.0
    %4384 = vmatpush1.xpose.msra.mxu0 0.0
    %4385 = vmatprep.subr.mxu0 0.0
    %4386 = vmatpush1.xpose.msra.mxu0 0.0
    %4387 = vmatprep.subr.mxu0 0.0
    %4388 = vmatpush1.xpose.msra.mxu0 0.0
    %4389 = vmatprep.subr.mxu0 0.0
    %4390 = vmatpush1.xpose.msra.mxu0 0.0
    %4391 = vmatprep.subr.mxu0 0.0
    %4392 = vmatpush1.xpose.msra.mxu0 0.0
    %4393 = vmatprep.subr.mxu0 0.0
    %4394 = vmatpush1.xpose.msra.mxu0 0.0
    %4395 = vmatprep.subr.mxu0 0.0
    %4396 = vmatpush1.xpose.msra.mxu0 0.0
    %4397 = vmatprep.subr.mxu0 0.0
    %4398 = vmatpush1.xpose.msra.mxu0 0.0
    %4399 = vmatprep.subr.mxu0 0.0
    %4400 = vmatpush1.xpose.msra.mxu0 0.0
    %4401 = vmatprep.subr.mxu0 0.0
    %4402 = vmatpush1.xpose.msra.mxu0 0.0
    %4403 = vmatprep.subr.mxu0 0.0
    %4404 = vmatpush1.xpose.msra.mxu0 0.0
    %4405 = vmatprep.subr.mxu0 0.0
    %4406 = vmatpush1.xpose.msra.mxu0 0.0
    %4407 = vmatprep.subr.mxu0 0.0
    %4408 = vmatpush1.xpose.msra.mxu0 0.0
    %4409 = vmatprep.subr.mxu0 0.0
    %4410 = vmatpush1.xpose.msra.mxu0 0.0
    %4411 = vmatprep.subr.mxu0 0.0
    %4412 = vmatpush1.xpose.msra.mxu0 0.0
    %4413 = vmatprep.subr.mxu0 0.0
    %4414 = vmatpush1.xpose.msra.mxu0 0.0
    %4415 = vmatprep.subr.mxu0 0.0
    %4416 = vmatpush1.xpose.msra.mxu0 0.0
    %4417 = vmatprep.subr.mxu0 0.0
    %4418 = vmatpush1.xpose.msra.mxu0 0.0
    %4419 = vmatprep.subr.mxu0 0.0
    %4420 = vmatpush1.xpose.msra.mxu0 0.0
    %4421 = vmatprep.subr.mxu0 0.0
    %4422 = vmatpush1.xpose.msra.mxu0 0.0
    %4423 = vmatprep.subr.mxu0 0.0
    %4424 = vmatpush1.xpose.msra.mxu0 0.0
    %4425 = vmatprep.subr.mxu0 0.0
    %4426 = vmatpush1.xpose.msra.mxu0 0.0
    %4427 = vmatprep.mubr.f32.mxu0 0.0
    %4428 = vmatmul.mubr.f32.gmra.mrb[0].mxu0 %v4358
    %v4429 = vpop.f32.mrb[0].mxu0
    %v4430 = vadd.f32 0.0, %v4429
    %v4431 = vpop.f32.mrb[0].mxu0
    %4432 = vdwg.mxu0
    %v4434 = vsel %vm1038, %v3383, 0
    %v4437 = vsel %vm1038, %v3679, 0
    %4439 = vmatprep.subr.mxu0 0.0
    %4440 = vmatpush1.xpose.msra.mxu0 %v4437
    %4441 = vmatprep.subr.mxu0 0.0
    %4442 = vmatpush1.xpose.msra.mxu0 0.0
    %4443 = vmatprep.subr.mxu0 0.0
    %4444 = vmatpush1.xpose.msra.mxu0 0.0
    %4445 = vmatprep.subr.mxu0 0.0
    %4446 = vmatpush1.xpose.msra.mxu0 0.0
    %4447 = vmatprep.subr.mxu0 0.0
    %4448 = vmatpush1.xpose.msra.mxu0 0.0
    %4449 = vmatprep.subr.mxu0 0.0
    %4450 = vmatpush1.xpose.msra.mxu0 0.0
    %4451 = vmatprep.subr.mxu0 0.0
    %4452 = vmatpush1.xpose.msra.mxu0 0.0
    %4453 = vmatprep.subr.mxu0 0.0
    %4454 = vmatpush1.xpose.msra.mxu0 0.0
    %4455 = vmatprep.subr.mxu0 0.0
    %4456 = vmatpush1.xpose.msra.mxu0 0.0
    %4457 = vmatprep.subr.mxu0 0.0
    %4458 = vmatpush1.xpose.msra.mxu0 0.0
    %4459 = vmatprep.subr.mxu0 0.0
    %4460 = vmatpush1.xpose.msra.mxu0 0.0
    %4461 = vmatprep.subr.mxu0 0.0
    %4462 = vmatpush1.xpose.msra.mxu0 0.0
    %4463 = vmatprep.subr.mxu0 0.0
    %4464 = vmatpush1.xpose.msra.mxu0 0.0
    %4465 = vmatprep.subr.mxu0 0.0
    %4466 = vmatpush1.xpose.msra.mxu0 0.0
    %4467 = vmatprep.subr.mxu0 0.0
    %4468 = vmatpush1.xpose.msra.mxu0 0.0
    %4469 = vmatprep.subr.mxu0 0.0
    %4470 = vmatpush1.xpose.msra.mxu0 0.0
    %4471 = vmatprep.subr.mxu0 0.0
    %4472 = vmatpush1.xpose.msra.mxu0 0.0
    %4473 = vmatprep.subr.mxu0 0.0
    %4474 = vmatpush1.xpose.msra.mxu0 0.0
    %4475 = vmatprep.subr.mxu0 0.0
    %4476 = vmatpush1.xpose.msra.mxu0 0.0
    %4477 = vmatprep.subr.mxu0 0.0
    %4478 = vmatpush1.xpose.msra.mxu0 0.0
    %4479 = vmatprep.subr.mxu0 0.0
    %4480 = vmatpush1.xpose.msra.mxu0 0.0
    %4481 = vmatprep.subr.mxu0 0.0
    %4482 = vmatpush1.xpose.msra.mxu0 0.0
    %4483 = vmatprep.subr.mxu0 0.0
    %4484 = vmatpush1.xpose.msra.mxu0 0.0
    %4485 = vmatprep.subr.mxu0 0.0
    %4486 = vmatpush1.xpose.msra.mxu0 0.0
    %4487 = vmatprep.subr.mxu0 0.0
    %4488 = vmatpush1.xpose.msra.mxu0 0.0
    %4489 = vmatprep.subr.mxu0 0.0
    %4490 = vmatpush1.xpose.msra.mxu0 0.0
    %4491 = vmatprep.subr.mxu0 0.0
    %4492 = vmatpush1.xpose.msra.mxu0 0.0
    %4493 = vmatprep.subr.mxu0 0.0
    %4494 = vmatpush1.xpose.msra.mxu0 0.0
    %4495 = vmatprep.subr.mxu0 0.0
    %4496 = vmatpush1.xpose.msra.mxu0 0.0
    %4497 = vmatprep.subr.mxu0 0.0
    %4498 = vmatpush1.xpose.msra.mxu0 0.0
    %4499 = vmatprep.subr.mxu0 0.0
    %4500 = vmatpush1.xpose.msra.mxu0 0.0
    %4501 = vmatprep.subr.mxu0 0.0
    %4502 = vmatpush1.xpose.msra.mxu0 0.0
    %4503 = vmatprep.mubr.f32.mxu0 0.0
    %4504 = vmatmul.mubr.f32.gmra.mrb[0].mxu0 %v4434
    %v4505 = vpop.f32.mrb[0].mxu0
    %v4506 = vadd.f32 0.0, %v4505
    %v4507 = vpop.f32.mrb[0].mxu0
    %4508 = vdwg.mxu0
    %v4510 = vsel %vm1038, %v3384, 0
    %v4513 = vsel %vm1038, %v3680, 0
    %4515 = vmatprep.subr.mxu0 0.0
    %4516 = vmatpush1.xpose.msra.mxu0 %v4513
    %4517 = vmatprep.subr.mxu0 0.0
    %4518 = vmatpush1.xpose.msra.mxu0 0.0
    %4519 = vmatprep.subr.mxu0 0.0
    %4520 = vmatpush1.xpose.msra.mxu0 0.0
    %4521 = vmatprep.subr.mxu0 0.0
    %4522 = vmatpush1.xpose.msra.mxu0 0.0
    %4523 = vmatprep.subr.mxu0 0.0
    %4524 = vmatpush1.xpose.msra.mxu0 0.0
    %4525 = vmatprep.subr.mxu0 0.0
    %4526 = vmatpush1.xpose.msra.mxu0 0.0
    %4527 = vmatprep.subr.mxu0 0.0
    %4528 = vmatpush1.xpose.msra.mxu0 0.0
    %4529 = vmatprep.subr.mxu0 0.0
    %4530 = vmatpush1.xpose.msra.mxu0 0.0
    %4531 = vmatprep.subr.mxu0 0.0
    %4532 = vmatpush1.xpose.msra.mxu0 0.0
    %4533 = vmatprep.subr.mxu0 0.0
    %4534 = vmatpush1.xpose.msra.mxu0 0.0
    %4535 = vmatprep.subr.mxu0 0.0
    %4536 = vmatpush1.xpose.msra.mxu0 0.0
    %4537 = vmatprep.subr.mxu0 0.0
    %4538 = vmatpush1.xpose.msra.mxu0 0.0
    %4539 = vmatprep.subr.mxu0 0.0
    %4540 = vmatpush1.xpose.msra.mxu0 0.0
    %4541 = vmatprep.subr.mxu0 0.0
    %4542 = vmatpush1.xpose.msra.mxu0 0.0
    %4543 = vmatprep.subr.mxu0 0.0
    %4544 = vmatpush1.xpose.msra.mxu0 0.0
    %4545 = vmatprep.subr.mxu0 0.0
    %4546 = vmatpush1.xpose.msra.mxu0 0.0
    %4547 = vmatprep.subr.mxu0 0.0
    %4548 = vmatpush1.xpose.msra.mxu0 0.0
    %4549 = vmatprep.subr.mxu0 0.0
    %4550 = vmatpush1.xpose.msra.mxu0 0.0
    %4551 = vmatprep.subr.mxu0 0.0
    %4552 = vmatpush1.xpose.msra.mxu0 0.0
    %4553 = vmatprep.subr.mxu0 0.0
    %4554 = vmatpush1.xpose.msra.mxu0 0.0
    %4555 = vmatprep.subr.mxu0 0.0
    %4556 = vmatpush1.xpose.msra.mxu0 0.0
    %4557 = vmatprep.subr.mxu0 0.0
    %4558 = vmatpush1.xpose.msra.mxu0 0.0
    %4559 = vmatprep.subr.mxu0 0.0
    %4560 = vmatpush1.xpose.msra.mxu0 0.0
    %4561 = vmatprep.subr.mxu0 0.0
    %4562 = vmatpush1.xpose.msra.mxu0 0.0
    %4563 = vmatprep.subr.mxu0 0.0
    %4564 = vmatpush1.xpose.msra.mxu0 0.0
    %4565 = vmatprep.subr.mxu0 0.0
    %4566 = vmatpush1.xpose.msra.mxu0 0.0
    %4567 = vmatprep.subr.mxu0 0.0
    %4568 = vmatpush1.xpose.msra.mxu0 0.0
    %4569 = vmatprep.subr.mxu0 0.0
    %4570 = vmatpush1.xpose.msra.mxu0 0.0
    %4571 = vmatprep.subr.mxu0 0.0
    %4572 = vmatpush1.xpose.msra.mxu0 0.0
    %4573 = vmatprep.subr.mxu0 0.0
    %4574 = vmatpush1.xpose.msra.mxu0 0.0
    %4575 = vmatprep.subr.mxu0 0.0
    %4576 = vmatpush1.xpose.msra.mxu0 0.0
    %4577 = vmatprep.subr.mxu0 0.0
    %4578 = vmatpush1.xpose.msra.mxu0 0.0
    %4579 = vmatprep.mubr.f32.mxu0 0.0
    %4580 = vmatmul.mubr.f32.gmra.mrb[0].mxu0 %v4510
    %v4581 = vpop.f32.mrb[0].mxu0
    %v4582 = vadd.f32 0.0, %v4581
    %v4583 = vpop.f32.mrb[0].mxu0
    %4584 = vdwg.mxu0
    %v4585 = vsel %vm1038, %v4050, -inf
    %4586 = vmax.xlane.f32.xlu0 %v4585
    %v4587 = vpop.xlane.xlu0 %4586
    %v4588 = vsel %vm1038, %v4126, -inf
    %4589 = vmax.xlane.f32.xlu0 %v4588
    %v4590 = vpop.xlane.xlu0 %4589
    %v4591 = vsel %vm1038, %v4202, -inf
    %4592 = vmax.xlane.f32.xlu0 %v4591
    %v4593 = vpop.xlane.xlu0 %4592
    %v4594 = vsel %vm1038, %v4278, -inf
    %4595 = vmax.xlane.f32.xlu0 %v4594
    %v4596 = vpop.xlane.xlu0 %4595
    %v4597 = vsel %vm1038, %v4354, -inf
    %4598 = vmax.xlane.f32.xlu0 %v4597
    %v4599 = vpop.xlane.xlu0 %4598
    %v4600 = vsel %vm1038, %v4430, -inf
    %4601 = vmax.xlane.f32.xlu0 %v4600
    %v4602 = vpop.xlane.xlu0 %4601
    %v4603 = vsel %vm1038, %v4506, -inf
    %4604 = vmax.xlane.f32.xlu0 %v4603
    %v4605 = vpop.xlane.xlu0 %4604
    %v4606 = vsel %vm1038, %v4582, -inf
    %4607 = vmax.xlane.f32.xlu0 %v4606
    %v4608 = vpop.xlane.xlu0 %4607
    %v4609 = vsub.f32 %v4050, %v4587
    %v4610 = vsub.f32 %v4126, %v4590
    %v4611 = vsub.f32 %v4202, %v4593
    %v4612 = vsub.f32 %v4278, %v4596
    %v4613 = vsub.f32 %v4354, %v4599
    %v4614 = vsub.f32 %v4430, %v4602
    %v4615 = vsub.f32 %v4506, %v4605
    %v4616 = vsub.f32 %v4582, %v4608
    %v4617 = vmul.f32 %v4609, 1.442695
    %v4618 = vpow.pop %v4617
    %v4619 = vmul.f32 %v4610, 1.442695
    %v4620 = vpow.pop %v4619
    %v4621 = vmul.f32 %v4611, 1.442695
    %v4622 = vpow.pop %v4621
    %v4623 = vmul.f32 %v4612, 1.442695
    %v4624 = vpow.pop %v4623
    %v4625 = vmul.f32 %v4613, 1.442695
    %v4626 = vpow.pop %v4625
    %v4627 = vmul.f32 %v4614, 1.442695
    %v4628 = vpow.pop %v4627
    %v4629 = vmul.f32 %v4615, 1.442695
    %v4630 = vpow.pop %v4629
    %v4631 = vmul.f32 %v4616, 1.442695
    %v4632 = vpow.pop %v4631
    %v4633 = vsel %vm1038, %v4618, 0.0
    %4634 = vadd.xlane.f32.xlu0 %v4633
    %v4635 = vpop.xlane.xlu0 %4634
    %v4636 = vsel %vm1038, %v4620, 0.0
    %4637 = vadd.xlane.f32.xlu0 %v4636
    %v4638 = vpop.xlane.xlu0 %4637
    %v4639 = vsel %vm1038, %v4622, 0.0
    %4640 = vadd.xlane.f32.xlu0 %v4639
    %v4641 = vpop.xlane.xlu0 %4640
    %v4642 = vsel %vm1038, %v4624, 0.0
    %4643 = vadd.xlane.f32.xlu0 %v4642
    %v4644 = vpop.xlane.xlu0 %4643
    %v4645 = vsel %vm1038, %v4626, 0.0
    %4646 = vadd.xlane.f32.xlu0 %v4645
    %v4647 = vpop.xlane.xlu0 %4646
    %v4648 = vsel %vm1038, %v4628, 0.0
    %4649 = vadd.xlane.f32.xlu0 %v4648
    %v4650 = vpop.xlane.xlu0 %4649
    %v4651 = vsel %vm1038, %v4630, 0.0
    %4652 = vadd.xlane.f32.xlu0 %v4651
    %v4653 = vpop.xlane.xlu0 %4652
    %v4654 = vsel %vm1038, %v4632, 0.0
    %4655 = vadd.xlane.f32.xlu0 %v4654
    %v4656 = vpop.xlane.xlu0 %4655
    %v4657 = vrcp.pop %v4635
    %v4658 = vmul.f32 %v4618, %v4657
    %v4659 = vrcp.pop %v4638
    %v4660 = vmul.f32 %v4620, %v4659
    %v4661 = vrcp.pop %v4641
    %v4662 = vmul.f32 %v4622, %v4661
    %v4663 = vrcp.pop %v4644
    %v4664 = vmul.f32 %v4624, %v4663
    %v4665 = vrcp.pop %v4647
    %v4666 = vmul.f32 %v4626, %v4665
    %v4667 = vrcp.pop %v4650
    %v4668 = vmul.f32 %v4628, %v4667
    %v4669 = vrcp.pop %v4653
    %v4670 = vmul.f32 %v4630, %v4669
    %v4671 = vrcp.pop %v4656
    %v4672 = vmul.f32 %v4632, %v4671
    %v4674 = vsel %vm1038, %v4658, 0
    %4676 = vmatprep.subr.mxu0 0.0
    %4677 = vmatpush1.msra.mxu0 %v3905
    %4678 = vmatprep.subr.mxu0 0.0
    %4679 = vmatpush1.msra.mxu0 0.0
    %4680 = vmatprep.subr.mxu0 0.0
    %4681 = vmatpush1.msra.mxu0 0.0
    %4682 = vmatprep.subr.mxu0 0.0
    %4683 = vmatpush1.msra.mxu0 0.0
    %4684 = vmatprep.subr.mxu0 0.0
    %4685 = vmatpush1.msra.mxu0 0.0
    %4686 = vmatprep.subr.mxu0 0.0
    %4687 = vmatpush1.msra.mxu0 0.0
    %4688 = vmatprep.subr.mxu0 0.0
    %4689 = vmatpush1.msra.mxu0 0.0
    %4690 = vmatprep.subr.mxu0 0.0
    %4691 = vmatpush1.msra.mxu0 0.0
    %4692 = vmatprep.subr.mxu0 0.0
    %4693 = vmatpush1.msra.mxu0 0.0
    %4694 = vmatprep.subr.mxu0 0.0
    %4695 = vmatpush1.msra.mxu0 0.0
    %4696 = vmatprep.subr.mxu0 0.0
    %4697 = vmatpush1.msra.mxu0 0.0
    %4698 = vmatprep.subr.mxu0 0.0
    %4699 = vmatpush1.msra.mxu0 0.0
    %4700 = vmatprep.subr.mxu0 0.0
    %4701 = vmatpush1.msra.mxu0 0.0
    %4702 = vmatprep.subr.mxu0 0.0
    %4703 = vmatpush1.msra.mxu0 0.0
    %4704 = vmatprep.subr.mxu0 0.0
    %4705 = vmatpush1.msra.mxu0 0.0
    %4706 = vmatprep.subr.mxu0 0.0
    %4707 = vmatpush1.msra.mxu0 0.0
    %4708 = vmatprep.subr.mxu0 0.0
    %4709 = vmatpush1.msra.mxu0 0.0
    %4710 = vmatprep.subr.mxu0 0.0
    %4711 = vmatpush1.msra.mxu0 0.0
    %4712 = vmatprep.subr.mxu0 0.0
    %4713 = vmatpush1.msra.mxu0 0.0
    %4714 = vmatprep.subr.mxu0 0.0
    %4715 = vmatpush1.msra.mxu0 0.0
    %4716 = vmatprep.subr.mxu0 0.0
    %4717 = vmatpush1.msra.mxu0 0.0
    %4718 = vmatprep.subr.mxu0 0.0
    %4719 = vmatpush1.msra.mxu0 0.0
    %4720 = vmatprep.subr.mxu0 0.0
    %4721 = vmatpush1.msra.mxu0 0.0
    %4722 = vmatprep.subr.mxu0 0.0
    %4723 = vmatpush1.msra.mxu0 0.0
    %4724 = vmatprep.subr.mxu0 0.0
    %4725 = vmatpush1.msra.mxu0 0.0
    %4726 = vmatprep.subr.mxu0 0.0
    %4727 = vmatpush1.msra.mxu0 0.0
    %4728 = vmatprep.subr.mxu0 0.0
    %4729 = vmatpush1.msra.mxu0 0.0
    %4730 = vmatprep.subr.mxu0 0.0
    %4731 = vmatpush1.msra.mxu0 0.0
    %4732 = vmatprep.subr.mxu0 0.0
    %4733 = vmatpush1.msra.mxu0 0.0
    %4734 = vmatprep.subr.mxu0 0.0
    %4735 = vmatpush1.msra.mxu0 0.0
    %4736 = vmatprep.subr.mxu0 0.0
    %4737 = vmatpush1.msra.mxu0 0.0
    %4738 = vmatprep.subr.mxu0 0.0
    %4739 = vmatpush1.msra.mxu0 0.0
    %4740 = vmatprep.mubr.f32.mxu0 0.0
    %4741 = vmatmul.mubr.f32.gmra.mrb[0].mxu0 %v4674
    %v4742 = vpop.f32.mrb[0].mxu0
    %v4743 = vadd.f32 0.0, %v4742
    %v4744 = vpop.f32.mrb[0].mxu0
    %4745 = vdwg.mxu0
    %v4747 = vsel %vm1038, %v4660, 0
    %4749 = vmatprep.subr.mxu0 0.0
    %4750 = vmatpush1.msra.mxu0 %v3906
    %4751 = vmatprep.subr.mxu0 0.0
    %4752 = vmatpush1.msra.mxu0 0.0
    %4753 = vmatprep.subr.mxu0 0.0
    %4754 = vmatpush1.msra.mxu0 0.0
    %4755 = vmatprep.subr.mxu0 0.0
    %4756 = vmatpush1.msra.mxu0 0.0
    %4757 = vmatprep.subr.mxu0 0.0
    %4758 = vmatpush1.msra.mxu0 0.0
    %4759 = vmatprep.subr.mxu0 0.0
    %4760 = vmatpush1.msra.mxu0 0.0
    %4761 = vmatprep.subr.mxu0 0.0
    %4762 = vmatpush1.msra.mxu0 0.0
    %4763 = vmatprep.subr.mxu0 0.0
    %4764 = vmatpush1.msra.mxu0 0.0
    %4765 = vmatprep.subr.mxu0 0.0
    %4766 = vmatpush1.msra.mxu0 0.0
    %4767 = vmatprep.subr.mxu0 0.0
    %4768 = vmatpush1.msra.mxu0 0.0
    %4769 = vmatprep.subr.mxu0 0.0
    %4770 = vmatpush1.msra.mxu0 0.0
    %4771 = vmatprep.subr.mxu0 0.0
    %4772 = vmatpush1.msra.mxu0 0.0
    %4773 = vmatprep.subr.mxu0 0.0
    %4774 = vmatpush1.msra.mxu0 0.0
    %4775 = vmatprep.subr.mxu0 0.0
    %4776 = vmatpush1.msra.mxu0 0.0
    %4777 = vmatprep.subr.mxu0 0.0
    %4778 = vmatpush1.msra.mxu0 0.0
    %4779 = vmatprep.subr.mxu0 0.0
    %4780 = vmatpush1.msra.mxu0 0.0
    %4781 = vmatprep.subr.mxu0 0.0
    %4782 = vmatpush1.msra.mxu0 0.0
    %4783 = vmatprep.subr.mxu0 0.0
    %4784 = vmatpush1.msra.mxu0 0.0
    %4785 = vmatprep.subr.mxu0 0.0
    %4786 = vmatpush1.msra.mxu0 0.0
    %4787 = vmatprep.subr.mxu0 0.0
    %4788 = vmatpush1.msra.mxu0 0.0
    %4789 = vmatprep.subr.mxu0 0.0
    %4790 = vmatpush1.msra.mxu0 0.0
    %4791 = vmatprep.subr.mxu0 0.0
    %4792 = vmatpush1.msra.mxu0 0.0
    %4793 = vmatprep.subr.mxu0 0.0
    %4794 = vmatpush1.msra.mxu0 0.0
    %4795 = vmatprep.subr.mxu0 0.0
    %4796 = vmatpush1.msra.mxu0 0.0
    %4797 = vmatprep.subr.mxu0 0.0
    %4798 = vmatpush1.msra.mxu0 0.0
    %4799 = vmatprep.subr.mxu0 0.0
    %4800 = vmatpush1.msra.mxu0 0.0
    %4801 = vmatprep.subr.mxu0 0.0
    %4802 = vmatpush1.msra.mxu0 0.0
    %4803 = vmatprep.subr.mxu0 0.0
    %4804 = vmatpush1.msra.mxu0 0.0
    %4805 = vmatprep.subr.mxu0 0.0
    %4806 = vmatpush1.msra.mxu0 0.0
    %4807 = vmatprep.subr.mxu0 0.0
    %4808 = vmatpush1.msra.mxu0 0.0
    %4809 = vmatprep.subr.mxu0 0.0
    %4810 = vmatpush1.msra.mxu0 0.0
    %4811 = vmatprep.subr.mxu0 0.0
    %4812 = vmatpush1.msra.mxu0 0.0
    %4813 = vmatprep.mubr.f32.mxu0 0.0
    %4814 = vmatmul.mubr.f32.gmra.mrb[0].mxu0 %v4747
    %v4815 = vpop.f32.mrb[0].mxu0
    %v4816 = vadd.f32 0.0, %v4815
    %v4817 = vpop.f32.mrb[0].mxu0
    %4818 = vdwg.mxu0
    %v4820 = vsel %vm1038, %v4662, 0
    %4822 = vmatprep.subr.mxu0 0.0
    %4823 = vmatpush1.msra.mxu0 %v3907
    %4824 = vmatprep.subr.mxu0 0.0
    %4825 = vmatpush1.msra.mxu0 0.0
    %4826 = vmatprep.subr.mxu0 0.0
    %4827 = vmatpush1.msra.mxu0 0.0
    %4828 = vmatprep.subr.mxu0 0.0
    %4829 = vmatpush1.msra.mxu0 0.0
    %4830 = vmatprep.subr.mxu0 0.0
    %4831 = vmatpush1.msra.mxu0 0.0
    %4832 = vmatprep.subr.mxu0 0.0
    %4833 = vmatpush1.msra.mxu0 0.0
    %4834 = vmatprep.subr.mxu0 0.0
    %4835 = vmatpush1.msra.mxu0 0.0
    %4836 = vmatprep.subr.mxu0 0.0
    %4837 = vmatpush1.msra.mxu0 0.0
    %4838 = vmatprep.subr.mxu0 0.0
    %4839 = vmatpush1.msra.mxu0 0.0
    %4840 = vmatprep.subr.mxu0 0.0
    %4841 = vmatpush1.msra.mxu0 0.0
    %4842 = vmatprep.subr.mxu0 0.0
    %4843 = vmatpush1.msra.mxu0 0.0
    %4844 = vmatprep.subr.mxu0 0.0
    %4845 = vmatpush1.msra.mxu0 0.0
    %4846 = vmatprep.subr.mxu0 0.0
    %4847 = vmatpush1.msra.mxu0 0.0
    %4848 = vmatprep.subr.mxu0 0.0
    %4849 = vmatpush1.msra.mxu0 0.0
    %4850 = vmatprep.subr.mxu0 0.0
    %4851 = vmatpush1.msra.mxu0 0.0
    %4852 = vmatprep.subr.mxu0 0.0
    %4853 = vmatpush1.msra.mxu0 0.0
    %4854 = vmatprep.subr.mxu0 0.0
    %4855 = vmatpush1.msra.mxu0 0.0
    %4856 = vmatprep.subr.mxu0 0.0
    %4857 = vmatpush1.msra.mxu0 0.0
    %4858 = vmatprep.subr.mxu0 0.0
    %4859 = vmatpush1.msra.mxu0 0.0
    %4860 = vmatprep.subr.mxu0 0.0
    %4861 = vmatpush1.msra.mxu0 0.0
    %4862 = vmatprep.subr.mxu0 0.0
    %4863 = vmatpush1.msra.mxu0 0.0
    %4864 = vmatprep.subr.mxu0 0.0
    %4865 = vmatpush1.msra.mxu0 0.0
    %4866 = vmatprep.subr.mxu0 0.0
    %4867 = vmatpush1.msra.mxu0 0.0
    %4868 = vmatprep.subr.mxu0 0.0
    %4869 = vmatpush1.msra.mxu0 0.0
    %4870 = vmatprep.subr.mxu0 0.0
    %4871 = vmatpush1.msra.mxu0 0.0
    %4872 = vmatprep.subr.mxu0 0.0
    %4873 = vmatpush1.msra.mxu0 0.0
    %4874 = vmatprep.subr.mxu0 0.0
    %4875 = vmatpush1.msra.mxu0 0.0
    %4876 = vmatprep.subr.mxu0 0.0
    %4877 = vmatpush1.msra.mxu0 0.0
    %4878 = vmatprep.subr.mxu0 0.0
    %4879 = vmatpush1.msra.mxu0 0.0
    %4880 = vmatprep.subr.mxu0 0.0
    %4881 = vmatpush1.msra.mxu0 0.0
    %4882 = vmatprep.subr.mxu0 0.0
    %4883 = vmatpush1.msra.mxu0 0.0
    %4884 = vmatprep.subr.mxu0 0.0
    %4885 = vmatpush1.msra.mxu0 0.0
    %4886 = vmatprep.mubr.f32.mxu0 0.0
    %4887 = vmatmul.mubr.f32.gmra.mrb[0].mxu0 %v4820
    %v4888 = vpop.f32.mrb[0].mxu0
    %v4889 = vadd.f32 0.0, %v4888
    %v4890 = vpop.f32.mrb[0].mxu0
    %4891 = vdwg.mxu0
    %v4893 = vsel %vm1038, %v4664, 0
    %4895 = vmatprep.subr.mxu0 0.0
    %4896 = vmatpush1.msra.mxu0 %v3908
    %4897 = vmatprep.subr.mxu0 0.0
    %4898 = vmatpush1.msra.mxu0 0.0
    %4899 = vmatprep.subr.mxu0 0.0
    %4900 = vmatpush1.msra.mxu0 0.0
    %4901 = vmatprep.subr.mxu0 0.0
    %4902 = vmatpush1.msra.mxu0 0.0
    %4903 = vmatprep.subr.mxu0 0.0
    %4904 = vmatpush1.msra.mxu0 0.0
    %4905 = vmatprep.subr.mxu0 0.0
    %4906 = vmatpush1.msra.mxu0 0.0
    %4907 = vmatprep.subr.mxu0 0.0
    %4908 = vmatpush1.msra.mxu0 0.0
    %4909 = vmatprep.subr.mxu0 0.0
    %4910 = vmatpush1.msra.mxu0 0.0
    %4911 = vmatprep.subr.mxu0 0.0
    %4912 = vmatpush1.msra.mxu0 0.0
    %4913 = vmatprep.subr.mxu0 0.0
    %4914 = vmatpush1.msra.mxu0 0.0
    %4915 = vmatprep.subr.mxu0 0.0
    %4916 = vmatpush1.msra.mxu0 0.0
    %4917 = vmatprep.subr.mxu0 0.0
    %4918 = vmatpush1.msra.mxu0 0.0
    %4919 = vmatprep.subr.mxu0 0.0
    %4920 = vmatpush1.msra.mxu0 0.0
    %4921 = vmatprep.subr.mxu0 0.0
    %4922 = vmatpush1.msra.mxu0 0.0
    %4923 = vmatprep.subr.mxu0 0.0
    %4924 = vmatpush1.msra.mxu0 0.0
    %4925 = vmatprep.subr.mxu0 0.0
    %4926 = vmatpush1.msra.mxu0 0.0
    %4927 = vmatprep.subr.mxu0 0.0
    %4928 = vmatpush1.msra.mxu0 0.0
    %4929 = vmatprep.subr.mxu0 0.0
    %4930 = vmatpush1.msra.mxu0 0.0
    %4931 = vmatprep.subr.mxu0 0.0
    %4932 = vmatpush1.msra.mxu0 0.0
    %4933 = vmatprep.subr.mxu0 0.0
    %4934 = vmatpush1.msra.mxu0 0.0
    %4935 = vmatprep.subr.mxu0 0.0
    %4936 = vmatpush1.msra.mxu0 0.0
    %4937 = vmatprep.subr.mxu0 0.0
    %4938 = vmatpush1.msra.mxu0 0.0
    %4939 = vmatprep.subr.mxu0 0.0
    %4940 = vmatpush1.msra.mxu0 0.0
    %4941 = vmatprep.subr.mxu0 0.0
    %4942 = vmatpush1.msra.mxu0 0.0
    %4943 = vmatprep.subr.mxu0 0.0
    %4944 = vmatpush1.msra.mxu0 0.0
    %4945 = vmatprep.subr.mxu0 0.0
    %4946 = vmatpush1.msra.mxu0 0.0
    %4947 = vmatprep.subr.mxu0 0.0
    %4948 = vmatpush1.msra.mxu0 0.0
    %4949 = vmatprep.subr.mxu0 0.0
    %4950 = vmatpush1.msra.mxu0 0.0
    %4951 = vmatprep.subr.mxu0 0.0
    %4952 = vmatpush1.msra.mxu0 0.0
    %4953 = vmatprep.subr.mxu0 0.0
    %4954 = vmatpush1.msra.mxu0 0.0
    %4955 = vmatprep.subr.mxu0 0.0
    %4956 = vmatpush1.msra.mxu0 0.0
    %4957 = vmatprep.subr.mxu0 0.0
    %4958 = vmatpush1.msra.mxu0 0.0
    %4959 = vmatprep.mubr.f32.mxu0 0.0
    %4960 = vmatmul.mubr.f32.gmra.mrb[0].mxu0 %v4893
    %v4961 = vpop.f32.mrb[0].mxu0
    %v4962 = vadd.f32 0.0, %v4961
    %v4963 = vpop.f32.mrb[0].mxu0
    %4964 = vdwg.mxu0
    %v4966 = vsel %vm1038, %v4666, 0
    %4968 = vmatprep.subr.mxu0 0.0
    %4969 = vmatpush1.msra.mxu0 %v3973
    %4970 = vmatprep.subr.mxu0 0.0
    %4971 = vmatpush1.msra.mxu0 0.0
    %4972 = vmatprep.subr.mxu0 0.0
    %4973 = vmatpush1.msra.mxu0 0.0
    %4974 = vmatprep.subr.mxu0 0.0
    %4975 = vmatpush1.msra.mxu0 0.0
    %4976 = vmatprep.subr.mxu0 0.0
    %4977 = vmatpush1.msra.mxu0 0.0
    %4978 = vmatprep.subr.mxu0 0.0
    %4979 = vmatpush1.msra.mxu0 0.0
    %4980 = vmatprep.subr.mxu0 0.0
    %4981 = vmatpush1.msra.mxu0 0.0
    %4982 = vmatprep.subr.mxu0 0.0
    %4983 = vmatpush1.msra.mxu0 0.0
    %4984 = vmatprep.subr.mxu0 0.0
    %4985 = vmatpush1.msra.mxu0 0.0
    %4986 = vmatprep.subr.mxu0 0.0
    %4987 = vmatpush1.msra.mxu0 0.0
    %4988 = vmatprep.subr.mxu0 0.0
    %4989 = vmatpush1.msra.mxu0 0.0
    %4990 = vmatprep.subr.mxu0 0.0
    %4991 = vmatpush1.msra.mxu0 0.0
    %4992 = vmatprep.subr.mxu0 0.0
    %4993 = vmatpush1.msra.mxu0 0.0
    %4994 = vmatprep.subr.mxu0 0.0
    %4995 = vmatpush1.msra.mxu0 0.0
    %4996 = vmatprep.subr.mxu0 0.0
    %4997 = vmatpush1.msra.mxu0 0.0
    %4998 = vmatprep.subr.mxu0 0.0
    %4999 = vmatpush1.msra.mxu0 0.0
    %5000 = vmatprep.subr.mxu0 0.0
    %5001 = vmatpush1.msra.mxu0 0.0
    %5002 = vmatprep.subr.mxu0 0.0
    %5003 = vmatpush1.msra.mxu0 0.0
    %5004 = vmatprep.subr.mxu0 0.0
    %5005 = vmatpush1.msra.mxu0 0.0
    %5006 = vmatprep.subr.mxu0 0.0
    %5007 = vmatpush1.msra.mxu0 0.0
    %5008 = vmatprep.subr.mxu0 0.0
    %5009 = vmatpush1.msra.mxu0 0.0
    %5010 = vmatprep.subr.mxu0 0.0
    %5011 = vmatpush1.msra.mxu0 0.0
    %5012 = vmatprep.subr.mxu0 0.0
    %5013 = vmatpush1.msra.mxu0 0.0
    %5014 = vmatprep.subr.mxu0 0.0
    %5015 = vmatpush1.msra.mxu0 0.0
    %5016 = vmatprep.subr.mxu0 0.0
    %5017 = vmatpush1.msra.mxu0 0.0
    %5018 = vmatprep.subr.mxu0 0.0
    %5019 = vmatpush1.msra.mxu0 0.0
    %5020 = vmatprep.subr.mxu0 0.0
    %5021 = vmatpush1.msra.mxu0 0.0
    %5022 = vmatprep.subr.mxu0 0.0
    %5023 = vmatpush1.msra.mxu0 0.0
    %5024 = vmatprep.subr.mxu0 0.0
    %5025 = vmatpush1.msra.mxu0 0.0
    %5026 = vmatprep.subr.mxu0 0.0
    %5027 = vmatpush1.msra.mxu0 0.0
    %5028 = vmatprep.subr.mxu0 0.0
    %5029 = vmatpush1.msra.mxu0 0.0
    %5030 = vmatprep.subr.mxu0 0.0
    %5031 = vmatpush1.msra.mxu0 0.0
    %5032 = vmatprep.mubr.f32.mxu0 0.0
    %5033 = vmatmul.mubr.f32.gmra.mrb[0].mxu0 %v4966
    %v5034 = vpop.f32.mrb[0].mxu0
    %v5035 = vadd.f32 0.0, %v5034
    %v5036 = vpop.f32.mrb[0].mxu0
    %5037 = vdwg.mxu0
    %v5039 = vsel %vm1038, %v4668, 0
    %5041 = vmatprep.subr.mxu0 0.0
    %5042 = vmatpush1.msra.mxu0 %v3974
    %5043 = vmatprep.subr.mxu0 0.0
    %5044 = vmatpush1.msra.mxu0 0.0
    %5045 = vmatprep.subr.mxu0 0.0
    %5046 = vmatpush1.msra.mxu0 0.0
    %5047 = vmatprep.subr.mxu0 0.0
    %5048 = vmatpush1.msra.mxu0 0.0
    %5049 = vmatprep.subr.mxu0 0.0
    %5050 = vmatpush1.msra.mxu0 0.0
    %5051 = vmatprep.subr.mxu0 0.0
    %5052 = vmatpush1.msra.mxu0 0.0
    %5053 = vmatprep.subr.mxu0 0.0
    %5054 = vmatpush1.msra.mxu0 0.0
    %5055 = vmatprep.subr.mxu0 0.0
    %5056 = vmatpush1.msra.mxu0 0.0
    %5057 = vmatprep.subr.mxu0 0.0
    %5058 = vmatpush1.msra.mxu0 0.0
    %5059 = vmatprep.subr.mxu0 0.0
    %5060 = vmatpush1.msra.mxu0 0.0
    %5061 = vmatprep.subr.mxu0 0.0
    %5062 = vmatpush1.msra.mxu0 0.0
    %5063 = vmatprep.subr.mxu0 0.0
    %5064 = vmatpush1.msra.mxu0 0.0
    %5065 = vmatprep.subr.mxu0 0.0
    %5066 = vmatpush1.msra.mxu0 0.0
    %5067 = vmatprep.subr.mxu0 0.0
    %5068 = vmatpush1.msra.mxu0 0.0
    %5069 = vmatprep.subr.mxu0 0.0
    %5070 = vmatpush1.msra.mxu0 0.0
    %5071 = vmatprep.subr.mxu0 0.0
    %5072 = vmatpush1.msra.mxu0 0.0
    %5073 = vmatprep.subr.mxu0 0.0
    %5074 = vmatpush1.msra.mxu0 0.0
    %5075 = vmatprep.subr.mxu0 0.0
    %5076 = vmatpush1.msra.mxu0 0.0
    %5077 = vmatprep.subr.mxu0 0.0
    %5078 = vmatpush1.msra.mxu0 0.0
    %5079 = vmatprep.subr.mxu0 0.0
    %5080 = vmatpush1.msra.mxu0 0.0
    %5081 = vmatprep.subr.mxu0 0.0
    %5082 = vmatpush1.msra.mxu0 0.0
    %5083 = vmatprep.subr.mxu0 0.0
    %5084 = vmatpush1.msra.mxu0 0.0
    %5085 = vmatprep.subr.mxu0 0.0
    %5086 = vmatpush1.msra.mxu0 0.0
    %5087 = vmatprep.subr.mxu0 0.0
    %5088 = vmatpush1.msra.mxu0 0.0
    %5089 = vmatprep.subr.mxu0 0.0
    %5090 = vmatpush1.msra.mxu0 0.0
    %5091 = vmatprep.subr.mxu0 0.0
    %5092 = vmatpush1.msra.mxu0 0.0
    %5093 = vmatprep.subr.mxu0 0.0
    %5094 = vmatpush1.msra.mxu0 0.0
    %5095 = vmatprep.subr.mxu0 0.0
    %5096 = vmatpush1.msra.mxu0 0.0
    %5097 = vmatprep.subr.mxu0 0.0
    %5098 = vmatpush1.msra.mxu0 0.0
    %5099 = vmatprep.subr.mxu0 0.0
    %5100 = vmatpush1.msra.mxu0 0.0
    %5101 = vmatprep.subr.mxu0 0.0
    %5102 = vmatpush1.msra.mxu0 0.0
    %5103 = vmatprep.subr.mxu0 0.0
    %5104 = vmatpush1.msra.mxu0 0.0
    %5105 = vmatprep.mubr.f32.mxu0 0.0
    %5106 = vmatmul.mubr.f32.gmra.mrb[0].mxu0 %v5039
    %v5107 = vpop.f32.mrb[0].mxu0
    %v5108 = vadd.f32 0.0, %v5107
    %v5109 = vpop.f32.mrb[0].mxu0
    %5110 = vdwg.mxu0
    %v5112 = vsel %vm1038, %v4670, 0
    %5114 = vmatprep.subr.mxu0 0.0
    %5115 = vmatpush1.msra.mxu0 %v3975
    %5116 = vmatprep.subr.mxu0 0.0
    %5117 = vmatpush1.msra.mxu0 0.0
    %5118 = vmatprep.subr.mxu0 0.0
    %5119 = vmatpush1.msra.mxu0 0.0
    %5120 = vmatprep.subr.mxu0 0.0
    %5121 = vmatpush1.msra.mxu0 0.0
    %5122 = vmatprep.subr.mxu0 0.0
    %5123 = vmatpush1.msra.mxu0 0.0
    %5124 = vmatprep.subr.mxu0 0.0
    %5125 = vmatpush1.msra.mxu0 0.0
    %5126 = vmatprep.subr.mxu0 0.0
    %5127 = vmatpush1.msra.mxu0 0.0
    %5128 = vmatprep.subr.mxu0 0.0
    %5129 = vmatpush1.msra.mxu0 0.0
    %5130 = vmatprep.subr.mxu0 0.0
    %5131 = vmatpush1.msra.mxu0 0.0
    %5132 = vmatprep.subr.mxu0 0.0
    %5133 = vmatpush1.msra.mxu0 0.0
    %5134 = vmatprep.subr.mxu0 0.0
    %5135 = vmatpush1.msra.mxu0 0.0
    %5136 = vmatprep.subr.mxu0 0.0
    %5137 = vmatpush1.msra.mxu0 0.0
    %5138 = vmatprep.subr.mxu0 0.0
    %5139 = vmatpush1.msra.mxu0 0.0
    %5140 = vmatprep.subr.mxu0 0.0
    %5141 = vmatpush1.msra.mxu0 0.0
    %5142 = vmatprep.subr.mxu0 0.0
    %5143 = vmatpush1.msra.mxu0 0.0
    %5144 = vmatprep.subr.mxu0 0.0
    %5145 = vmatpush1.msra.mxu0 0.0
    %5146 = vmatprep.subr.mxu0 0.0
    %5147 = vmatpush1.msra.mxu0 0.0
    %5148 = vmatprep.subr.mxu0 0.0
    %5149 = vmatpush1.msra.mxu0 0.0
    %5150 = vmatprep.subr.mxu0 0.0
    %5151 = vmatpush1.msra.mxu0 0.0
    %5152 = vmatprep.subr.mxu0 0.0
    %5153 = vmatpush1.msra.mxu0 0.0
    %5154 = vmatprep.subr.mxu0 0.0
    %5155 = vmatpush1.msra.mxu0 0.0
    %5156 = vmatprep.subr.mxu0 0.0
    %5157 = vmatpush1.msra.mxu0 0.0
    %5158 = vmatprep.subr.mxu0 0.0
    %5159 = vmatpush1.msra.mxu0 0.0
    %5160 = vmatprep.subr.mxu0 0.0
    %5161 = vmatpush1.msra.mxu0 0.0
    %5162 = vmatprep.subr.mxu0 0.0
    %5163 = vmatpush1.msra.mxu0 0.0
    %5164 = vmatprep.subr.mxu0 0.0
    %5165 = vmatpush1.msra.mxu0 0.0
    %5166 = vmatprep.subr.mxu0 0.0
    %5167 = vmatpush1.msra.mxu0 0.0
    %5168 = vmatprep.subr.mxu0 0.0
    %5169 = vmatpush1.msra.mxu0 0.0
    %5170 = vmatprep.subr.mxu0 0.0
    %5171 = vmatpush1.msra.mxu0 0.0
    %5172 = vmatprep.subr.mxu0 0.0
    %5173 = vmatpush1.msra.mxu0 0.0
    %5174 = vmatprep.subr.mxu0 0.0
    %5175 = vmatpush1.msra.mxu0 0.0
    %5176 = vmatprep.subr.mxu0 0.0
    %5177 = vmatpush1.msra.mxu0 0.0
    %5178 = vmatprep.mubr.f32.mxu0 0.0
    %5179 = vmatmul.mubr.f32.gmra.mrb[0].mxu0 %v5112
    %v5180 = vpop.f32.mrb[0].mxu0
    %v5181 = vadd.f32 0.0, %v5180
    %v5182 = vpop.f32.mrb[0].mxu0
    %5183 = vdwg.mxu0
    %v5185 = vsel %vm1038, %v4672, 0
    %5187 = vmatprep.subr.mxu0 0.0
    %5188 = vmatpush1.msra.mxu0 %v3976
    %5189 = vmatprep.subr.mxu0 0.0
    %5190 = vmatpush1.msra.mxu0 0.0
    %5191 = vmatprep.subr.mxu0 0.0
    %5192 = vmatpush1.msra.mxu0 0.0
    %5193 = vmatprep.subr.mxu0 0.0
    %5194 = vmatpush1.msra.mxu0 0.0
    %5195 = vmatprep.subr.mxu0 0.0
    %5196 = vmatpush1.msra.mxu0 0.0
    %5197 = vmatprep.subr.mxu0 0.0
    %5198 = vmatpush1.msra.mxu0 0.0
    %5199 = vmatprep.subr.mxu0 0.0
    %5200 = vmatpush1.msra.mxu0 0.0
    %5201 = vmatprep.subr.mxu0 0.0
    %5202 = vmatpush1.msra.mxu0 0.0
    %5203 = vmatprep.subr.mxu0 0.0
    %5204 = vmatpush1.msra.mxu0 0.0
    %5205 = vmatprep.subr.mxu0 0.0
    %5206 = vmatpush1.msra.mxu0 0.0
    %5207 = vmatprep.subr.mxu0 0.0
    %5208 = vmatpush1.msra.mxu0 0.0
    %5209 = vmatprep.subr.mxu0 0.0
    %5210 = vmatpush1.msra.mxu0 0.0
    %5211 = vmatprep.subr.mxu0 0.0
    %5212 = vmatpush1.msra.mxu0 0.0
    %5213 = vmatprep.subr.mxu0 0.0
    %5214 = vmatpush1.msra.mxu0 0.0
    %5215 = vmatprep.subr.mxu0 0.0
    %5216 = vmatpush1.msra.mxu0 0.0
    %5217 = vmatprep.subr.mxu0 0.0
    %5218 = vmatpush1.msra.mxu0 0.0
    %5219 = vmatprep.subr.mxu0 0.0
    %5220 = vmatpush1.msra.mxu0 0.0
    %5221 = vmatprep.subr.mxu0 0.0
    %5222 = vmatpush1.msra.mxu0 0.0
    %5223 = vmatprep.subr.mxu0 0.0
    %5224 = vmatpush1.msra.mxu0 0.0
    %5225 = vmatprep.subr.mxu0 0.0
    %5226 = vmatpush1.msra.mxu0 0.0
    %5227 = vmatprep.subr.mxu0 0.0
    %5228 = vmatpush1.msra.mxu0 0.0
    %5229 = vmatprep.subr.mxu0 0.0
    %5230 = vmatpush1.msra.mxu0 0.0
    %5231 = vmatprep.subr.mxu0 0.0
    %5232 = vmatpush1.msra.mxu0 0.0
    %5233 = vmatprep.subr.mxu0 0.0
    %5234 = vmatpush1.msra.mxu0 0.0
    %5235 = vmatprep.subr.mxu0 0.0
    %5236 = vmatpush1.msra.mxu0 0.0
    %5237 = vmatprep.subr.mxu0 0.0
    %5238 = vmatpush1.msra.mxu0 0.0
    %5239 = vmatprep.subr.mxu0 0.0
    %5240 = vmatpush1.msra.mxu0 0.0
    %5241 = vmatprep.subr.mxu0 0.0
    %5242 = vmatpush1.msra.mxu0 0.0
    %5243 = vmatprep.subr.mxu0 0.0
    %5244 = vmatpush1.msra.mxu0 0.0
    %5245 = vmatprep.subr.mxu0 0.0
    %5246 = vmatpush1.msra.mxu0 0.0
    %5247 = vmatprep.subr.mxu0 0.0
    %5248 = vmatpush1.msra.mxu0 0.0
    %5249 = vmatprep.subr.mxu0 0.0
    %5250 = vmatpush1.msra.mxu0 0.0
    %5251 = vmatprep.mubr.f32.mxu0 0.0
    %5252 = vmatmul.mubr.f32.gmra.mrb[0].mxu0 %v5185
    %v5253 = vpop.f32.mrb[0].mxu0
    %v5254 = vadd.f32 0.0, %v5253
    %v5255 = vpop.f32.mrb[0].mxu0
    %5256 = vdwg.mxu0
    %v5257 = vcombine.low %v4743, %v4889
    %v5258 = vcombine.high %v4743, %v4889
    %v5260 = vunpack.c.l.s4 1983009808
    %v5261 = vunpack.c.0.s8 %v5260
    %v5262 = vlaneseq
    %v5263 = vshrl.u32 %v5262, 7
    %v5264 = vsub.s32 %v5261, %v5263
    %v5265 = vrot.slane %v5257, %v5264
    %v5267 = vunpack.c.l.s4 1983009808
    %v5268 = vunpack.c.0.s8 %v5267
    %v5269 = vlaneseq
    %v5270 = vshrl.u32 %v5269, 7
    %v5271 = vsub.s32 %v5268, %v5270
    %v5272 = vrot.slane %v5258, %v5271
    %v5273 = vcombine.low %v4816, %v4962
    %v5274 = vcombine.high %v4816, %v4962
    %v5276 = vunpack.c.l.s4 1983009808
    %v5277 = vunpack.c.0.s8 %v5276
    %v5278 = vlaneseq
    %v5279 = vshrl.u32 %v5278, 7
    %v5280 = vsub.s32 %v5277, %v5279
    %v5281 = vrot.slane %v5273, %v5280
    %v5283 = vunpack.c.l.s4 1983009808
    %v5284 = vunpack.c.0.s8 %v5283
    %v5285 = vlaneseq
    %v5286 = vshrl.u32 %v5285, 7
    %v5287 = vsub.s32 %v5284, %v5286
    %v5288 = vrot.slane %v5274, %v5287
    %v5289 = vcombine.low %v5265, %v5281
    %v5290 = vcombine.high %v5265, %v5281
    %v5292 = vunpack.c.l.s4 1934713408
    %v5293 = vunpack.c.0.s8 %v5292
    %v5294 = vlaneseq
    %v5295 = vshrl.u32 %v5294, 7
    %v5296 = vsub.s32 %v5293, %v5295
    %v5297 = vrot.slane %v5289, %v5296
    %v5299 = vunpack.c.l.s4 1934713408
    %v5300 = vunpack.c.0.s8 %v5299
    %v5301 = vlaneseq
    %v5302 = vshrl.u32 %v5301, 7
    %v5303 = vsub.s32 %v5300, %v5302
    %v5304 = vrot.slane %v5290, %v5303
    %v5305 = vcombine.low %v5272, %v5288
    %v5306 = vcombine.high %v5272, %v5288
    %v5308 = vunpack.c.l.s4 1934713408
    %v5309 = vunpack.c.0.s8 %v5308
    %v5310 = vlaneseq
    %v5311 = vshrl.u32 %v5310, 7
    %v5312 = vsub.s32 %v5309, %v5311
    %v5313 = vrot.slane %v5305, %v5312
    %v5315 = vunpack.c.l.s4 1934713408
    %v5316 = vunpack.c.0.s8 %v5315
    %v5317 = vlaneseq
    %v5318 = vshrl.u32 %v5317, 7
    %v5319 = vsub.s32 %v5316, %v5318
    %v5320 = vrot.slane %v5306, %v5319
    %v5321 = vcombine.high %v5297, 0.0
    %v5322 = vcombine.high %v5304, 0.0
    %v5323 = vcombine.high %v5313, 0.0
    %v5324 = vcombine.high %v5320, 0.0
    %v5325 = vcombine.low %v5035, %v5181
    %v5326 = vcombine.high %v5035, %v5181
    %v5328 = vunpack.c.l.s4 1983009808
    %v5329 = vunpack.c.0.s8 %v5328
    %v5330 = vlaneseq
    %v5331 = vshrl.u32 %v5330, 7
    %v5332 = vsub.s32 %v5329, %v5331
    %v5333 = vrot.slane %v5325, %v5332
    %v5335 = vunpack.c.l.s4 1983009808
    %v5336 = vunpack.c.0.s8 %v5335
    %v5337 = vlaneseq
    %v5338 = vshrl.u32 %v5337, 7
    %v5339 = vsub.s32 %v5336, %v5338
    %v5340 = vrot.slane %v5326, %v5339
    %v5341 = vcombine.low %v5108, %v5254
    %v5342 = vcombine.high %v5108, %v5254
    %v5344 = vunpack.c.l.s4 1983009808
    %v5345 = vunpack.c.0.s8 %v5344
    %v5346 = vlaneseq
    %v5347 = vshrl.u32 %v5346, 7
    %v5348 = vsub.s32 %v5345, %v5347
    %v5349 = vrot.slane %v5341, %v5348
    %v5351 = vunpack.c.l.s4 1983009808
    %v5352 = vunpack.c.0.s8 %v5351
    %v5353 = vlaneseq
    %v5354 = vshrl.u32 %v5353, 7
    %v5355 = vsub.s32 %v5352, %v5354
    %v5356 = vrot.slane %v5342, %v5355
    %v5357 = vcombine.low %v5333, %v5349
    %v5358 = vcombine.high %v5333, %v5349
    %v5360 = vunpack.c.l.s4 1934713408
    %v5361 = vunpack.c.0.s8 %v5360
    %v5362 = vlaneseq
    %v5363 = vshrl.u32 %v5362, 7
    %v5364 = vsub.s32 %v5361, %v5363
    %v5365 = vrot.slane %v5357, %v5364
    %v5367 = vunpack.c.l.s4 1934713408
    %v5368 = vunpack.c.0.s8 %v5367
    %v5369 = vlaneseq
    %v5370 = vshrl.u32 %v5369, 7
    %v5371 = vsub.s32 %v5368, %v5370
    %v5372 = vrot.slane %v5358, %v5371
    %v5373 = vcombine.low %v5340, %v5356
    %v5374 = vcombine.high %v5340, %v5356
    %v5376 = vunpack.c.l.s4 1934713408
    %v5377 = vunpack.c.0.s8 %v5376
    %v5378 = vlaneseq
    %v5379 = vshrl.u32 %v5378, 7
    %v5380 = vsub.s32 %v5377, %v5379
    %v5381 = vrot.slane %v5373, %v5380
    %v5383 = vunpack.c.l.s4 1934713408
    %v5384 = vunpack.c.0.s8 %v5383
    %v5385 = vlaneseq
    %v5386 = vshrl.u32 %v5385, 7
    %v5387 = vsub.s32 %v5384, %v5386
    %v5388 = vrot.slane %v5374, %v5387
    %v5389 = vcombine.high %v5365, 0.0
    %v5390 = vcombine.high %v5372, 0.0
    %v5391 = vcombine.high %v5381, 0.0
    %v5392 = vcombine.high %v5388, 0.0
    %v5393 = vcombine.low %v5297, %v5304
    %v5395 = vunpack.c.l.s4 1983009808
    %v5396 = vunpack.c.0.s8 %v5395
    %v5397 = vlaneseq
    %v5398 = vshrl.u32 %v5397, 7
    %v5399 = vsub.s32 %v5396, %v5398
    %v5400 = vrot.slane %v5393, %v5399
    %v5401 = vcombine.low %v5321, %v5322
    %v5403 = vunpack.c.l.s4 1983009808
    %v5404 = vunpack.c.0.s8 %v5403
    %v5405 = vlaneseq
    %v5406 = vshrl.u32 %v5405, 7
    %v5407 = vsub.s32 %v5404, %v5406
    %v5408 = vrot.slane %v5401, %v5407
    %v5409 = vcombine.low %v5313, %v5320
    %v5411 = vunpack.c.l.s4 1983009808
    %v5412 = vunpack.c.0.s8 %v5411
    %v5413 = vlaneseq
    %v5414 = vshrl.u32 %v5413, 7
    %v5415 = vsub.s32 %v5412, %v5414
    %v5416 = vrot.slane %v5409, %v5415
    %v5417 = vcombine.low %v5323, %v5324
    %v5419 = vunpack.c.l.s4 1983009808
    %v5420 = vunpack.c.0.s8 %v5419
    %v5421 = vlaneseq
    %v5422 = vshrl.u32 %v5421, 7
    %v5423 = vsub.s32 %v5420, %v5422
    %v5424 = vrot.slane %v5417, %v5423
    %v5425 = vcombine.low %v5400, %v5408
    %v5426 = vcombine.high %v5400, %v5408
    %v5428 = vunpack.c.l.s4 1934713408
    %v5429 = vunpack.c.0.s8 %v5428
    %v5430 = vlaneseq
    %v5431 = vshrl.u32 %v5430, 7
    %v5432 = vsub.s32 %v5429, %v5431
    %v5433 = vrot.slane %v5425, %v5432
    %v5435 = vunpack.c.l.s4 1934713408
    %v5436 = vunpack.c.0.s8 %v5435
    %v5437 = vlaneseq
    %v5438 = vshrl.u32 %v5437, 7
    %v5439 = vsub.s32 %v5436, %v5438
    %v5440 = vrot.slane %v5426, %v5439
    %v5441 = vcombine.low %v5416, %v5424
    %v5442 = vcombine.high %v5416, %v5424
    %v5444 = vunpack.c.l.s4 1934713408
    %v5445 = vunpack.c.0.s8 %v5444
    %v5446 = vlaneseq
    %v5447 = vshrl.u32 %v5446, 7
    %v5448 = vsub.s32 %v5445, %v5447
    %v5449 = vrot.slane %v5441, %v5448
    %v5451 = vunpack.c.l.s4 1934713408
    %v5452 = vunpack.c.0.s8 %v5451
    %v5453 = vlaneseq
    %v5454 = vshrl.u32 %v5453, 7
    %v5455 = vsub.s32 %v5452, %v5454
    %v5456 = vrot.slane %v5442, %v5455
    %v5457 = vcombine.low %v5433, %v5449
    %v5458 = vcombine.high %v5433, %v5449
    %v5459 = vcombine.low %v5440, %v5456
    %v5460 = vcombine.high %v5440, %v5456
    %v5461 = vcombine.low %v5365, %v5372
    %v5463 = vunpack.c.l.s4 1983009808
    %v5464 = vunpack.c.0.s8 %v5463
    %v5465 = vlaneseq
    %v5466 = vshrl.u32 %v5465, 7
    %v5467 = vsub.s32 %v5464, %v5466
    %v5468 = vrot.slane %v5461, %v5467
    %v5469 = vcombine.low %v5389, %v5390
    %v5471 = vunpack.c.l.s4 1983009808
    %v5472 = vunpack.c.0.s8 %v5471
    %v5473 = vlaneseq
    %v5474 = vshrl.u32 %v5473, 7
    %v5475 = vsub.s32 %v5472, %v5474
    %v5476 = vrot.slane %v5469, %v5475
    %v5477 = vcombine.low %v5381, %v5388
    %v5479 = vunpack.c.l.s4 1983009808
    %v5480 = vunpack.c.0.s8 %v5479
    %v5481 = vlaneseq
    %v5482 = vshrl.u32 %v5481, 7
    %v5483 = vsub.s32 %v5480, %v5482
    %v5484 = vrot.slane %v5477, %v5483
    %v5485 = vcombine.low %v5391, %v5392
    %v5487 = vunpack.c.l.s4 1983009808
    %v5488 = vunpack.c.0.s8 %v5487
    %v5489 = vlaneseq
    %v5490 = vshrl.u32 %v5489, 7
    %v5491 = vsub.s32 %v5488, %v5490
    %v5492 = vrot.slane %v5485, %v5491
    %v5493 = vcombine.low %v5468, %v5476
    %v5494 = vcombine.high %v5468, %v5476
    %v5496 = vunpack.c.l.s4 1934713408
    %v5497 = vunpack.c.0.s8 %v5496
    %v5498 = vlaneseq
    %v5499 = vshrl.u32 %v5498, 7
    %v5500 = vsub.s32 %v5497, %v5499
    %v5501 = vrot.slane %v5493, %v5500
    %v5503 = vunpack.c.l.s4 1934713408
    %v5504 = vunpack.c.0.s8 %v5503
    %v5505 = vlaneseq
    %v5506 = vshrl.u32 %v5505, 7
    %v5507 = vsub.s32 %v5504, %v5506
    %v5508 = vrot.slane %v5494, %v5507
    %v5509 = vcombine.low %v5484, %v5492
    %v5510 = vcombine.high %v5484, %v5492
    %v5512 = vunpack.c.l.s4 1934713408
    %v5513 = vunpack.c.0.s8 %v5512
    %v5514 = vlaneseq
    %v5515 = vshrl.u32 %v5514, 7
    %v5516 = vsub.s32 %v5513, %v5515
    %v5517 = vrot.slane %v5509, %v5516
    %v5519 = vunpack.c.l.s4 1934713408
    %v5520 = vunpack.c.0.s8 %v5519
    %v5521 = vlaneseq
    %v5522 = vshrl.u32 %v5521, 7
    %v5523 = vsub.s32 %v5520, %v5522
    %v5524 = vrot.slane %v5510, %v5523
    %v5525 = vcombine.low %v5501, %v5517
    %v5526 = vcombine.high %v5501, %v5517
    %v5527 = vcombine.low %v5508, %v5524
    %v5528 = vcombine.high %v5508, %v5524
    %5531 = vrot.lane.b32.xlu0 %v5458, 8
    %v5532 = vpop.permute.xlu0 %5531
    %5533 = vrot.lane.b32.xlu0 %v5526, 8
    %v5534 = vpop.permute.xlu0 %5533
    %5539 = vrot.lane.b32.xlu0 %v5459, 16
    %v5540 = vpop.permute.xlu0 %5539
    %5541 = vrot.lane.b32.xlu0 %v5527, 16
    %v5542 = vpop.permute.xlu0 %5541
    %5547 = vrot.lane.b32.xlu0 %v5460, 24
    %v5548 = vpop.permute.xlu0 %5547
    %5549 = vrot.lane.b32.xlu0 %v5528, 24
    %v5550 = vpop.permute.xlu0 %5549
    %v5553 = vsel %vm1038, %v5457, %v5532
    %v5554 = vsel %vm1038, %v5525, %v5534
    %v5555 = vsel %vm2617, %v5553, %v5540
    %v5556 = vsel %vm2617, %v5554, %v5542
    %v5557 = vsel %vm2620, %v5555, %v5548
    %v5558 = vsel %vm2620, %v5556, %v5550
    %s5559 = scalar_lea.vmem %s3, 32
    %v5560 = vld [vmem:[%s5559] sm:$0xff]
    %v5561 = vld [vmem:[%s5559 + $0x8] sm:$0xff]
    %v5562 = vld [vmem:[%s5559 + $0x10] sm:$0xff]
    %v5563 = vld [vmem:[%s5559 + $0x18] sm:$0xff]
    %s5564 = scalar_lea.vmem %s4, 1
    %v5565 = vld [vmem:[%s5564] sm:$0x1]
    %v5567 = vlaneseq
    %v5568 = vshrl.u32 %v5567, 7
    %v5569 = vsub.s32 0, %v5568
    %v5570 = vrot.slane %v5565, %v5569
    %v5573 = vsel %vm72, %v5557, 0
    %v5576 = vsel %vm72, %v5558, 0
    %5578 = vmatprep.subr.mxu0 0.0
    %5579 = vmatpush1.msra.mxu0 %v5560
    %5580 = vmatprep.subr.mxu0 0.0
    %5581 = vmatpush1.msra.mxu0 %v5561
    %5582 = vmatprep.subr.mxu0 0.0
    %5583 = vmatpush1.msra.mxu0 %v5562
    %5584 = vmatprep.subr.mxu0 0.0
    %5585 = vmatpush1.msra.mxu0 %v5563
    %5586 = vmatprep.subr.mxu0 0.0
    %5587 = vmatpush1.msra.mxu0 0.0
    %5588 = vmatprep.subr.mxu0 0.0
    %5589 = vmatpush1.msra.mxu0 0.0
    %5590 = vmatprep.subr.mxu0 0.0
    %5591 = vmatpush1.msra.mxu0 0.0
    %5592 = vmatprep.subr.mxu0 0.0
    %5593 = vmatpush1.msra.mxu0 0.0
    %5594 = vmatprep.subr.mxu0 0.0
    %5595 = vmatpush1.msra.mxu0 0.0
    %5596 = vmatprep.subr.mxu0 0.0
    %5597 = vmatpush1.msra.mxu0 0.0
    %5598 = vmatprep.subr.mxu0 0.0
    %5599 = vmatpush1.msra.mxu0 0.0
    %5600 = vmatprep.subr.mxu0 0.0
    %5601 = vmatpush1.msra.mxu0 0.0
    %5602 = vmatprep.subr.mxu0 0.0
    %5603 = vmatpush1.msra.mxu0 0.0
    %5604 = vmatprep.subr.mxu0 0.0
    %5605 = vmatpush1.msra.mxu0 0.0
    %5606 = vmatprep.subr.mxu0 0.0
    %5607 = vmatpush1.msra.mxu0 0.0
    %5608 = vmatprep.subr.mxu0 0.0
    %5609 = vmatpush1.msra.mxu0 0.0
    %5610 = vmatprep.subr.mxu0 0.0
    %5611 = vmatpush1.msra.mxu0 0.0
    %5612 = vmatprep.subr.mxu0 0.0
    %5613 = vmatpush1.msra.mxu0 0.0
    %5614 = vmatprep.subr.mxu0 0.0
    %5615 = vmatpush1.msra.mxu0 0.0
    %5616 = vmatprep.subr.mxu0 0.0
    %5617 = vmatpush1.msra.mxu0 0.0
    %5618 = vmatprep.subr.mxu0 0.0
    %5619 = vmatpush1.msra.mxu0 0.0
    %5620 = vmatprep.subr.mxu0 0.0
    %5621 = vmatpush1.msra.mxu0 0.0
    %5622 = vmatprep.subr.mxu0 0.0
    %5623 = vmatpush1.msra.mxu0 0.0
    %5624 = vmatprep.subr.mxu0 0.0
    %5625 = vmatpush1.msra.mxu0 0.0
    %5626 = vmatprep.subr.mxu0 0.0
    %5627 = vmatpush1.msra.mxu0 0.0
    %5628 = vmatprep.subr.mxu0 0.0
    %5629 = vmatpush1.msra.mxu0 0.0
    %5630 = vmatprep.subr.mxu0 0.0
    %5631 = vmatpush1.msra.mxu0 0.0
    %5632 = vmatprep.subr.mxu0 0.0
    %5633 = vmatpush1.msra.mxu0 0.0
    %5634 = vmatprep.subr.mxu0 0.0
    %5635 = vmatpush1.msra.mxu0 0.0
    %5636 = vmatprep.subr.mxu0 0.0
    %5637 = vmatpush1.msra.mxu0 0.0
    %5638 = vmatprep.subr.mxu0 0.0
    %5639 = vmatpush1.msra.mxu0 0.0
    %5640 = vmatprep.subr.mxu0 0.0
    %5641 = vmatpush1.msra.mxu0 0.0
    %5642 = vmatprep.mubr.f32.mxu0 0.0
    %5643 = vmatmul.mubr.f32.gmra.mrb[0].mxu0 %v5573
    %v5644 = vpop.f32.mrb[0].mxu0
    %v5645 = vadd.f32 %v5570, %v5644
    %v5646 = vpop.f32.mrb[0].mxu0
    %5647 = vmatprep.mubr.f32.mxu0 0.0
    %5648 = vmatmul.mubr.f32.gmra.mrb[0].mxu0 %v5576
    %v5649 = vpop.f32.mrb[0].mxu0
    %v5650 = vadd.f32 %v5570, %v5649
    %v5651 = vpop.f32.mrb[0].mxu0
    %5652 = vdwg.mxu0
    %v5653 = vadd.f32 %v2997, %v5645
    %v5654 = vadd.f32 %v2998, %v5650
    %s5655 = scalar_lea.vmem %s5, 1
    %v5656 = vld [vmem:[%s5655] sm:$0x1]
    %s5657 = scalar_lea.vmem %s6, 1
    %v5658 = vld [vmem:[%s5657] sm:$0x1]
    %v5659 = vsel %vm72, %v5653, 0.0
    %5660 = vadd.xlane.f32.xlu0 %v5659
    %v5661 = vpop.xlane.xlu0 %5660
    %v5662 = vsel %vm72, %v5654, 0.0
    %5663 = vadd.xlane.f32.xlu0 %v5662
    %v5664 = vpop.xlane.xlu0 %5663
    %v5665 = vmul.f32 %v5661, %v2725
    %v5666 = vmul.f32 %v5664, %v2725
    %v5667 = vsub.f32 %v5653, %v5665
    %v5668 = vsub.f32 %v5654, %v5666
    %v5669 = vmul.f32 %v5667, %v5667
    %v5670 = vmul.f32 %v5668, %v5668
    %v5671 = vsel %vm72, %v5669, 0.0
    %5672 = vadd.xlane.f32.xlu0 %v5671
    %v5673 = vpop.xlane.xlu0 %5672
    %v5674 = vsel %vm72, %v5670, 0.0
    %5675 = vadd.xlane.f32.xlu0 %v5674
    %v5676 = vpop.xlane.xlu0 %5675
    %v5677 = vmul.f32 %v5673, %v2725
    %v5678 = vmul.f32 %v5676, %v2725
    %v5679 = vadd.f32 %v5677, 1e-05
    %v5680 = vadd.f32 %v5678, 1e-05
    %v5681 = vrsqrt.pop %v5679
    %v5682 = vrsqrt.pop %v5680
    %v5683 = vmul.f32 %v5667, %v5681
    %v5684 = vmul.f32 %v5668, %v5682
    %v5686 = vlaneseq
    %v5687 = vshrl.u32 %v5686, 7
    %v5688 = vsub.s32 0, %v5687
    %v5689 = vrot.slane %v5656, %v5688
    %v5691 = vmul.f32 %v5683, %v5689
    %v5692 = vmul.f32 %v5684, %v5689
    %v5694 = vlaneseq
    %v5695 = vshrl.u32 %v5694, 7
    %v5696 = vsub.s32 0, %v5695
    %v5697 = vrot.slane %v5658, %v5696
    %v5699 = vadd.f32 %v5691, %v5697
    %v5700 = vadd.f32 %v5692, %v5697
    %s5701 = scalar_lea.vmem %s7, 32
    %v5702 = vld [vmem:[%s5701] sm:$0xff]
    %v5703 = vld [vmem:[%s5701 + $0x8] sm:$0xff]
    %v5704 = vld [vmem:[%s5701 + $0x10] sm:$0xff]
    %v5705 = vld [vmem:[%s5701 + $0x18] sm:$0xff]
    %s5706 = scalar_lea.vmem %s8, 1
    %v5707 = vld [vmem:[%s5706] sm:$0x1]
    %v5709 = vlaneseq
    %v5710 = vshrl.u32 %v5709, 7
    %v5711 = vsub.s32 0, %v5710
    %v5712 = vrot.slane %v5707, %v5711
    %v5715 = vsel %vm72, %v5699, 0
    %v5718 = vsel %vm72, %v5700, 0
    %5720 = vmatprep.subr.mxu0 0.0
    %5721 = vmatpush1.msra.mxu0 %v5702
    %5722 = vmatprep.subr.mxu0 0.0
    %5723 = vmatpush1.msra.mxu0 %v5703
    %5724 = vmatprep.subr.mxu0 0.0
    %5725 = vmatpush1.msra.mxu0 %v5704
    %5726 = vmatprep.subr.mxu0 0.0
    %5727 = vmatpush1.msra.mxu0 %v5705
    %5728 = vmatprep.subr.mxu0 0.0
    %5729 = vmatpush1.msra.mxu0 0.0
    %5730 = vmatprep.subr.mxu0 0.0
    %5731 = vmatpush1.msra.mxu0 0.0
    %5732 = vmatprep.subr.mxu0 0.0
    %5733 = vmatpush1.msra.mxu0 0.0
    %5734 = vmatprep.subr.mxu0 0.0
    %5735 = vmatpush1.msra.mxu0 0.0
    %5736 = vmatprep.subr.mxu0 0.0
    %5737 = vmatpush1.msra.mxu0 0.0
    %5738 = vmatprep.subr.mxu0 0.0
    %5739 = vmatpush1.msra.mxu0 0.0
    %5740 = vmatprep.subr.mxu0 0.0
    %5741 = vmatpush1.msra.mxu0 0.0
    %5742 = vmatprep.subr.mxu0 0.0
    %5743 = vmatpush1.msra.mxu0 0.0
    %5744 = vmatprep.subr.mxu0 0.0
    %5745 = vmatpush1.msra.mxu0 0.0
    %5746 = vmatprep.subr.mxu0 0.0
    %5747 = vmatpush1.msra.mxu0 0.0
    %5748 = vmatprep.subr.mxu0 0.0
    %5749 = vmatpush1.msra.mxu0 0.0
    %5750 = vmatprep.subr.mxu0 0.0
    %5751 = vmatpush1.msra.mxu0 0.0
    %5752 = vmatprep.subr.mxu0 0.0
    %5753 = vmatpush1.msra.mxu0 0.0
    %5754 = vmatprep.subr.mxu0 0.0
    %5755 = vmatpush1.msra.mxu0 0.0
    %5756 = vmatprep.subr.mxu0 0.0
    %5757 = vmatpush1.msra.mxu0 0.0
    %5758 = vmatprep.subr.mxu0 0.0
    %5759 = vmatpush1.msra.mxu0 0.0
    %5760 = vmatprep.subr.mxu0 0.0
    %5761 = vmatpush1.msra.mxu0 0.0
    %5762 = vmatprep.subr.mxu0 0.0
    %5763 = vmatpush1.msra.mxu0 0.0
    %5764 = vmatprep.subr.mxu0 0.0
    %5765 = vmatpush1.msra.mxu0 0.0
    %5766 = vmatprep.subr.mxu0 0.0
    %5767 = vmatpush1.msra.mxu0 0.0
    %5768 = vmatprep.subr.mxu0 0.0
    %5769 = vmatpush1.msra.mxu0 0.0
    %5770 = vmatprep.subr.mxu0 0.0
    %5771 = vmatpush1.msra.mxu0 0.0
    %5772 = vmatprep.subr.mxu0 0.0
    %5773 = vmatpush1.msra.mxu0 0.0
    %5774 = vmatprep.subr.mxu0 0.0
    %5775 = vmatpush1.msra.mxu0 0.0
    %5776 = vmatprep.subr.mxu0 0.0
    %5777 = vmatpush1.msra.mxu0 0.0
    %5778 = vmatprep.subr.mxu0 0.0
    %5779 = vmatpush1.msra.mxu0 0.0
    %5780 = vmatprep.subr.mxu0 0.0
    %5781 = vmatpush1.msra.mxu0 0.0
    %5782 = vmatprep.subr.mxu0 0.0
    %5783 = vmatpush1.msra.mxu0 0.0
    %5784 = vmatprep.mubr.f32.mxu0 0.0
    %5785 = vmatmul.mubr.f32.gmra.mrb[0].mxu0 %v5715
    %v5786 = vpop.f32.mrb[0].mxu0
    %v5787 = vadd.f32 %v5712, %v5786
    %v5788 = vpop.f32.mrb[0].mxu0
    %5789 = vmatprep.mubr.f32.mxu0 0.0
    %5790 = vmatmul.mubr.f32.gmra.mrb[0].mxu0 %v5718
    %v5791 = vpop.f32.mrb[0].mxu0
    %v5792 = vadd.f32 %v5712, %v5791
    %v5793 = vpop.f32.mrb[0].mxu0
    %5794 = vdwg.mxu0
    %v5795 = vmax.f32 %v5787, 0.0
    %v5796 = vmax.f32 %v5792, 0.0
    %s5797 = scalar_lea.vmem %s9, 64
    %v5798 = vld [vmem:[%s5797] sm:$0xff]
    %v5799 = vld [vmem:[%s5797 + $0x8] sm:$0xff]
    %v5800 = vld [vmem:[%s5797 + $0x10] sm:$0xff]
    %v5801 = vld [vmem:[%s5797 + $0x18] sm:$0xff]
    %v5802 = vld [vmem:[%s5797 + $0x20] sm:$0xff]
    %v5803 = vld [vmem:[%s5797 + $0x28] sm:$0xff]
    %v5804 = vld [vmem:[%s5797 + $0x30] sm:$0xff]
    %v5805 = vld [vmem:[%s5797 + $0x38] sm:$0xff]
    %s5806 = scalar_lea.vmem %s10, 1
    %v5807 = vld [vmem:[%s5806] sm:$0x1]
    %v5809 = vlaneseq
    %v5810 = vshrl.u32 %v5809, 7
    %v5811 = vsub.s32 0, %v5810
    %v5812 = vrot.slane %v5807, %v5811
    %v5815 = vsel %vm2871, %v5795, 0
    %v5818 = vsel %vm2871, %v5796, 0
    %5820 = vmatprep.subr.mxu0 0.0
    %5821 = vmatpush1.msra.mxu0 %v5798
    %5822 = vmatprep.subr.mxu0 0.0
    %5823 = vmatpush1.msra.mxu0 %v5799
    %5824 = vmatprep.subr.mxu0 0.0
    %5825 = vmatpush1.msra.mxu0 %v5800
    %5826 = vmatprep.subr.mxu0 0.0
    %5827 = vmatpush1.msra.mxu0 %v5801
    %5828 = vmatprep.subr.mxu0 0.0
    %5829 = vmatpush1.msra.mxu0 %v5802
    %5830 = vmatprep.subr.mxu0 0.0
    %5831 = vmatpush1.msra.mxu0 %v5803
    %5832 = vmatprep.subr.mxu0 0.0
    %5833 = vmatpush1.msra.mxu0 %v5804
    %5834 = vmatprep.subr.mxu0 0.0
    %5835 = vmatpush1.msra.mxu0 %v5805
    %5836 = vmatprep.subr.mxu0 0.0
    %5837 = vmatpush1.msra.mxu0 0.0
    %5838 = vmatprep.subr.mxu0 0.0
    %5839 = vmatpush1.msra.mxu0 0.0
    %5840 = vmatprep.subr.mxu0 0.0
    %5841 = vmatpush1.msra.mxu0 0.0
    %5842 = vmatprep.subr.mxu0 0.0
    %5843 = vmatpush1.msra.mxu0 0.0
    %5844 = vmatprep.subr.mxu0 0.0
    %5845 = vmatpush1.msra.mxu0 0.0
    %5846 = vmatprep.subr.mxu0 0.0
    %5847 = vmatpush1.msra.mxu0 0.0
    %5848 = vmatprep.subr.mxu0 0.0
    %5849 = vmatpush1.msra.mxu0 0.0
    %5850 = vmatprep.subr.mxu0 0.0
    %5851 = vmatpush1.msra.mxu0 0.0
    %5852 = vmatprep.subr.mxu0 0.0
    %5853 = vmatpush1.msra.mxu0 0.0
    %5854 = vmatprep.subr.mxu0 0.0
    %5855 = vmatpush1.msra.mxu0 0.0
    %5856 = vmatprep.subr.mxu0 0.0
    %5857 = vmatpush1.msra.mxu0 0.0
    %5858 = vmatprep.subr.mxu0 0.0
    %5859 = vmatpush1.msra.mxu0 0.0
    %5860 = vmatprep.subr.mxu0 0.0
    %5861 = vmatpush1.msra.mxu0 0.0
    %5862 = vmatprep.subr.mxu0 0.0
    %5863 = vmatpush1.msra.mxu0 0.0
    %5864 = vmatprep.subr.mxu0 0.0
    %5865 = vmatpush1.msra.mxu0 0.0
    %5866 = vmatprep.subr.mxu0 0.0
    %5867 = vmatpush1.msra.mxu0 0.0
    %5868 = vmatprep.subr.mxu0 0.0
    %5869 = vmatpush1.msra.mxu0 0.0
    %5870 = vmatprep.subr.mxu0 0.0
    %5871 = vmatpush1.msra.mxu0 0.0
    %5872 = vmatprep.subr.mxu0 0.0
    %5873 = vmatpush1.msra.mxu0 0.0
    %5874 = vmatprep.subr.mxu0 0.0
    %5875 = vmatpush1.msra.mxu0 0.0
    %5876 = vmatprep.subr.mxu0 0.0
    %5877 = vmatpush1.msra.mxu0 0.0
    %5878 = vmatprep.subr.mxu0 0.0
    %5879 = vmatpush1.msra.mxu0 0.0
    %5880 = vmatprep.subr.mxu0 0.0
    %5881 = vmatpush1.msra.mxu0 0.0
    %5882 = vmatprep.subr.mxu0 0.0
    %5883 = vmatpush1.msra.mxu0 0.0
    %5884 = vmatprep.mubr.f32.mxu0 0.0
    %5885 = vmatmul.mubr.f32.gmra.mrb[0].mxu0 %v5815
    %v5886 = vpop.f32.mrb[0].mxu0
    %v5887 = vadd.f32 %v5812, %v5886
    %v5888 = vpop.f32.mrb[0].mxu0
    %5889 = vmatprep.mubr.f32.mxu0 0.0
    %5890 = vmatmul.mubr.f32.gmra.mrb[0].mxu0 %v5818
    %v5891 = vpop.f32.mrb[0].mxu0
    %v5892 = vadd.f32 %v5812, %v5891
    %v5893 = vpop.f32.mrb[0].mxu0
    %5894 = vdwg.mxu0
    %v5895 = vadd.f32 %v5699, %v5887
    %v5896 = vadd.f32 %v5700, %v5892
    %s5897 = scalar_lea.vmem %s11, 1
    %v5898 = vld [vmem:[%s5897] sm:$0x1]
    %s5899 = scalar_lea.vmem %s12, 1
    %v5900 = vld [vmem:[%s5899] sm:$0x1]
    %v5901 = vsel %vm72, %v5895, 0.0
    %5902 = vadd.xlane.f32.xlu0 %v5901
    %v5903 = vpop.xlane.xlu0 %5902
    %v5904 = vsel %vm72, %v5896, 0.0
    %5905 = vadd.xlane.f32.xlu0 %v5904
    %v5906 = vpop.xlane.xlu0 %5905
    %v5907 = vmul.f32 %v5903, %v2725
    %v5908 = vmul.f32 %v5906, %v2725
    %v5909 = vsub.f32 %v5895, %v5907
    %v5910 = vsub.f32 %v5896, %v5908
    %v5911 = vmul.f32 %v5909, %v5909
    %v5912 = vmul.f32 %v5910, %v5910
    %v5913 = vsel %vm72, %v5911, 0.0
    %5914 = vadd.xlane.f32.xlu0 %v5913
    %v5915 = vpop.xlane.xlu0 %5914
    %v5916 = vsel %vm72, %v5912, 0.0
    %5917 = vadd.xlane.f32.xlu0 %v5916
    %v5918 = vpop.xlane.xlu0 %5917
    %v5919 = vmul.f32 %v5915, %v2725
    %v5920 = vmul.f32 %v5918, %v2725
    %v5921 = vadd.f32 %v5919, 1e-05
    %v5922 = vadd.f32 %v5920, 1e-05
    %v5923 = vrsqrt.pop %v5921
    %v5924 = vrsqrt.pop %v5922
    %v5925 = vmul.f32 %v5909, %v5923
    %v5926 = vmul.f32 %v5910, %v5924
    %v5928 = vlaneseq
    %v5929 = vshrl.u32 %v5928, 7
    %v5930 = vsub.s32 0, %v5929
    %v5931 = vrot.slane %v5898, %v5930
    %v5933 = vmul.f32 %v5925, %v5931
    %v5934 = vmul.f32 %v5926, %v5931
    %v5936 = vlaneseq
    %v5937 = vshrl.u32 %v5936, 7
    %v5938 = vsub.s32 0, %v5937
    %v5939 = vrot.slane %v5900, %v5938
    %v5941 = vadd.f32 %v5933, %v5939
    %v5942 = vadd.f32 %v5934, %v5939
    %5943 = vst.msk [vmem:[#allocation5] sm:$0xff] %vm72, %v5941
    %5944 = vst.msk [vmem:[#allocation5 + $0x8] sm:$0xff] %vm72, %v5942
    // Predicated region
    $region58: #{tpu_custom_call.1} parent=1 // pred_check
      _
    $region59: #{tpu_custom_call.1} parent=1 // pred_check_branch
      %5946 = sbr.rel (0) target = $region61
    $region60: #{tpu_custom_call.1} parent=1 // pred_region
      %s5948 = ssub.s32 256, 256
      %5949 = vsyncadd [#allocation4], %s5948
      %s5950 = sshll.u32 [#allocation5], 4
      %s5951 = int_to_ptr.vmem [resolvable:$true] %s5950
      %5956 = dma.vmem_to_hbm [thread:$0]  %s5951, 256, %s13, [#allocation4], 128, 128, 8
    $region61: #{tpu_custom_call.1} parent=1 // pred_fallthru
      _
    // Predicated region
    $region62: #{tpu_custom_call.1} parent=1 // pred_check
      _
    $region63: #{tpu_custom_call.1} parent=1 // pred_check_branch
      %5958 = sbr.rel (0) target = $region65
    $region64: #{tpu_custom_call.1} parent=1 // pred_region
      %5959 = dma.done [#allocation4], 256
    $region65: #{tpu_custom_call.1} parent=1 // pred_fallthru
      _
    %5960 = vsyncpa [#allocation3], 1
    %5961 = vsyncpa [#allocation4], 1

</llo_original>
